<compile_context>
chip_gen: v5e
topology: v5e:2x2
jax: 0.10.0
libtpu: 0.0.40
codegen_flags: <defaults>
</compile_context>

<pallas_src>
import jax
import jax.numpy as jnp
from jax.experimental import pallas as pl
from jax.experimental.pallas import tpu as pltpu


OUT_PAD = 128            # lane-dense padded width for the fc3 output
TM_MAX = 512             # max batch tile: f32 x double-buffer ~27 MiB
VMEM_LIMIT = 48 << 20    # > ~36 MiB working set at TM=512, < v7x 64 MiB/TC


def _cdiv(a, b):
    return -(-a // b)


def _round_up(a, b):
    return _cdiv(a, b) * b


def eyenet_kernel(x_ref,                 # (TM, 6912) f32
                  w1_ref, b1_ref,        # (6912, 48) bf16, (1, 48) f32
                  w2_ref, b2_ref,        # (48, 16) f32,   (1, 16) f32
                  wf1_ref, bf1_ref,      # (16, 120) f32,  (1, 120) f32
                  wf2_ref, bf2_ref,      # (120, 84) f32,  (1, 84) f32
                  wf3_ref, bf3_ref,      # (84, 128) f32,  (1, 128) f32 (padded)
                  out_ref):              # (TM, 128) f32
    # In-kernel f32 -> bf16 cast: hidden under the x DMA, avoids a separate
    # HBM convert pass in the wrapper.
    x = x_ref[...].astype(jnp.bfloat16)                          # (TM, 6912)

    # conv1 (48x48 kernel on 48x48 input -> 1x1 spatial) + ReLU.
    # MaxPool2d(1,1) is the identity, folded away.  bf16 in, f32 accumulate.
    h = jnp.dot(x, w1_ref[...], preferred_element_type=jnp.float32) + b1_ref[...]
    h = jnp.maximum(h, 0.0)                                      # (TM, 48)

    # conv2 (1x1 conv on 1x1 spatial) + ReLU
    h = jnp.dot(h, w2_ref[...], preferred_element_type=jnp.float32) + b2_ref[...]
    h = jnp.maximum(h, 0.0)                                      # (TM, 16)

    # view(-1, 16) is a no-op here (already (TM, 16))

    # fc1 + ReLU
    h = jnp.dot(h, wf1_ref[...], preferred_element_type=jnp.float32) + bf1_ref[...]
    h = jnp.maximum(h, 0.0)                                      # (TM, 120)

    # fc2 + ReLU
    h = jnp.dot(h, wf2_ref[...], preferred_element_type=jnp.float32) + bf2_ref[...]
    h = jnp.maximum(h, 0.0)                                      # (TM, 84)

    # fc3 (no activation) — padded to 128 lanes for unmasked stores
    out_ref[...] = (jnp.dot(h, wf3_ref[...], preferred_element_type=jnp.float32)
                    + bf3_ref[...])                              # (TM, 128)


@jax.jit
def eyenet_forward(x_nchw, params):
    """x_nchw: (B, 3, 48, 48) float32. Returns (B, 10) float32."""
    (w1, b1, w2, b2, wf1, bf1, wf2, bf2, wf3, bf3) = params

    B = x_nchw.shape[0]
    K = w1.shape[0]                                   # 6912
    # Free reshape (contiguous view).  x stays f32: the bf16 cast happens
    # inside the kernel, so there is no extra HBM convert pass.
    x_flat = x_nchw.reshape(B, K)
    w1b = w1.astype(jnp.bfloat16)                     # tiny; keeps conv1 bf16xbf16

    # Pad fc3 to a lane-dense 128-wide output.
    n_out = wf3.shape[1]                              # 10
    wf3p = jnp.pad(wf3, ((0, 0), (0, OUT_PAD - n_out)))
    bf3p = jnp.pad(bf3, ((0, 0), (0, OUT_PAD - n_out)))

    # Batch tiling.  TM is a multiple of 8, <= TM_MAX; the grid gets >= 2
    # steps when the batch allows it (v7x megacore, both TCs pull the x
    # stream); padding overshoot is < 8*n_steps rows, and common batches
    # (multiples of 8 that tile evenly, e.g. 8/16/.../512/1024) need no
    # jnp.pad copy at all.
    B8 = _round_up(B, 8)
    n_steps = _cdiv(B8, TM_MAX)
    if B8 >= 16:
        n_steps = max(n_steps, 2)
    TM = _round_up(_cdiv(B8, n_steps), 8)
    grid_m = _cdiv(B8, TM)
    B_pad = grid_m * TM
    if B_pad != B:
        x_flat = jnp.pad(x_flat, ((0, B_pad - B), (0, 0)))
    grid = (grid_m,)

    # Constant index_map -> weights fetched once and kept VMEM-resident.
    def const2d(shape):
        return pl.BlockSpec(shape, lambda i: (0, 0))

    in_specs = [
        pl.BlockSpec((TM, K), lambda i: (i, 0)),          # x: tiled over batch
        const2d(w1b.shape), const2d(b1.shape),
        const2d(w2.shape), const2d(b2.shape),
        const2d(wf1.shape), const2d(bf1.shape),
        const2d(wf2.shape), const2d(bf2.shape),
        const2d(wf3p.shape), const2d(bf3p.shape),
    ]
    out_spec = pl.BlockSpec((TM, OUT_PAD), lambda i: (i, 0))

    # Advisory cost estimate (mem-bound on the f32 x stream).
    weight_bytes = (w1b.size * 2 + b1.size * 4 + w2.size * 4 + b2.size * 4
                    + wf1.size * 4 + bf1.size * 4 + wf2.size * 4 + bf2.size * 4
                    + wf3p.size * 4 + bf3p.size * 4)
    cost = pl.CostEstimate(
        flops=2 * B_pad * (K * 48 + 48 * 16 + 16 * 120 + 120 * 84 + 84 * OUT_PAD),
        transcendentals=0,
        bytes_accessed=B_pad * K * 4 + weight_bytes + B_pad * OUT_PAD * 4,
    )

    out_padded = pl.pallas_call(
        eyenet_kernel,
        out_shape=jax.ShapeDtypeStruct((B_pad, OUT_PAD), jnp.float32),
        grid=grid,
        in_specs=in_specs,
        out_specs=out_spec,
        compiler_params=pltpu.CompilerParams(
            dimension_semantics=("parallel",),
            vmem_limit_bytes=VMEM_LIMIT,
        ),
        cost_estimate=cost,
    )(x_flat, w1b, b1, w2, b2, wf1, bf1, wf2, bf2, wf3p, bf3p)

    return out_padded[:B, :n_out]


def init_params(key):
    """Deterministic parameter init matching the PyTorch layer shapes."""
    ks = jax.random.split(key, 10)

    def u(k, shape, fan_in):
        bound = 1.0 / jnp.sqrt(fan_in)
        return jax.random.uniform(k, shape, jnp.float32, -bound, bound)

    # conv1: Conv2d(3, 48, 48) -> weight (48, 3, 48, 48), bias (48,)
    conv1_w = u(ks[0], (48, 3, 48, 48), 3 * 48 * 48)
    conv1_b = u(ks[1], (48,), 3 * 48 * 48)
    # conv2: Conv2d(48, 16, 1) -> weight (16, 48, 1, 1), bias (16,)
    conv2_w = u(ks[2], (16, 48, 1, 1), 48)
    conv2_b = u(ks[3], (16,), 48)
    # fc1/fc2/fc3: Linear weights are (out, in) in PyTorch convention
    fc1_w = u(ks[4], (120, 16), 16)
    fc1_b = u(ks[5], (120,), 16)
    fc2_w = u(ks[6], (84, 120), 120)
    fc2_b = u(ks[7], (84,), 120)
    fc3_w = u(ks[8], (10, 84), 84)
    fc3_b = u(ks[9], (10,), 84)

    # Reshape to (in_features, out_features) matmul form for the kernel.
    w1 = conv1_w.reshape(48, -1).T          # (6912, 48)
    b1 = conv1_b.reshape(1, 48)
    w2 = conv2_w.reshape(16, 48).T          # (48, 16)
    b2 = conv2_b.reshape(1, 16)
    wf1 = fc1_w.T                            # (16, 120)
    bf1 = fc1_b.reshape(1, 120)
    wf2 = fc2_w.T                            # (120, 84)
    bf2 = fc2_b.reshape(1, 84)
    wf3 = fc3_w.T                            # (84, 10)
    bf3 = fc3_b.reshape(1, 10)

    return (w1, b1, w2, b2, wf1, bf1, wf2, bf2, wf3, bf3)


def eyenet_reference(x_nchw, params):
    """Pure-JAX f32 reference for the same math."""
    (w1, b1, w2, b2, wf1, bf1, wf2, bf2, wf3, bf3) = params
    B = x_nchw.shape[0]
    h = x_nchw.reshape(B, -1)
    h = jnp.maximum(h @ w1 + b1, 0.0)
    h = jnp.maximum(h @ w2 + b2, 0.0)
    h = jnp.maximum(h @ wf1 + bf1, 0.0)
    h = jnp.maximum(h @ wf2 + bf2, 0.0)
    return h @ wf3 + bf3


if __name__ == "__main__":
    key = jax.random.PRNGKey(0)
    k_x, k_p = jax.random.split(key)

    # Input consistent with the module: conv1(3, 48, kernel=48) implies
    # H = W = 48 so the view(-1, 16) reshape is exact.
    B = 2
    x = jax.random.normal(k_x, (B, 3, 48, 48), dtype=jnp.float32)
    params = init_params(k_p)

    out = eyenet_forward(x, params)
    out = jax.block_until_ready(out)

    ref = eyenet_reference(x, params)
    assert out.shape == (B, 10), out.shape
    # bf16 inputs over the K=6912 reduction (f32 accumulation) -> loose tol.
    assert jnp.allclose(out, ref, rtol=5e-2, atol=5e-2), (
        "max abs diff %g" % float(jnp.max(jnp.abs(out - ref))))

    print("KERNEL_OK")
</pallas_src>

<mosaic_0001>
module attributes {stable_mosaic.version = 11 : i64} {
  func.func @eyenet_kernel(%arg0: i32, %arg1: memref<8x6912xf32, #tpu.memory_space<vmem>>, %arg2: memref<6912x48xbf16, #tpu.memory_space<vmem>>, %arg3: memref<1x48xf32, #tpu.memory_space<vmem>>, %arg4: memref<48x16xf32, #tpu.memory_space<vmem>>, %arg5: memref<1x16xf32, #tpu.memory_space<vmem>>, %arg6: memref<16x120xf32, #tpu.memory_space<vmem>>, %arg7: memref<1x120xf32, #tpu.memory_space<vmem>>, %arg8: memref<120x84xf32, #tpu.memory_space<vmem>>, %arg9: memref<1x84xf32, #tpu.memory_space<vmem>>, %arg10: memref<84x128xf32, #tpu.memory_space<vmem>>, %arg11: memref<1x128xf32, #tpu.memory_space<vmem>>, %arg12: memref<8x128xf32, #tpu.memory_space<vmem>>) attributes {dimension_semantics = [#tpu.dimension_semantics<parallel>], iteration_bounds = array<i64: 1>, scalar_prefetch = 0 : i64, scratch_operands = 0 : i64, tpu.core_type = #tpu.core_type<tc>, window_params = [{transform_indices = @transform_0, window_bounds = array<i64: 8, 6912>}, {pipeline_mode = #tpu.pipeline_mode<synchronous>, transform_indices = @transform_1, window_bounds = array<i64: 6912, 48>}, {pipeline_mode = #tpu.pipeline_mode<synchronous>, transform_indices = @transform_2, window_bounds = array<i64: 1, 48>}, {pipeline_mode = #tpu.pipeline_mode<synchronous>, transform_indices = @transform_3, window_bounds = array<i64: 48, 16>}, {pipeline_mode = #tpu.pipeline_mode<synchronous>, transform_indices = @transform_4, window_bounds = array<i64: 1, 16>}, {pipeline_mode = #tpu.pipeline_mode<synchronous>, transform_indices = @transform_5, window_bounds = array<i64: 16, 120>}, {pipeline_mode = #tpu.pipeline_mode<synchronous>, transform_indices = @transform_6, window_bounds = array<i64: 1, 120>}, {pipeline_mode = #tpu.pipeline_mode<synchronous>, transform_indices = @transform_7, window_bounds = array<i64: 120, 84>}, {pipeline_mode = #tpu.pipeline_mode<synchronous>, transform_indices = @transform_8, window_bounds = array<i64: 1, 84>}, {pipeline_mode = #tpu.pipeline_mode<synchronous>, transform_indices = @transform_9, window_bounds = array<i64: 84, 128>}, {pipeline_mode = #tpu.pipeline_mode<synchronous>, transform_indices = @transform_10, window_bounds = array<i64: 1, 128>}, {transform_indices = @transform_11, window_bounds = array<i64: 8, 128>}]} {
    %c0 = arith.constant 0 : index
    %c0_0 = arith.constant 0 : index
    %0 = vector.load %arg1[%c0, %c0_0] : memref<8x6912xf32, #tpu.memory_space<vmem>>, vector<8x6912xf32>
    %1 = arith.truncf %0 : vector<8x6912xf32> to vector<8x6912xbf16>
    %c0_1 = arith.constant 0 : index
    %c0_2 = arith.constant 0 : index
    %2 = vector.load %arg2[%c0_1, %c0_2] : memref<6912x48xbf16, #tpu.memory_space<vmem>>, vector<6912x48xbf16>
    %cst = arith.constant dense<0.000000e+00> : vector<8x48xf32>
    %3 = tpu.matmul %1, %2, %cst {dimension_numbers = #tpu.dot_dimension_numbers<[1], [0], [0], [1], [0, 0, 1, 1], [], []>} : vector<8x6912xbf16>, vector<6912x48xbf16>, vector<8x48xf32> -> vector<8x48xf32>
    %c0_3 = arith.constant 0 : index
    %c0_4 = arith.constant 0 : index
    %4 = vector.load %arg3[%c0_3, %c0_4] : memref<1x48xf32, #tpu.memory_space<vmem>>, vector<1x48xf32>
    %5 = vector.broadcast %4 : vector<1x48xf32> to vector<8x48xf32>
    %6 = arith.addf %3, %5 : vector<8x48xf32>
    %cst_5 = arith.constant 0.000000e+00 : f32
    %7 = vector.broadcast %cst_5 : f32 to vector<8x48xf32>
    %8 = arith.maximumf %6, %7 : vector<8x48xf32>
    %c0_6 = arith.constant 0 : index
    %c0_7 = arith.constant 0 : index
    %9 = vector.load %arg4[%c0_6, %c0_7] : memref<48x16xf32, #tpu.memory_space<vmem>>, vector<48x16xf32>
    %cst_8 = arith.constant dense<0.000000e+00> : vector<8x16xf32>
    %10 = tpu.matmul %8, %9, %cst_8 {dimension_numbers = #tpu.dot_dimension_numbers<[1], [0], [0], [1], [0, 0, 1, 1], [], []>} : vector<8x48xf32>, vector<48x16xf32>, vector<8x16xf32> -> vector<8x16xf32>
    %c0_9 = arith.constant 0 : index
    %c0_10 = arith.constant 0 : index
    %11 = vector.load %arg5[%c0_9, %c0_10] : memref<1x16xf32, #tpu.memory_space<vmem>>, vector<1x16xf32>
    %12 = vector.broadcast %11 : vector<1x16xf32> to vector<8x16xf32>
    %13 = arith.addf %10, %12 : vector<8x16xf32>
    %cst_11 = arith.constant 0.000000e+00 : f32
    %14 = vector.broadcast %cst_11 : f32 to vector<8x16xf32>
    %15 = arith.maximumf %13, %14 : vector<8x16xf32>
    %c0_12 = arith.constant 0 : index
    %c0_13 = arith.constant 0 : index
    %16 = vector.load %arg6[%c0_12, %c0_13] : memref<16x120xf32, #tpu.memory_space<vmem>>, vector<16x120xf32>
    %cst_14 = arith.constant dense<0.000000e+00> : vector<8x120xf32>
    %17 = tpu.matmul %15, %16, %cst_14 {dimension_numbers = #tpu.dot_dimension_numbers<[1], [0], [0], [1], [0, 0, 1, 1], [], []>} : vector<8x16xf32>, vector<16x120xf32>, vector<8x120xf32> -> vector<8x120xf32>
    %c0_15 = arith.constant 0 : index
    %c0_16 = arith.constant 0 : index
    %18 = vector.load %arg7[%c0_15, %c0_16] : memref<1x120xf32, #tpu.memory_space<vmem>>, vector<1x120xf32>
    %19 = vector.broadcast %18 : vector<1x120xf32> to vector<8x120xf32>
    %20 = arith.addf %17, %19 : vector<8x120xf32>
    %cst_17 = arith.constant 0.000000e+00 : f32
    %21 = vector.broadcast %cst_17 : f32 to vector<8x120xf32>
    %22 = arith.maximumf %20, %21 : vector<8x120xf32>
    %c0_18 = arith.constant 0 : index
    %c0_19 = arith.constant 0 : index
    %23 = vector.load %arg8[%c0_18, %c0_19] : memref<120x84xf32, #tpu.memory_space<vmem>>, vector<120x84xf32>
    %cst_20 = arith.constant dense<0.000000e+00> : vector<8x84xf32>
    %24 = tpu.matmul %22, %23, %cst_20 {dimension_numbers = #tpu.dot_dimension_numbers<[1], [0], [0], [1], [0, 0, 1, 1], [], []>} : vector<8x120xf32>, vector<120x84xf32>, vector<8x84xf32> -> vector<8x84xf32>
    %c0_21 = arith.constant 0 : index
    %c0_22 = arith.constant 0 : index
    %25 = vector.load %arg9[%c0_21, %c0_22] : memref<1x84xf32, #tpu.memory_space<vmem>>, vector<1x84xf32>
    %26 = vector.broadcast %25 : vector<1x84xf32> to vector<8x84xf32>
    %27 = arith.addf %24, %26 : vector<8x84xf32>
    %cst_23 = arith.constant 0.000000e+00 : f32
    %28 = vector.broadcast %cst_23 : f32 to vector<8x84xf32>
    %29 = arith.maximumf %27, %28 : vector<8x84xf32>
    %c0_24 = arith.constant 0 : index
    %c0_25 = arith.constant 0 : index
    %30 = vector.load %arg10[%c0_24, %c0_25] : memref<84x128xf32, #tpu.memory_space<vmem>>, vector<84x128xf32>
    %cst_26 = arith.constant dense<0.000000e+00> : vector<8x128xf32>
    %31 = tpu.matmul %29, %30, %cst_26 {dimension_numbers = #tpu.dot_dimension_numbers<[1], [0], [0], [1], [0, 0, 1, 1], [], []>} : vector<8x84xf32>, vector<84x128xf32>, vector<8x128xf32> -> vector<8x128xf32>
    %c0_27 = arith.constant 0 : index
    %c0_28 = arith.constant 0 : index
    %32 = vector.load %arg11[%c0_27, %c0_28] : memref<1x128xf32, #tpu.memory_space<vmem>>, vector<1x128xf32>
    %33 = vector.broadcast %32 : vector<1x128xf32> to vector<8x128xf32>
    %34 = arith.addf %31, %33 : vector<8x128xf32>
    %c0_29 = arith.constant 0 : index
    %c0_30 = arith.constant 0 : index
    %35 = vector.load %arg12[%c0_29, %c0_30] : memref<8x128xf32, #tpu.memory_space<vmem>>, vector<8x128xf32>
    tpu.vector_store %arg12[%c0_29, %c0_30], %34 {strides = array<i32>} : memref<8x128xf32, #tpu.memory_space<vmem>>, vector<8x128xf32>,
    return
  }
  func.func @transform_0(%arg0: i32) -> (i32, i32) {
    %c0_i32 = arith.constant 0 : i32
    %c0_i32_0 = arith.constant 0 : i32
    return %arg0, %c0_i32 : i32, i32
  }
  func.func @transform_1(%arg0: i32) -> (i32, i32) {
    %c0_i32 = arith.constant 0 : i32
    %c0_i32_0 = arith.constant 0 : i32
    %c0_i32_1 = arith.constant 0 : i32
    return %c0_i32, %c0_i32_0 : i32, i32
  }
  func.func @transform_2(%arg0: i32) -> (i32, i32) {
    %c0_i32 = arith.constant 0 : i32
    %c0_i32_0 = arith.constant 0 : i32
    %c0_i32_1 = arith.constant 0 : i32
    return %c0_i32, %c0_i32_0 : i32, i32
  }
  func.func @transform_3(%arg0: i32) -> (i32, i32) {
    %c0_i32 = arith.constant 0 : i32
    %c0_i32_0 = arith.constant 0 : i32
    %c0_i32_1 = arith.constant 0 : i32
    return %c0_i32, %c0_i32_0 : i32, i32
  }
  func.func @transform_4(%arg0: i32) -> (i32, i32) {
    %c0_i32 = arith.constant 0 : i32
    %c0_i32_0 = arith.constant 0 : i32
    %c0_i32_1 = arith.constant 0 : i32
    return %c0_i32, %c0_i32_0 : i32, i32
  }
  func.func @transform_5(%arg0: i32) -> (i32, i32) {
    %c0_i32 = arith.constant 0 : i32
    %c0_i32_0 = arith.constant 0 : i32
    %c0_i32_1 = arith.constant 0 : i32
    return %c0_i32, %c0_i32_0 : i32, i32
  }
  func.func @transform_6(%arg0: i32) -> (i32, i32) {
    %c0_i32 = arith.constant 0 : i32
    %c0_i32_0 = arith.constant 0 : i32
    %c0_i32_1 = arith.constant 0 : i32
    return %c0_i32, %c0_i32_0 : i32, i32
  }
  func.func @transform_7(%arg0: i32) -> (i32, i32) {
    %c0_i32 = arith.constant 0 : i32
    %c0_i32_0 = arith.constant 0 : i32
    %c0_i32_1 = arith.constant 0 : i32
    return %c0_i32, %c0_i32_0 : i32, i32
  }
  func.func @transform_8(%arg0: i32) -> (i32, i32) {
    %c0_i32 = arith.constant 0 : i32
    %c0_i32_0 = arith.constant 0 : i32
    %c0_i32_1 = arith.constant 0 : i32
    return %c0_i32, %c0_i32_0 : i32, i32
  }
  func.func @transform_9(%arg0: i32) -> (i32, i32) {
    %c0_i32 = arith.constant 0 : i32
    %c0_i32_0 = arith.constant 0 : i32
    %c0_i32_1 = arith.constant 0 : i32
    return %c0_i32, %c0_i32_0 : i32, i32
  }
  func.func @transform_10(%arg0: i32) -> (i32, i32) {
    %c0_i32 = arith.constant 0 : i32
    %c0_i32_0 = arith.constant 0 : i32
    %c0_i32_1 = arith.constant 0 : i32
    return %c0_i32, %c0_i32_0 : i32, i32
  }
  func.func @transform_11(%arg0: i32) -> (i32, i32) {
    %c0_i32 = arith.constant 0 : i32
    %c0_i32_0 = arith.constant 0 : i32
    return %arg0, %c0_i32 : i32, i32
  }
}

</mosaic_0001>

<llo_original>
// kernel: eyenet_forward.1
$region0: #{eyenet_forward.1}
  #allocation0 [shape = 'u32[]', space=smem, size = 0x4, offset = 0x4, fixed_abs, tag = 'smem constant byte address 0x4 - core index']
  #allocation1 [shape = 'u32[72,128]{1,0:T(1,128)}', space=vmem, size = 0x9000, scoped, tag = 'internal scratch']
  %s0 = inlined_call_operand.vmem [shape: f32[8,6912], index: 0, kind: input, shape index: {}]
  %s1 = inlined_call_operand.vmem [shape: bf16[6912,48], index: 1, kind: input, shape index: {}]
  %s2 = inlined_call_operand.vmem [shape: f32[1,48], index: 2, kind: input, shape index: {}]
  %s3 = inlined_call_operand.vmem [shape: f32[48,16], index: 3, kind: input, shape index: {}]
  %s4 = inlined_call_operand.vmem [shape: f32[1,16], index: 4, kind: input, shape index: {}]
  %s5 = inlined_call_operand.vmem [shape: f32[16,120], index: 5, kind: input, shape index: {}]
  %s6 = inlined_call_operand.vmem [shape: f32[1,120], index: 6, kind: input, shape index: {}]
  %s7 = inlined_call_operand.vmem [shape: f32[120,84], index: 7, kind: input, shape index: {}]
  %s8 = inlined_call_operand.vmem [shape: f32[1,84], index: 8, kind: input, shape index: {}]
  %s9 = inlined_call_operand.vmem [shape: f32[84,128], index: 9, kind: input, shape index: {}]
  %s10 = inlined_call_operand.vmem [shape: f32[1,128], index: 10, kind: input, shape index: {}]
  %s11 = inlined_call_operand.vmem [shape: f32[8,128], index: 11, kind: output, shape index: {}]
  %s12 = sld [smem:[#allocation0]]
  $region54: #{eyenet_forward.1} parent=0
    _
  %s14 = ssub.s32 1, %s12
  %s15 = scalar_select 0, %s14, %s12
  // Predicated region
  $region2: #{eyenet_forward.1} parent=0 // pred_check
    _
  $region3: #{eyenet_forward.1} parent=0 // pred_check_branch
    %17 = sbr.rel (0) target = $region5
  $region4: #{eyenet_forward.1} parent=0 // pred_region
    _
  $region5: #{eyenet_forward.1} parent=0 // pred_fallthru
    _
  // Predicated region
  $region6: #{eyenet_forward.1} parent=0 // pred_check
    _
  $region7: #{eyenet_forward.1} parent=0 // pred_check_branch
    %19 = sbr.rel (0) target = $region9
  $region8: #{eyenet_forward.1} parent=0 // pred_region
    _
  $region9: #{eyenet_forward.1} parent=0 // pred_fallthru
    _
  // Predicated region
  $region10: #{eyenet_forward.1} parent=0 // pred_check
    _
  $region11: #{eyenet_forward.1} parent=0 // pred_check_branch
    %21 = sbr.rel (0) target = $region13
  $region12: #{eyenet_forward.1} parent=0 // pred_region
    _
  $region13: #{eyenet_forward.1} parent=0 // pred_fallthru
    _
  // Predicated region
  $region14: #{eyenet_forward.1} parent=0 // pred_check
    _
  $region15: #{eyenet_forward.1} parent=0 // pred_check_branch
    %23 = sbr.rel (0) target = $region17
  $region16: #{eyenet_forward.1} parent=0 // pred_region
    _
  $region17: #{eyenet_forward.1} parent=0 // pred_fallthru
    _
  // Predicated region
  $region18: #{eyenet_forward.1} parent=0 // pred_check
    _
  $region19: #{eyenet_forward.1} parent=0 // pred_check_branch
    %25 = sbr.rel (0) target = $region21
  $region20: #{eyenet_forward.1} parent=0 // pred_region
    _
  $region21: #{eyenet_forward.1} parent=0 // pred_fallthru
    _
  // Predicated region
  $region22: #{eyenet_forward.1} parent=0 // pred_check
    _
  $region23: #{eyenet_forward.1} parent=0 // pred_check_branch
    %27 = sbr.rel (0) target = $region25
  $region24: #{eyenet_forward.1} parent=0 // pred_region
    _
  $region25: #{eyenet_forward.1} parent=0 // pred_fallthru
    _
  // Predicated region
  $region26: #{eyenet_forward.1} parent=0 // pred_check
    _
  $region27: #{eyenet_forward.1} parent=0 // pred_check_branch
    %29 = sbr.rel (0) target = $region29
  $region28: #{eyenet_forward.1} parent=0 // pred_region
    _
  $region29: #{eyenet_forward.1} parent=0 // pred_fallthru
    _
  // Predicated region
  $region30: #{eyenet_forward.1} parent=0 // pred_check
    _
  $region31: #{eyenet_forward.1} parent=0 // pred_check_branch
    %31 = sbr.rel (0) target = $region33
  $region32: #{eyenet_forward.1} parent=0 // pred_region
    _
  $region33: #{eyenet_forward.1} parent=0 // pred_fallthru
    _
  // Predicated region
  $region34: #{eyenet_forward.1} parent=0 // pred_check
    _
  $region35: #{eyenet_forward.1} parent=0 // pred_check_branch
    %33 = sbr.rel (0) target = $region37
  $region36: #{eyenet_forward.1} parent=0 // pred_region
    _
  $region37: #{eyenet_forward.1} parent=0 // pred_fallthru
    _
  // Predicated region
  $region38: #{eyenet_forward.1} parent=0 // pred_check
    _
  $region39: #{eyenet_forward.1} parent=0 // pred_check_branch
    %35 = sbr.rel (0) target = $region41
  $region40: #{eyenet_forward.1} parent=0 // pred_region
    _
  $region41: #{eyenet_forward.1} parent=0 // pred_fallthru
    _
  // Predicated region
  $region42: #{eyenet_forward.1} parent=0 // pred_check
    _
  $region43: #{eyenet_forward.1} parent=0 // pred_check_branch
    %37 = sbr.rel (0) target = $region45
  $region44: #{eyenet_forward.1} parent=0 // pred_region
    _
  $region45: #{eyenet_forward.1} parent=0 // pred_fallthru
    _
  %v38 = vld [vmem:[%s0] sm:$0xff]
  %v39 = vld [vmem:[%s0 + $0x8] sm:$0xff]
  %v40 = vld [vmem:[%s0 + $0x10] sm:$0xff]
  %v41 = vld [vmem:[%s0 + $0x18] sm:$0xff]
  %v42 = vld [vmem:[%s0 + $0x20] sm:$0xff]
  %v43 = vld [vmem:[%s0 + $0x28] sm:$0xff]
  %v44 = vld [vmem:[%s0 + $0x30] sm:$0xff]
  %v45 = vld [vmem:[%s0 + $0x38] sm:$0xff]
  %v46 = vld [vmem:[%s0 + $0x40] sm:$0xff]
  %v47 = vld [vmem:[%s0 + $0x48] sm:$0xff]
  %v48 = vld [vmem:[%s0 + $0x50] sm:$0xff]
  %v49 = vld [vmem:[%s0 + $0x58] sm:$0xff]
  %v50 = vld [vmem:[%s0 + $0x60] sm:$0xff]
  %v51 = vld [vmem:[%s0 + $0x68] sm:$0xff]
  %v52 = vld [vmem:[%s0 + $0x70] sm:$0xff]
  %v53 = vld [vmem:[%s0 + $0x78] sm:$0xff]
  %v54 = vld [vmem:[%s0 + $0x80] sm:$0xff]
  %v55 = vld [vmem:[%s0 + $0x88] sm:$0xff]
  %v56 = vld [vmem:[%s0 + $0x90] sm:$0xff]
  %v57 = vld [vmem:[%s0 + $0x98] sm:$0xff]
  %v58 = vld [vmem:[%s0 + $0xa0] sm:$0xff]
  %v59 = vld [vmem:[%s0 + $0xa8] sm:$0xff]
  %v60 = vld [vmem:[%s0 + $0xb0] sm:$0xff]
  %v61 = vld [vmem:[%s0 + $0xb8] sm:$0xff]
  %v62 = vld [vmem:[%s0 + $0xc0] sm:$0xff]
  %v63 = vld [vmem:[%s0 + $0xc8] sm:$0xff]
  %v64 = vld [vmem:[%s0 + $0xd0] sm:$0xff]
  %v65 = vld [vmem:[%s0 + $0xd8] sm:$0xff]
  %v66 = vld [vmem:[%s0 + $0xe0] sm:$0xff]
  %v67 = vld [vmem:[%s0 + $0xe8] sm:$0xff]
  %v68 = vld [vmem:[%s0 + $0xf0] sm:$0xff]
  %v69 = vld [vmem:[%s0 + $0xf8] sm:$0xff]
  %v70 = vld [vmem:[%s0 + $0x100] sm:$0xff]
  %v71 = vld [vmem:[%s0 + $0x108] sm:$0xff]
  %v72 = vld [vmem:[%s0 + $0x110] sm:$0xff]
  %v73 = vld [vmem:[%s0 + $0x118] sm:$0xff]
  %v74 = vld [vmem:[%s0 + $0x120] sm:$0xff]
  %v75 = vld [vmem:[%s0 + $0x128] sm:$0xff]
  %v76 = vld [vmem:[%s0 + $0x130] sm:$0xff]
  %v77 = vld [vmem:[%s0 + $0x138] sm:$0xff]
  %v78 = vld [vmem:[%s0 + $0x140] sm:$0xff]
  %v79 = vld [vmem:[%s0 + $0x148] sm:$0xff]
  %v80 = vld [vmem:[%s0 + $0x150] sm:$0xff]
  %v81 = vld [vmem:[%s0 + $0x158] sm:$0xff]
  %v82 = vld [vmem:[%s0 + $0x160] sm:$0xff]
  %v83 = vld [vmem:[%s0 + $0x168] sm:$0xff]
  %v84 = vld [vmem:[%s0 + $0x170] sm:$0xff]
  %v85 = vld [vmem:[%s0 + $0x178] sm:$0xff]
  %v86 = vld [vmem:[%s0 + $0x180] sm:$0xff]
  %v87 = vld [vmem:[%s0 + $0x188] sm:$0xff]
  %v88 = vld [vmem:[%s0 + $0x190] sm:$0xff]
  %v89 = vld [vmem:[%s0 + $0x198] sm:$0xff]
  %v90 = vld [vmem:[%s0 + $0x1a0] sm:$0xff]
  %v91 = vld [vmem:[%s0 + $0x1a8] sm:$0xff]
  %v92 = vpack.c.bf16 %v38, %v38
  %v93 = vpack.c.bf16 %v39, %v39
  %v94 = vpack.c.bf16 %v40, %v40
  %v95 = vpack.c.bf16 %v41, %v41
  %v96 = vpack.c.bf16 %v42, %v42
  %v97 = vpack.c.bf16 %v43, %v43
  %v98 = vpack.c.bf16 %v44, %v44
  %v99 = vpack.c.bf16 %v45, %v45
  %v100 = vpack.c.bf16 %v46, %v46
  %v101 = vpack.c.bf16 %v47, %v47
  %v102 = vpack.c.bf16 %v48, %v48
  %v103 = vpack.c.bf16 %v49, %v49
  %v104 = vpack.c.bf16 %v50, %v50
  %v105 = vpack.c.bf16 %v51, %v51
  %v106 = vpack.c.bf16 %v52, %v52
  %v107 = vpack.c.bf16 %v53, %v53
  %v108 = vpack.c.bf16 %v54, %v54
  %v109 = vpack.c.bf16 %v55, %v55
  %v110 = vpack.c.bf16 %v56, %v56
  %v111 = vpack.c.bf16 %v57, %v57
  %v112 = vpack.c.bf16 %v58, %v58
  %v113 = vpack.c.bf16 %v59, %v59
  %v114 = vpack.c.bf16 %v60, %v60
  %v115 = vpack.c.bf16 %v61, %v61
  %v116 = vpack.c.bf16 %v62, %v62
  %v117 = vpack.c.bf16 %v63, %v63
  %v118 = vpack.c.bf16 %v64, %v64
  %v119 = vpack.c.bf16 %v65, %v65
  %v120 = vpack.c.bf16 %v66, %v66
  %v121 = vpack.c.bf16 %v67, %v67
  %v122 = vpack.c.bf16 %v68, %v68
  %v123 = vpack.c.bf16 %v69, %v69
  %v124 = vpack.c.bf16 %v70, %v70
  %v125 = vpack.c.bf16 %v71, %v71
  %v126 = vpack.c.bf16 %v72, %v72
  %v127 = vpack.c.bf16 %v73, %v73
  %v128 = vpack.c.bf16 %v74, %v74
  %v129 = vpack.c.bf16 %v75, %v75
  %v130 = vpack.c.bf16 %v76, %v76
  %v131 = vpack.c.bf16 %v77, %v77
  %v132 = vpack.c.bf16 %v78, %v78
  %v133 = vpack.c.bf16 %v79, %v79
  %v134 = vpack.c.bf16 %v80, %v80
  %v135 = vpack.c.bf16 %v81, %v81
  %v136 = vpack.c.bf16 %v82, %v82
  %v137 = vpack.c.bf16 %v83, %v83
  %v138 = vpack.c.bf16 %v84, %v84
  %v139 = vpack.c.bf16 %v85, %v85
  %v140 = vpack.c.bf16 %v86, %v86
  %v141 = vpack.c.bf16 %v87, %v87
  %v142 = vpack.c.bf16 %v88, %v88
  %v143 = vpack.c.bf16 %v89, %v89
  %v144 = vpack.c.bf16 %v90, %v90
  %v145 = vpack.c.bf16 %v91, %v91
  %v146 = vld [vmem:[%s1] sm:$0xf]
  %v147 = vld [vmem:[%s1 + $0x4] sm:$0xf]
  %v148 = vld [vmem:[%s1 + $0x8] sm:$0xf]
  %v149 = vld [vmem:[%s1 + $0xc] sm:$0xf]
  %v150 = vld [vmem:[%s1 + $0x10] sm:$0xf]
  %v151 = vld [vmem:[%s1 + $0x14] sm:$0xf]
  %v152 = vld [vmem:[%s1 + $0x18] sm:$0xf]
  %v153 = vld [vmem:[%s1 + $0x1c] sm:$0xf]
  %v154 = vld [vmem:[%s1 + $0x20] sm:$0xf]
  %v155 = vld [vmem:[%s1 + $0x24] sm:$0xf]
  %v156 = vld [vmem:[%s1 + $0x28] sm:$0xf]
  %v157 = vld [vmem:[%s1 + $0x2c] sm:$0xf]
  %v158 = vld [vmem:[%s1 + $0x30] sm:$0xf]
  %v159 = vld [vmem:[%s1 + $0x34] sm:$0xf]
  %v160 = vld [vmem:[%s1 + $0x38] sm:$0xf]
  %v161 = vld [vmem:[%s1 + $0x3c] sm:$0xf]
  %v162 = vld [vmem:[%s1 + $0x40] sm:$0xf]
  %v163 = vld [vmem:[%s1 + $0x44] sm:$0xf]
  %v164 = vld [vmem:[%s1 + $0x48] sm:$0xf]
  %v165 = vld [vmem:[%s1 + $0x4c] sm:$0xf]
  %v166 = vld [vmem:[%s1 + $0x50] sm:$0xf]
  %v167 = vld [vmem:[%s1 + $0x54] sm:$0xf]
  %v168 = vld [vmem:[%s1 + $0x58] sm:$0xf]
  %v169 = vld [vmem:[%s1 + $0x5c] sm:$0xf]
  %v170 = vld [vmem:[%s1 + $0x60] sm:$0xf]
  %v171 = vld [vmem:[%s1 + $0x64] sm:$0xf]
  %v172 = vld [vmem:[%s1 + $0x68] sm:$0xf]
  %v173 = vld [vmem:[%s1 + $0x6c] sm:$0xf]
  %v174 = vld [vmem:[%s1 + $0x70] sm:$0xf]
  %v175 = vld [vmem:[%s1 + $0x74] sm:$0xf]
  %v176 = vld [vmem:[%s1 + $0x78] sm:$0xf]
  %v177 = vld [vmem:[%s1 + $0x7c] sm:$0xf]
  %v178 = vld [vmem:[%s1 + $0x80] sm:$0xf]
  %v179 = vld [vmem:[%s1 + $0x84] sm:$0xf]
  %v180 = vld [vmem:[%s1 + $0x88] sm:$0xf]
  %v181 = vld [vmem:[%s1 + $0x8c] sm:$0xf]
  %v182 = vld [vmem:[%s1 + $0x90] sm:$0xf]
  %v183 = vld [vmem:[%s1 + $0x94] sm:$0xf]
  %v184 = vld [vmem:[%s1 + $0x98] sm:$0xf]
  %v185 = vld [vmem:[%s1 + $0x9c] sm:$0xf]
  %v186 = vld [vmem:[%s1 + $0xa0] sm:$0xf]
  %v187 = vld [vmem:[%s1 + $0xa4] sm:$0xf]
  %v188 = vld [vmem:[%s1 + $0xa8] sm:$0xf]
  %v189 = vld [vmem:[%s1 + $0xac] sm:$0xf]
  %v190 = vld [vmem:[%s1 + $0xb0] sm:$0xf]
  %v191 = vld [vmem:[%s1 + $0xb4] sm:$0xf]
  %v192 = vld [vmem:[%s1 + $0xb8] sm:$0xf]
  %v193 = vld [vmem:[%s1 + $0xbc] sm:$0xf]
  %v194 = vld [vmem:[%s1 + $0xc0] sm:$0xf]
  %v195 = vld [vmem:[%s1 + $0xc4] sm:$0xf]
  %v196 = vld [vmem:[%s1 + $0xc8] sm:$0xf]
  %v197 = vld [vmem:[%s1 + $0xcc] sm:$0xf]
  %v198 = vld [vmem:[%s1 + $0xd0] sm:$0xf]
  %v199 = vld [vmem:[%s1 + $0xd4] sm:$0xf]
  %v200 = vld [vmem:[%s1 + $0xd8] sm:$0xf]
  %v201 = vld [vmem:[%s1 + $0xdc] sm:$0xf]
  %v202 = vld [vmem:[%s1 + $0xe0] sm:$0xf]
  %v203 = vld [vmem:[%s1 + $0xe4] sm:$0xf]
  %v204 = vld [vmem:[%s1 + $0xe8] sm:$0xf]
  %v205 = vld [vmem:[%s1 + $0xec] sm:$0xf]
  %v206 = vld [vmem:[%s1 + $0xf0] sm:$0xf]
  %v207 = vld [vmem:[%s1 + $0xf4] sm:$0xf]
  %v208 = vld [vmem:[%s1 + $0xf8] sm:$0xf]
  %v209 = vld [vmem:[%s1 + $0xfc] sm:$0xf]
  %v210 = vld [vmem:[%s1 + $0x100] sm:$0xf]
  %v211 = vld [vmem:[%s1 + $0x104] sm:$0xf]
  %v212 = vld [vmem:[%s1 + $0x108] sm:$0xf]
  %v213 = vld [vmem:[%s1 + $0x10c] sm:$0xf]
  %v214 = vld [vmem:[%s1 + $0x110] sm:$0xf]
  %v215 = vld [vmem:[%s1 + $0x114] sm:$0xf]
  %v216 = vld [vmem:[%s1 + $0x118] sm:$0xf]
  %v217 = vld [vmem:[%s1 + $0x11c] sm:$0xf]
  %v218 = vld [vmem:[%s1 + $0x120] sm:$0xf]
  %v219 = vld [vmem:[%s1 + $0x124] sm:$0xf]
  %v220 = vld [vmem:[%s1 + $0x128] sm:$0xf]
  %v221 = vld [vmem:[%s1 + $0x12c] sm:$0xf]
  %v222 = vld [vmem:[%s1 + $0x130] sm:$0xf]
  %v223 = vld [vmem:[%s1 + $0x134] sm:$0xf]
  %v224 = vld [vmem:[%s1 + $0x138] sm:$0xf]
  %v225 = vld [vmem:[%s1 + $0x13c] sm:$0xf]
  %v226 = vld [vmem:[%s1 + $0x140] sm:$0xf]
  %v227 = vld [vmem:[%s1 + $0x144] sm:$0xf]
  %v228 = vld [vmem:[%s1 + $0x148] sm:$0xf]
  %v229 = vld [vmem:[%s1 + $0x14c] sm:$0xf]
  %v230 = vld [vmem:[%s1 + $0x150] sm:$0xf]
  %v231 = vld [vmem:[%s1 + $0x154] sm:$0xf]
  %v232 = vld [vmem:[%s1 + $0x158] sm:$0xf]
  %v233 = vld [vmem:[%s1 + $0x15c] sm:$0xf]
  %v234 = vld [vmem:[%s1 + $0x160] sm:$0xf]
  %v235 = vld [vmem:[%s1 + $0x164] sm:$0xf]
  %v236 = vld [vmem:[%s1 + $0x168] sm:$0xf]
  %v237 = vld [vmem:[%s1 + $0x16c] sm:$0xf]
  %v238 = vld [vmem:[%s1 + $0x170] sm:$0xf]
  %v239 = vld [vmem:[%s1 + $0x174] sm:$0xf]
  %v240 = vld [vmem:[%s1 + $0x178] sm:$0xf]
  %v241 = vld [vmem:[%s1 + $0x17c] sm:$0xf]
  %v242 = vld [vmem:[%s1 + $0x180] sm:$0xf]
  %v243 = vld [vmem:[%s1 + $0x184] sm:$0xf]
  %v244 = vld [vmem:[%s1 + $0x188] sm:$0xf]
  %v245 = vld [vmem:[%s1 + $0x18c] sm:$0xf]
  %v246 = vld [vmem:[%s1 + $0x190] sm:$0xf]
  %v247 = vld [vmem:[%s1 + $0x194] sm:$0xf]
  %v248 = vld [vmem:[%s1 + $0x198] sm:$0xf]
  %v249 = vld [vmem:[%s1 + $0x19c] sm:$0xf]
  %v250 = vld [vmem:[%s1 + $0x1a0] sm:$0xf]
  %v251 = vld [vmem:[%s1 + $0x1a4] sm:$0xf]
  %v252 = vld [vmem:[%s1 + $0x1a8] sm:$0xf]
  %v253 = vld [vmem:[%s1 + $0x1ac] sm:$0xf]
  %v254 = vld [vmem:[%s1 + $0x1b0] sm:$0xf]
  %v255 = vld [vmem:[%s1 + $0x1b4] sm:$0xf]
  %v256 = vld [vmem:[%s1 + $0x1b8] sm:$0xf]
  %v257 = vld [vmem:[%s1 + $0x1bc] sm:$0xf]
  %v258 = vld [vmem:[%s1 + $0x1c0] sm:$0xf]
  %v259 = vld [vmem:[%s1 + $0x1c4] sm:$0xf]
  %v260 = vld [vmem:[%s1 + $0x1c8] sm:$0xf]
  %v261 = vld [vmem:[%s1 + $0x1cc] sm:$0xf]
  %v262 = vld [vmem:[%s1 + $0x1d0] sm:$0xf]
  %v263 = vld [vmem:[%s1 + $0x1d4] sm:$0xf]
  %v264 = vld [vmem:[%s1 + $0x1d8] sm:$0xf]
  %v265 = vld [vmem:[%s1 + $0x1dc] sm:$0xf]
  %v266 = vld [vmem:[%s1 + $0x1e0] sm:$0xf]
  %v267 = vld [vmem:[%s1 + $0x1e4] sm:$0xf]
  %v268 = vld [vmem:[%s1 + $0x1e8] sm:$0xf]
  %v269 = vld [vmem:[%s1 + $0x1ec] sm:$0xf]
  %v270 = vld [vmem:[%s1 + $0x1f0] sm:$0xf]
  %v271 = vld [vmem:[%s1 + $0x1f4] sm:$0xf]
  %v272 = vld [vmem:[%s1 + $0x1f8] sm:$0xf]
  %v273 = vld [vmem:[%s1 + $0x1fc] sm:$0xf]
  %v274 = vld [vmem:[%s1 + $0x200] sm:$0xf]
  %v275 = vld [vmem:[%s1 + $0x204] sm:$0xf]
  %v276 = vld [vmem:[%s1 + $0x208] sm:$0xf]
  %v277 = vld [vmem:[%s1 + $0x20c] sm:$0xf]
  %v278 = vld [vmem:[%s1 + $0x210] sm:$0xf]
  %v279 = vld [vmem:[%s1 + $0x214] sm:$0xf]
  %v280 = vld [vmem:[%s1 + $0x218] sm:$0xf]
  %v281 = vld [vmem:[%s1 + $0x21c] sm:$0xf]
  %v282 = vld [vmem:[%s1 + $0x220] sm:$0xf]
  %v283 = vld [vmem:[%s1 + $0x224] sm:$0xf]
  %v284 = vld [vmem:[%s1 + $0x228] sm:$0xf]
  %v285 = vld [vmem:[%s1 + $0x22c] sm:$0xf]
  %v286 = vld [vmem:[%s1 + $0x230] sm:$0xf]
  %v287 = vld [vmem:[%s1 + $0x234] sm:$0xf]
  %v288 = vld [vmem:[%s1 + $0x238] sm:$0xf]
  %v289 = vld [vmem:[%s1 + $0x23c] sm:$0xf]
  %v290 = vld [vmem:[%s1 + $0x240] sm:$0xf]
  %v291 = vld [vmem:[%s1 + $0x244] sm:$0xf]
  %v292 = vld [vmem:[%s1 + $0x248] sm:$0xf]
  %v293 = vld [vmem:[%s1 + $0x24c] sm:$0xf]
  %v294 = vld [vmem:[%s1 + $0x250] sm:$0xf]
  %v295 = vld [vmem:[%s1 + $0x254] sm:$0xf]
  %v296 = vld [vmem:[%s1 + $0x258] sm:$0xf]
  %v297 = vld [vmem:[%s1 + $0x25c] sm:$0xf]
  %v298 = vld [vmem:[%s1 + $0x260] sm:$0xf]
  %v299 = vld [vmem:[%s1 + $0x264] sm:$0xf]
  %v300 = vld [vmem:[%s1 + $0x268] sm:$0xf]
  %v301 = vld [vmem:[%s1 + $0x26c] sm:$0xf]
  %v302 = vld [vmem:[%s1 + $0x270] sm:$0xf]
  %v303 = vld [vmem:[%s1 + $0x274] sm:$0xf]
  %v304 = vld [vmem:[%s1 + $0x278] sm:$0xf]
  %v305 = vld [vmem:[%s1 + $0x27c] sm:$0xf]
  %v306 = vld [vmem:[%s1 + $0x280] sm:$0xf]
  %v307 = vld [vmem:[%s1 + $0x284] sm:$0xf]
  %v308 = vld [vmem:[%s1 + $0x288] sm:$0xf]
  %v309 = vld [vmem:[%s1 + $0x28c] sm:$0xf]
  %v310 = vld [vmem:[%s1 + $0x290] sm:$0xf]
  %v311 = vld [vmem:[%s1 + $0x294] sm:$0xf]
  %v312 = vld [vmem:[%s1 + $0x298] sm:$0xf]
  %v313 = vld [vmem:[%s1 + $0x29c] sm:$0xf]
  %v314 = vld [vmem:[%s1 + $0x2a0] sm:$0xf]
  %v315 = vld [vmem:[%s1 + $0x2a4] sm:$0xf]
  %v316 = vld [vmem:[%s1 + $0x2a8] sm:$0xf]
  %v317 = vld [vmem:[%s1 + $0x2ac] sm:$0xf]
  %v318 = vld [vmem:[%s1 + $0x2b0] sm:$0xf]
  %v319 = vld [vmem:[%s1 + $0x2b4] sm:$0xf]
  %v320 = vld [vmem:[%s1 + $0x2b8] sm:$0xf]
  %v321 = vld [vmem:[%s1 + $0x2bc] sm:$0xf]
  %v322 = vld [vmem:[%s1 + $0x2c0] sm:$0xf]
  %v323 = vld [vmem:[%s1 + $0x2c4] sm:$0xf]
  %v324 = vld [vmem:[%s1 + $0x2c8] sm:$0xf]
  %v325 = vld [vmem:[%s1 + $0x2cc] sm:$0xf]
  %v326 = vld [vmem:[%s1 + $0x2d0] sm:$0xf]
  %v327 = vld [vmem:[%s1 + $0x2d4] sm:$0xf]
  %v328 = vld [vmem:[%s1 + $0x2d8] sm:$0xf]
  %v329 = vld [vmem:[%s1 + $0x2dc] sm:$0xf]
  %v330 = vld [vmem:[%s1 + $0x2e0] sm:$0xf]
  %v331 = vld [vmem:[%s1 + $0x2e4] sm:$0xf]
  %v332 = vld [vmem:[%s1 + $0x2e8] sm:$0xf]
  %v333 = vld [vmem:[%s1 + $0x2ec] sm:$0xf]
  %v334 = vld [vmem:[%s1 + $0x2f0] sm:$0xf]
  %v335 = vld [vmem:[%s1 + $0x2f4] sm:$0xf]
  %v336 = vld [vmem:[%s1 + $0x2f8] sm:$0xf]
  %v337 = vld [vmem:[%s1 + $0x2fc] sm:$0xf]
  %v338 = vld [vmem:[%s1 + $0x300] sm:$0xf]
  %v339 = vld [vmem:[%s1 + $0x304] sm:$0xf]
  %v340 = vld [vmem:[%s1 + $0x308] sm:$0xf]
  %v341 = vld [vmem:[%s1 + $0x30c] sm:$0xf]
  %v342 = vld [vmem:[%s1 + $0x310] sm:$0xf]
  %v343 = vld [vmem:[%s1 + $0x314] sm:$0xf]
  %v344 = vld [vmem:[%s1 + $0x318] sm:$0xf]
  %v345 = vld [vmem:[%s1 + $0x31c] sm:$0xf]
  %v346 = vld [vmem:[%s1 + $0x320] sm:$0xf]
  %v347 = vld [vmem:[%s1 + $0x324] sm:$0xf]
  %v348 = vld [vmem:[%s1 + $0x328] sm:$0xf]
  %v349 = vld [vmem:[%s1 + $0x32c] sm:$0xf]
  %v350 = vld [vmem:[%s1 + $0x330] sm:$0xf]
  %v351 = vld [vmem:[%s1 + $0x334] sm:$0xf]
  %v352 = vld [vmem:[%s1 + $0x338] sm:$0xf]
  %v353 = vld [vmem:[%s1 + $0x33c] sm:$0xf]
  %v354 = vld [vmem:[%s1 + $0x340] sm:$0xf]
  %v355 = vld [vmem:[%s1 + $0x344] sm:$0xf]
  %v356 = vld [vmem:[%s1 + $0x348] sm:$0xf]
  %v357 = vld [vmem:[%s1 + $0x34c] sm:$0xf]
  %v358 = vld [vmem:[%s1 + $0x350] sm:$0xf]
  %v359 = vld [vmem:[%s1 + $0x354] sm:$0xf]
  %v360 = vld [vmem:[%s1 + $0x358] sm:$0xf]
  %v361 = vld [vmem:[%s1 + $0x35c] sm:$0xf]
  %v362 = vld [vmem:[%s1 + $0x360] sm:$0xf]
  %v363 = vld [vmem:[%s1 + $0x364] sm:$0xf]
  %v364 = vld [vmem:[%s1 + $0x368] sm:$0xf]
  %v365 = vld [vmem:[%s1 + $0x36c] sm:$0xf]
  %v366 = vld [vmem:[%s1 + $0x370] sm:$0xf]
  %v367 = vld [vmem:[%s1 + $0x374] sm:$0xf]
  %v368 = vld [vmem:[%s1 + $0x378] sm:$0xf]
  %v369 = vld [vmem:[%s1 + $0x37c] sm:$0xf]
  %v370 = vld [vmem:[%s1 + $0x380] sm:$0xf]
  %v371 = vld [vmem:[%s1 + $0x384] sm:$0xf]
  %v372 = vld [vmem:[%s1 + $0x388] sm:$0xf]
  %v373 = vld [vmem:[%s1 + $0x38c] sm:$0xf]
  %v374 = vld [vmem:[%s1 + $0x390] sm:$0xf]
  %v375 = vld [vmem:[%s1 + $0x394] sm:$0xf]
  %v376 = vld [vmem:[%s1 + $0x398] sm:$0xf]
  %v377 = vld [vmem:[%s1 + $0x39c] sm:$0xf]
  %v378 = vld [vmem:[%s1 + $0x3a0] sm:$0xf]
  %v379 = vld [vmem:[%s1 + $0x3a4] sm:$0xf]
  %v380 = vld [vmem:[%s1 + $0x3a8] sm:$0xf]
  %v381 = vld [vmem:[%s1 + $0x3ac] sm:$0xf]
  %v382 = vld [vmem:[%s1 + $0x3b0] sm:$0xf]
  %v383 = vld [vmem:[%s1 + $0x3b4] sm:$0xf]
  %v384 = vld [vmem:[%s1 + $0x3b8] sm:$0xf]
  %v385 = vld [vmem:[%s1 + $0x3bc] sm:$0xf]
  %v386 = vld [vmem:[%s1 + $0x3c0] sm:$0xf]
  %v387 = vld [vmem:[%s1 + $0x3c4] sm:$0xf]
  %v388 = vld [vmem:[%s1 + $0x3c8] sm:$0xf]
  %v389 = vld [vmem:[%s1 + $0x3cc] sm:$0xf]
  %v390 = vld [vmem:[%s1 + $0x3d0] sm:$0xf]
  %v391 = vld [vmem:[%s1 + $0x3d4] sm:$0xf]
  %v392 = vld [vmem:[%s1 + $0x3d8] sm:$0xf]
  %v393 = vld [vmem:[%s1 + $0x3dc] sm:$0xf]
  %v394 = vld [vmem:[%s1 + $0x3e0] sm:$0xf]
  %v395 = vld [vmem:[%s1 + $0x3e4] sm:$0xf]
  %v396 = vld [vmem:[%s1 + $0x3e8] sm:$0xf]
  %v397 = vld [vmem:[%s1 + $0x3ec] sm:$0xf]
  %v398 = vld [vmem:[%s1 + $0x3f0] sm:$0xf]
  %v399 = vld [vmem:[%s1 + $0x3f4] sm:$0xf]
  %v400 = vld [vmem:[%s1 + $0x3f8] sm:$0xf]
  %v401 = vld [vmem:[%s1 + $0x3fc] sm:$0xf]
  %v402 = vld [vmem:[%s1 + $0x400] sm:$0xf]
  %v403 = vld [vmem:[%s1 + $0x404] sm:$0xf]
  %v404 = vld [vmem:[%s1 + $0x408] sm:$0xf]
  %v405 = vld [vmem:[%s1 + $0x40c] sm:$0xf]
  %v406 = vld [vmem:[%s1 + $0x410] sm:$0xf]
  %v407 = vld [vmem:[%s1 + $0x414] sm:$0xf]
  %v408 = vld [vmem:[%s1 + $0x418] sm:$0xf]
  %v409 = vld [vmem:[%s1 + $0x41c] sm:$0xf]
  %v410 = vld [vmem:[%s1 + $0x420] sm:$0xf]
  %v411 = vld [vmem:[%s1 + $0x424] sm:$0xf]
  %v412 = vld [vmem:[%s1 + $0x428] sm:$0xf]
  %v413 = vld [vmem:[%s1 + $0x42c] sm:$0xf]
  %v414 = vld [vmem:[%s1 + $0x430] sm:$0xf]
  %v415 = vld [vmem:[%s1 + $0x434] sm:$0xf]
  %v416 = vld [vmem:[%s1 + $0x438] sm:$0xf]
  %v417 = vld [vmem:[%s1 + $0x43c] sm:$0xf]
  %v418 = vld [vmem:[%s1 + $0x440] sm:$0xf]
  %v419 = vld [vmem:[%s1 + $0x444] sm:$0xf]
  %v420 = vld [vmem:[%s1 + $0x448] sm:$0xf]
  %v421 = vld [vmem:[%s1 + $0x44c] sm:$0xf]
  %v422 = vld [vmem:[%s1 + $0x450] sm:$0xf]
  %v423 = vld [vmem:[%s1 + $0x454] sm:$0xf]
  %v424 = vld [vmem:[%s1 + $0x458] sm:$0xf]
  %v425 = vld [vmem:[%s1 + $0x45c] sm:$0xf]
  %v426 = vld [vmem:[%s1 + $0x460] sm:$0xf]
  %v427 = vld [vmem:[%s1 + $0x464] sm:$0xf]
  %v428 = vld [vmem:[%s1 + $0x468] sm:$0xf]
  %v429 = vld [vmem:[%s1 + $0x46c] sm:$0xf]
  %v430 = vld [vmem:[%s1 + $0x470] sm:$0xf]
  %v431 = vld [vmem:[%s1 + $0x474] sm:$0xf]
  %v432 = vld [vmem:[%s1 + $0x478] sm:$0xf]
  %v433 = vld [vmem:[%s1 + $0x47c] sm:$0xf]
  %v434 = vld [vmem:[%s1 + $0x480] sm:$0xf]
  %v435 = vld [vmem:[%s1 + $0x484] sm:$0xf]
  %v436 = vld [vmem:[%s1 + $0x488] sm:$0xf]
  %v437 = vld [vmem:[%s1 + $0x48c] sm:$0xf]
  %v438 = vld [vmem:[%s1 + $0x490] sm:$0xf]
  %v439 = vld [vmem:[%s1 + $0x494] sm:$0xf]
  %v440 = vld [vmem:[%s1 + $0x498] sm:$0xf]
  %v441 = vld [vmem:[%s1 + $0x49c] sm:$0xf]
  %v442 = vld [vmem:[%s1 + $0x4a0] sm:$0xf]
  %v443 = vld [vmem:[%s1 + $0x4a4] sm:$0xf]
  %v444 = vld [vmem:[%s1 + $0x4a8] sm:$0xf]
  %v445 = vld [vmem:[%s1 + $0x4ac] sm:$0xf]
  %v446 = vld [vmem:[%s1 + $0x4b0] sm:$0xf]
  %v447 = vld [vmem:[%s1 + $0x4b4] sm:$0xf]
  %v448 = vld [vmem:[%s1 + $0x4b8] sm:$0xf]
  %v449 = vld [vmem:[%s1 + $0x4bc] sm:$0xf]
  %v450 = vld [vmem:[%s1 + $0x4c0] sm:$0xf]
  %v451 = vld [vmem:[%s1 + $0x4c4] sm:$0xf]
  %v452 = vld [vmem:[%s1 + $0x4c8] sm:$0xf]
  %v453 = vld [vmem:[%s1 + $0x4cc] sm:$0xf]
  %v454 = vld [vmem:[%s1 + $0x4d0] sm:$0xf]
  %v455 = vld [vmem:[%s1 + $0x4d4] sm:$0xf]
  %v456 = vld [vmem:[%s1 + $0x4d8] sm:$0xf]
  %v457 = vld [vmem:[%s1 + $0x4dc] sm:$0xf]
  %v458 = vld [vmem:[%s1 + $0x4e0] sm:$0xf]
  %v459 = vld [vmem:[%s1 + $0x4e4] sm:$0xf]
  %v460 = vld [vmem:[%s1 + $0x4e8] sm:$0xf]
  %v461 = vld [vmem:[%s1 + $0x4ec] sm:$0xf]
  %v462 = vld [vmem:[%s1 + $0x4f0] sm:$0xf]
  %v463 = vld [vmem:[%s1 + $0x4f4] sm:$0xf]
  %v464 = vld [vmem:[%s1 + $0x4f8] sm:$0xf]
  %v465 = vld [vmem:[%s1 + $0x4fc] sm:$0xf]
  %v466 = vld [vmem:[%s1 + $0x500] sm:$0xf]
  %v467 = vld [vmem:[%s1 + $0x504] sm:$0xf]
  %v468 = vld [vmem:[%s1 + $0x508] sm:$0xf]
  %v469 = vld [vmem:[%s1 + $0x50c] sm:$0xf]
  %v470 = vld [vmem:[%s1 + $0x510] sm:$0xf]
  %v471 = vld [vmem:[%s1 + $0x514] sm:$0xf]
  %v472 = vld [vmem:[%s1 + $0x518] sm:$0xf]
  %v473 = vld [vmem:[%s1 + $0x51c] sm:$0xf]
  %v474 = vld [vmem:[%s1 + $0x520] sm:$0xf]
  %v475 = vld [vmem:[%s1 + $0x524] sm:$0xf]
  %v476 = vld [vmem:[%s1 + $0x528] sm:$0xf]
  %v477 = vld [vmem:[%s1 + $0x52c] sm:$0xf]
  %v478 = vld [vmem:[%s1 + $0x530] sm:$0xf]
  %v479 = vld [vmem:[%s1 + $0x534] sm:$0xf]
  %v480 = vld [vmem:[%s1 + $0x538] sm:$0xf]
  %v481 = vld [vmem:[%s1 + $0x53c] sm:$0xf]
  %v482 = vld [vmem:[%s1 + $0x540] sm:$0xf]
  %v483 = vld [vmem:[%s1 + $0x544] sm:$0xf]
  %v484 = vld [vmem:[%s1 + $0x548] sm:$0xf]
  %v485 = vld [vmem:[%s1 + $0x54c] sm:$0xf]
  %v486 = vld [vmem:[%s1 + $0x550] sm:$0xf]
  %v487 = vld [vmem:[%s1 + $0x554] sm:$0xf]
  %v488 = vld [vmem:[%s1 + $0x558] sm:$0xf]
  %v489 = vld [vmem:[%s1 + $0x55c] sm:$0xf]
  %v490 = vld [vmem:[%s1 + $0x560] sm:$0xf]
  %v491 = vld [vmem:[%s1 + $0x564] sm:$0xf]
  %v492 = vld [vmem:[%s1 + $0x568] sm:$0xf]
  %v493 = vld [vmem:[%s1 + $0x56c] sm:$0xf]
  %v494 = vld [vmem:[%s1 + $0x570] sm:$0xf]
  %v495 = vld [vmem:[%s1 + $0x574] sm:$0xf]
  %v496 = vld [vmem:[%s1 + $0x578] sm:$0xf]
  %v497 = vld [vmem:[%s1 + $0x57c] sm:$0xf]
  %v498 = vld [vmem:[%s1 + $0x580] sm:$0xf]
  %v499 = vld [vmem:[%s1 + $0x584] sm:$0xf]
  %v500 = vld [vmem:[%s1 + $0x588] sm:$0xf]
  %v501 = vld [vmem:[%s1 + $0x58c] sm:$0xf]
  %v502 = vld [vmem:[%s1 + $0x590] sm:$0xf]
  %v503 = vld [vmem:[%s1 + $0x594] sm:$0xf]
  %v504 = vld [vmem:[%s1 + $0x598] sm:$0xf]
  %v505 = vld [vmem:[%s1 + $0x59c] sm:$0xf]
  %v506 = vld [vmem:[%s1 + $0x5a0] sm:$0xf]
  %v507 = vld [vmem:[%s1 + $0x5a4] sm:$0xf]
  %v508 = vld [vmem:[%s1 + $0x5a8] sm:$0xf]
  %v509 = vld [vmem:[%s1 + $0x5ac] sm:$0xf]
  %v510 = vld [vmem:[%s1 + $0x5b0] sm:$0xf]
  %v511 = vld [vmem:[%s1 + $0x5b4] sm:$0xf]
  %v512 = vld [vmem:[%s1 + $0x5b8] sm:$0xf]
  %v513 = vld [vmem:[%s1 + $0x5bc] sm:$0xf]
  %v514 = vld [vmem:[%s1 + $0x5c0] sm:$0xf]
  %v515 = vld [vmem:[%s1 + $0x5c4] sm:$0xf]
  %v516 = vld [vmem:[%s1 + $0x5c8] sm:$0xf]
  %v517 = vld [vmem:[%s1 + $0x5cc] sm:$0xf]
  %v518 = vld [vmem:[%s1 + $0x5d0] sm:$0xf]
  %v519 = vld [vmem:[%s1 + $0x5d4] sm:$0xf]
  %v520 = vld [vmem:[%s1 + $0x5d8] sm:$0xf]
  %v521 = vld [vmem:[%s1 + $0x5dc] sm:$0xf]
  %v522 = vld [vmem:[%s1 + $0x5e0] sm:$0xf]
  %v523 = vld [vmem:[%s1 + $0x5e4] sm:$0xf]
  %v524 = vld [vmem:[%s1 + $0x5e8] sm:$0xf]
  %v525 = vld [vmem:[%s1 + $0x5ec] sm:$0xf]
  %v526 = vld [vmem:[%s1 + $0x5f0] sm:$0xf]
  %v527 = vld [vmem:[%s1 + $0x5f4] sm:$0xf]
  %v528 = vld [vmem:[%s1 + $0x5f8] sm:$0xf]
  %v529 = vld [vmem:[%s1 + $0x5fc] sm:$0xf]
  %v530 = vld [vmem:[%s1 + $0x600] sm:$0xf]
  %v531 = vld [vmem:[%s1 + $0x604] sm:$0xf]
  %v532 = vld [vmem:[%s1 + $0x608] sm:$0xf]
  %v533 = vld [vmem:[%s1 + $0x60c] sm:$0xf]
  %v534 = vld [vmem:[%s1 + $0x610] sm:$0xf]
  %v535 = vld [vmem:[%s1 + $0x614] sm:$0xf]
  %v536 = vld [vmem:[%s1 + $0x618] sm:$0xf]
  %v537 = vld [vmem:[%s1 + $0x61c] sm:$0xf]
  %v538 = vld [vmem:[%s1 + $0x620] sm:$0xf]
  %v539 = vld [vmem:[%s1 + $0x624] sm:$0xf]
  %v540 = vld [vmem:[%s1 + $0x628] sm:$0xf]
  %v541 = vld [vmem:[%s1 + $0x62c] sm:$0xf]
  %v542 = vld [vmem:[%s1 + $0x630] sm:$0xf]
  %v543 = vld [vmem:[%s1 + $0x634] sm:$0xf]
  %v544 = vld [vmem:[%s1 + $0x638] sm:$0xf]
  %v545 = vld [vmem:[%s1 + $0x63c] sm:$0xf]
  %v546 = vld [vmem:[%s1 + $0x640] sm:$0xf]
  %v547 = vld [vmem:[%s1 + $0x644] sm:$0xf]
  %v548 = vld [vmem:[%s1 + $0x648] sm:$0xf]
  %v549 = vld [vmem:[%s1 + $0x64c] sm:$0xf]
  %v550 = vld [vmem:[%s1 + $0x650] sm:$0xf]
  %v551 = vld [vmem:[%s1 + $0x654] sm:$0xf]
  %v552 = vld [vmem:[%s1 + $0x658] sm:$0xf]
  %v553 = vld [vmem:[%s1 + $0x65c] sm:$0xf]
  %v554 = vld [vmem:[%s1 + $0x660] sm:$0xf]
  %v555 = vld [vmem:[%s1 + $0x664] sm:$0xf]
  %v556 = vld [vmem:[%s1 + $0x668] sm:$0xf]
  %v557 = vld [vmem:[%s1 + $0x66c] sm:$0xf]
  %v558 = vld [vmem:[%s1 + $0x670] sm:$0xf]
  %v559 = vld [vmem:[%s1 + $0x674] sm:$0xf]
  %v560 = vld [vmem:[%s1 + $0x678] sm:$0xf]
  %v561 = vld [vmem:[%s1 + $0x67c] sm:$0xf]
  %v562 = vld [vmem:[%s1 + $0x680] sm:$0xf]
  %v563 = vld [vmem:[%s1 + $0x684] sm:$0xf]
  %v564 = vld [vmem:[%s1 + $0x688] sm:$0xf]
  %v565 = vld [vmem:[%s1 + $0x68c] sm:$0xf]
  %v566 = vld [vmem:[%s1 + $0x690] sm:$0xf]
  %v567 = vld [vmem:[%s1 + $0x694] sm:$0xf]
  %v568 = vld [vmem:[%s1 + $0x698] sm:$0xf]
  %v569 = vld [vmem:[%s1 + $0x69c] sm:$0xf]
  %v570 = vld [vmem:[%s1 + $0x6a0] sm:$0xf]
  %v571 = vld [vmem:[%s1 + $0x6a4] sm:$0xf]
  %v572 = vld [vmem:[%s1 + $0x6a8] sm:$0xf]
  %v573 = vld [vmem:[%s1 + $0x6ac] sm:$0xf]
  %v574 = vld [vmem:[%s1 + $0x6b0] sm:$0xf]
  %v575 = vld [vmem:[%s1 + $0x6b4] sm:$0xf]
  %v576 = vld [vmem:[%s1 + $0x6b8] sm:$0xf]
  %v577 = vld [vmem:[%s1 + $0x6bc] sm:$0xf]
  %v578 = vld [vmem:[%s1 + $0x6c0] sm:$0xf]
  %v579 = vld [vmem:[%s1 + $0x6c4] sm:$0xf]
  %v580 = vld [vmem:[%s1 + $0x6c8] sm:$0xf]
  %v581 = vld [vmem:[%s1 + $0x6cc] sm:$0xf]
  %v582 = vld [vmem:[%s1 + $0x6d0] sm:$0xf]
  %v583 = vld [vmem:[%s1 + $0x6d4] sm:$0xf]
  %v584 = vld [vmem:[%s1 + $0x6d8] sm:$0xf]
  %v585 = vld [vmem:[%s1 + $0x6dc] sm:$0xf]
  %v586 = vld [vmem:[%s1 + $0x6e0] sm:$0xf]
  %v587 = vld [vmem:[%s1 + $0x6e4] sm:$0xf]
  %v588 = vld [vmem:[%s1 + $0x6e8] sm:$0xf]
  %v589 = vld [vmem:[%s1 + $0x6ec] sm:$0xf]
  %v590 = vld [vmem:[%s1 + $0x6f0] sm:$0xf]
  %v591 = vld [vmem:[%s1 + $0x6f4] sm:$0xf]
  %v592 = vld [vmem:[%s1 + $0x6f8] sm:$0xf]
  %v593 = vld [vmem:[%s1 + $0x6fc] sm:$0xf]
  %v594 = vld [vmem:[%s1 + $0x700] sm:$0xf]
  %v595 = vld [vmem:[%s1 + $0x704] sm:$0xf]
  %v596 = vld [vmem:[%s1 + $0x708] sm:$0xf]
  %v597 = vld [vmem:[%s1 + $0x70c] sm:$0xf]
  %v598 = vld [vmem:[%s1 + $0x710] sm:$0xf]
  %v599 = vld [vmem:[%s1 + $0x714] sm:$0xf]
  %v600 = vld [vmem:[%s1 + $0x718] sm:$0xf]
  %v601 = vld [vmem:[%s1 + $0x71c] sm:$0xf]
  %v602 = vld [vmem:[%s1 + $0x720] sm:$0xf]
  %v603 = vld [vmem:[%s1 + $0x724] sm:$0xf]
  %v604 = vld [vmem:[%s1 + $0x728] sm:$0xf]
  %v605 = vld [vmem:[%s1 + $0x72c] sm:$0xf]
  %v606 = vld [vmem:[%s1 + $0x730] sm:$0xf]
  %v607 = vld [vmem:[%s1 + $0x734] sm:$0xf]
  %v608 = vld [vmem:[%s1 + $0x738] sm:$0xf]
  %v609 = vld [vmem:[%s1 + $0x73c] sm:$0xf]
  %v610 = vld [vmem:[%s1 + $0x740] sm:$0xf]
  %v611 = vld [vmem:[%s1 + $0x744] sm:$0xf]
  %v612 = vld [vmem:[%s1 + $0x748] sm:$0xf]
  %v613 = vld [vmem:[%s1 + $0x74c] sm:$0xf]
  %v614 = vld [vmem:[%s1 + $0x750] sm:$0xf]
  %v615 = vld [vmem:[%s1 + $0x754] sm:$0xf]
  %v616 = vld [vmem:[%s1 + $0x758] sm:$0xf]
  %v617 = vld [vmem:[%s1 + $0x75c] sm:$0xf]
  %v618 = vld [vmem:[%s1 + $0x760] sm:$0xf]
  %v619 = vld [vmem:[%s1 + $0x764] sm:$0xf]
  %v620 = vld [vmem:[%s1 + $0x768] sm:$0xf]
  %v621 = vld [vmem:[%s1 + $0x76c] sm:$0xf]
  %v622 = vld [vmem:[%s1 + $0x770] sm:$0xf]
  %v623 = vld [vmem:[%s1 + $0x774] sm:$0xf]
  %v624 = vld [vmem:[%s1 + $0x778] sm:$0xf]
  %v625 = vld [vmem:[%s1 + $0x77c] sm:$0xf]
  %v626 = vld [vmem:[%s1 + $0x780] sm:$0xf]
  %v627 = vld [vmem:[%s1 + $0x784] sm:$0xf]
  %v628 = vld [vmem:[%s1 + $0x788] sm:$0xf]
  %v629 = vld [vmem:[%s1 + $0x78c] sm:$0xf]
  %v630 = vld [vmem:[%s1 + $0x790] sm:$0xf]
  %v631 = vld [vmem:[%s1 + $0x794] sm:$0xf]
  %v632 = vld [vmem:[%s1 + $0x798] sm:$0xf]
  %v633 = vld [vmem:[%s1 + $0x79c] sm:$0xf]
  %v634 = vld [vmem:[%s1 + $0x7a0] sm:$0xf]
  %v635 = vld [vmem:[%s1 + $0x7a4] sm:$0xf]
  %v636 = vld [vmem:[%s1 + $0x7a8] sm:$0xf]
  %v637 = vld [vmem:[%s1 + $0x7ac] sm:$0xf]
  %v638 = vld [vmem:[%s1 + $0x7b0] sm:$0xf]
  %v639 = vld [vmem:[%s1 + $0x7b4] sm:$0xf]
  %v640 = vld [vmem:[%s1 + $0x7b8] sm:$0xf]
  %v641 = vld [vmem:[%s1 + $0x7bc] sm:$0xf]
  %v642 = vld [vmem:[%s1 + $0x7c0] sm:$0xf]
  %v643 = vld [vmem:[%s1 + $0x7c4] sm:$0xf]
  %v644 = vld [vmem:[%s1 + $0x7c8] sm:$0xf]
  %v645 = vld [vmem:[%s1 + $0x7cc] sm:$0xf]
  %v646 = vld [vmem:[%s1 + $0x7d0] sm:$0xf]
  %v647 = vld [vmem:[%s1 + $0x7d4] sm:$0xf]
  %v648 = vld [vmem:[%s1 + $0x7d8] sm:$0xf]
  %v649 = vld [vmem:[%s1 + $0x7dc] sm:$0xf]
  %v650 = vld [vmem:[%s1 + $0x7e0] sm:$0xf]
  %v651 = vld [vmem:[%s1 + $0x7e4] sm:$0xf]
  %v652 = vld [vmem:[%s1 + $0x7e8] sm:$0xf]
  %v653 = vld [vmem:[%s1 + $0x7ec] sm:$0xf]
  %v654 = vld [vmem:[%s1 + $0x7f0] sm:$0xf]
  %v655 = vld [vmem:[%s1 + $0x7f4] sm:$0xf]
  %v656 = vld [vmem:[%s1 + $0x7f8] sm:$0xf]
  %v657 = vld [vmem:[%s1 + $0x7fc] sm:$0xf]
  %v658 = vld [vmem:[%s1 + $0x800] sm:$0xf]
  %v659 = vld [vmem:[%s1 + $0x804] sm:$0xf]
  %v660 = vld [vmem:[%s1 + $0x808] sm:$0xf]
  %v661 = vld [vmem:[%s1 + $0x80c] sm:$0xf]
  %v662 = vld [vmem:[%s1 + $0x810] sm:$0xf]
  %v663 = vld [vmem:[%s1 + $0x814] sm:$0xf]
  %v664 = vld [vmem:[%s1 + $0x818] sm:$0xf]
  %v665 = vld [vmem:[%s1 + $0x81c] sm:$0xf]
  %v666 = vld [vmem:[%s1 + $0x820] sm:$0xf]
  %v667 = vld [vmem:[%s1 + $0x824] sm:$0xf]
  %v668 = vld [vmem:[%s1 + $0x828] sm:$0xf]
  %v669 = vld [vmem:[%s1 + $0x82c] sm:$0xf]
  %v670 = vld [vmem:[%s1 + $0x830] sm:$0xf]
  %v671 = vld [vmem:[%s1 + $0x834] sm:$0xf]
  %v672 = vld [vmem:[%s1 + $0x838] sm:$0xf]
  %v673 = vld [vmem:[%s1 + $0x83c] sm:$0xf]
  %v674 = vld [vmem:[%s1 + $0x840] sm:$0xf]
  %v675 = vld [vmem:[%s1 + $0x844] sm:$0xf]
  %v676 = vld [vmem:[%s1 + $0x848] sm:$0xf]
  %v677 = vld [vmem:[%s1 + $0x84c] sm:$0xf]
  %v678 = vld [vmem:[%s1 + $0x850] sm:$0xf]
  %v679 = vld [vmem:[%s1 + $0x854] sm:$0xf]
  %v680 = vld [vmem:[%s1 + $0x858] sm:$0xf]
  %v681 = vld [vmem:[%s1 + $0x85c] sm:$0xf]
  %v682 = vld [vmem:[%s1 + $0x860] sm:$0xf]
  %v683 = vld [vmem:[%s1 + $0x864] sm:$0xf]
  %v684 = vld [vmem:[%s1 + $0x868] sm:$0xf]
  %v685 = vld [vmem:[%s1 + $0x86c] sm:$0xf]
  %v686 = vld [vmem:[%s1 + $0x870] sm:$0xf]
  %v687 = vld [vmem:[%s1 + $0x874] sm:$0xf]
  %v688 = vld [vmem:[%s1 + $0x878] sm:$0xf]
  %v689 = vld [vmem:[%s1 + $0x87c] sm:$0xf]
  %v690 = vld [vmem:[%s1 + $0x880] sm:$0xf]
  %v691 = vld [vmem:[%s1 + $0x884] sm:$0xf]
  %v692 = vld [vmem:[%s1 + $0x888] sm:$0xf]
  %v693 = vld [vmem:[%s1 + $0x88c] sm:$0xf]
  %v694 = vld [vmem:[%s1 + $0x890] sm:$0xf]
  %v695 = vld [vmem:[%s1 + $0x894] sm:$0xf]
  %v696 = vld [vmem:[%s1 + $0x898] sm:$0xf]
  %v697 = vld [vmem:[%s1 + $0x89c] sm:$0xf]
  %v698 = vld [vmem:[%s1 + $0x8a0] sm:$0xf]
  %v699 = vld [vmem:[%s1 + $0x8a4] sm:$0xf]
  %v700 = vld [vmem:[%s1 + $0x8a8] sm:$0xf]
  %v701 = vld [vmem:[%s1 + $0x8ac] sm:$0xf]
  %v702 = vld [vmem:[%s1 + $0x8b0] sm:$0xf]
  %v703 = vld [vmem:[%s1 + $0x8b4] sm:$0xf]
  %v704 = vld [vmem:[%s1 + $0x8b8] sm:$0xf]
  %v705 = vld [vmem:[%s1 + $0x8bc] sm:$0xf]
  %v706 = vld [vmem:[%s1 + $0x8c0] sm:$0xf]
  %v707 = vld [vmem:[%s1 + $0x8c4] sm:$0xf]
  %v708 = vld [vmem:[%s1 + $0x8c8] sm:$0xf]
  %v709 = vld [vmem:[%s1 + $0x8cc] sm:$0xf]
  %v710 = vld [vmem:[%s1 + $0x8d0] sm:$0xf]
  %v711 = vld [vmem:[%s1 + $0x8d4] sm:$0xf]
  %v712 = vld [vmem:[%s1 + $0x8d8] sm:$0xf]
  %v713 = vld [vmem:[%s1 + $0x8dc] sm:$0xf]
  %v714 = vld [vmem:[%s1 + $0x8e0] sm:$0xf]
  %v715 = vld [vmem:[%s1 + $0x8e4] sm:$0xf]
  %v716 = vld [vmem:[%s1 + $0x8e8] sm:$0xf]
  %v717 = vld [vmem:[%s1 + $0x8ec] sm:$0xf]
  %v718 = vld [vmem:[%s1 + $0x8f0] sm:$0xf]
  %v719 = vld [vmem:[%s1 + $0x8f4] sm:$0xf]
  %v720 = vld [vmem:[%s1 + $0x8f8] sm:$0xf]
  %v721 = vld [vmem:[%s1 + $0x8fc] sm:$0xf]
  %v722 = vld [vmem:[%s1 + $0x900] sm:$0xf]
  %v723 = vld [vmem:[%s1 + $0x904] sm:$0xf]
  %v724 = vld [vmem:[%s1 + $0x908] sm:$0xf]
  %v725 = vld [vmem:[%s1 + $0x90c] sm:$0xf]
  %v726 = vld [vmem:[%s1 + $0x910] sm:$0xf]
  %v727 = vld [vmem:[%s1 + $0x914] sm:$0xf]
  %v728 = vld [vmem:[%s1 + $0x918] sm:$0xf]
  %v729 = vld [vmem:[%s1 + $0x91c] sm:$0xf]
  %v730 = vld [vmem:[%s1 + $0x920] sm:$0xf]
  %v731 = vld [vmem:[%s1 + $0x924] sm:$0xf]
  %v732 = vld [vmem:[%s1 + $0x928] sm:$0xf]
  %v733 = vld [vmem:[%s1 + $0x92c] sm:$0xf]
  %v734 = vld [vmem:[%s1 + $0x930] sm:$0xf]
  %v735 = vld [vmem:[%s1 + $0x934] sm:$0xf]
  %v736 = vld [vmem:[%s1 + $0x938] sm:$0xf]
  %v737 = vld [vmem:[%s1 + $0x93c] sm:$0xf]
  %v738 = vld [vmem:[%s1 + $0x940] sm:$0xf]
  %v739 = vld [vmem:[%s1 + $0x944] sm:$0xf]
  %v740 = vld [vmem:[%s1 + $0x948] sm:$0xf]
  %v741 = vld [vmem:[%s1 + $0x94c] sm:$0xf]
  %v742 = vld [vmem:[%s1 + $0x950] sm:$0xf]
  %v743 = vld [vmem:[%s1 + $0x954] sm:$0xf]
  %v744 = vld [vmem:[%s1 + $0x958] sm:$0xf]
  %v745 = vld [vmem:[%s1 + $0x95c] sm:$0xf]
  %v746 = vld [vmem:[%s1 + $0x960] sm:$0xf]
  %v747 = vld [vmem:[%s1 + $0x964] sm:$0xf]
  %v748 = vld [vmem:[%s1 + $0x968] sm:$0xf]
  %v749 = vld [vmem:[%s1 + $0x96c] sm:$0xf]
  %v750 = vld [vmem:[%s1 + $0x970] sm:$0xf]
  %v751 = vld [vmem:[%s1 + $0x974] sm:$0xf]
  %v752 = vld [vmem:[%s1 + $0x978] sm:$0xf]
  %v753 = vld [vmem:[%s1 + $0x97c] sm:$0xf]
  %v754 = vld [vmem:[%s1 + $0x980] sm:$0xf]
  %v755 = vld [vmem:[%s1 + $0x984] sm:$0xf]
  %v756 = vld [vmem:[%s1 + $0x988] sm:$0xf]
  %v757 = vld [vmem:[%s1 + $0x98c] sm:$0xf]
  %v758 = vld [vmem:[%s1 + $0x990] sm:$0xf]
  %v759 = vld [vmem:[%s1 + $0x994] sm:$0xf]
  %v760 = vld [vmem:[%s1 + $0x998] sm:$0xf]
  %v761 = vld [vmem:[%s1 + $0x99c] sm:$0xf]
  %v762 = vld [vmem:[%s1 + $0x9a0] sm:$0xf]
  %v763 = vld [vmem:[%s1 + $0x9a4] sm:$0xf]
  %v764 = vld [vmem:[%s1 + $0x9a8] sm:$0xf]
  %v765 = vld [vmem:[%s1 + $0x9ac] sm:$0xf]
  %v766 = vld [vmem:[%s1 + $0x9b0] sm:$0xf]
  %v767 = vld [vmem:[%s1 + $0x9b4] sm:$0xf]
  %v768 = vld [vmem:[%s1 + $0x9b8] sm:$0xf]
  %v769 = vld [vmem:[%s1 + $0x9bc] sm:$0xf]
  %v770 = vld [vmem:[%s1 + $0x9c0] sm:$0xf]
  %v771 = vld [vmem:[%s1 + $0x9c4] sm:$0xf]
  %v772 = vld [vmem:[%s1 + $0x9c8] sm:$0xf]
  %v773 = vld [vmem:[%s1 + $0x9cc] sm:$0xf]
  %v774 = vld [vmem:[%s1 + $0x9d0] sm:$0xf]
  %v775 = vld [vmem:[%s1 + $0x9d4] sm:$0xf]
  %v776 = vld [vmem:[%s1 + $0x9d8] sm:$0xf]
  %v777 = vld [vmem:[%s1 + $0x9dc] sm:$0xf]
  %v778 = vld [vmem:[%s1 + $0x9e0] sm:$0xf]
  %v779 = vld [vmem:[%s1 + $0x9e4] sm:$0xf]
  %v780 = vld [vmem:[%s1 + $0x9e8] sm:$0xf]
  %v781 = vld [vmem:[%s1 + $0x9ec] sm:$0xf]
  %v782 = vld [vmem:[%s1 + $0x9f0] sm:$0xf]
  %v783 = vld [vmem:[%s1 + $0x9f4] sm:$0xf]
  %v784 = vld [vmem:[%s1 + $0x9f8] sm:$0xf]
  %v785 = vld [vmem:[%s1 + $0x9fc] sm:$0xf]
  %v786 = vld [vmem:[%s1 + $0xa00] sm:$0xf]
  %v787 = vld [vmem:[%s1 + $0xa04] sm:$0xf]
  %v788 = vld [vmem:[%s1 + $0xa08] sm:$0xf]
  %v789 = vld [vmem:[%s1 + $0xa0c] sm:$0xf]
  %v790 = vld [vmem:[%s1 + $0xa10] sm:$0xf]
  %v791 = vld [vmem:[%s1 + $0xa14] sm:$0xf]
  %v792 = vld [vmem:[%s1 + $0xa18] sm:$0xf]
  %v793 = vld [vmem:[%s1 + $0xa1c] sm:$0xf]
  %v794 = vld [vmem:[%s1 + $0xa20] sm:$0xf]
  %v795 = vld [vmem:[%s1 + $0xa24] sm:$0xf]
  %v796 = vld [vmem:[%s1 + $0xa28] sm:$0xf]
  %v797 = vld [vmem:[%s1 + $0xa2c] sm:$0xf]
  %v798 = vld [vmem:[%s1 + $0xa30] sm:$0xf]
  %v799 = vld [vmem:[%s1 + $0xa34] sm:$0xf]
  %v800 = vld [vmem:[%s1 + $0xa38] sm:$0xf]
  %v801 = vld [vmem:[%s1 + $0xa3c] sm:$0xf]
  %v802 = vld [vmem:[%s1 + $0xa40] sm:$0xf]
  %v803 = vld [vmem:[%s1 + $0xa44] sm:$0xf]
  %v804 = vld [vmem:[%s1 + $0xa48] sm:$0xf]
  %v805 = vld [vmem:[%s1 + $0xa4c] sm:$0xf]
  %v806 = vld [vmem:[%s1 + $0xa50] sm:$0xf]
  %v807 = vld [vmem:[%s1 + $0xa54] sm:$0xf]
  %v808 = vld [vmem:[%s1 + $0xa58] sm:$0xf]
  %v809 = vld [vmem:[%s1 + $0xa5c] sm:$0xf]
  %v810 = vld [vmem:[%s1 + $0xa60] sm:$0xf]
  %v811 = vld [vmem:[%s1 + $0xa64] sm:$0xf]
  %v812 = vld [vmem:[%s1 + $0xa68] sm:$0xf]
  %v813 = vld [vmem:[%s1 + $0xa6c] sm:$0xf]
  %v814 = vld [vmem:[%s1 + $0xa70] sm:$0xf]
  %v815 = vld [vmem:[%s1 + $0xa74] sm:$0xf]
  %v816 = vld [vmem:[%s1 + $0xa78] sm:$0xf]
  %v817 = vld [vmem:[%s1 + $0xa7c] sm:$0xf]
  %v818 = vld [vmem:[%s1 + $0xa80] sm:$0xf]
  %v819 = vld [vmem:[%s1 + $0xa84] sm:$0xf]
  %v820 = vld [vmem:[%s1 + $0xa88] sm:$0xf]
  %v821 = vld [vmem:[%s1 + $0xa8c] sm:$0xf]
  %v822 = vld [vmem:[%s1 + $0xa90] sm:$0xf]
  %v823 = vld [vmem:[%s1 + $0xa94] sm:$0xf]
  %v824 = vld [vmem:[%s1 + $0xa98] sm:$0xf]
  %v825 = vld [vmem:[%s1 + $0xa9c] sm:$0xf]
  %v826 = vld [vmem:[%s1 + $0xaa0] sm:$0xf]
  %v827 = vld [vmem:[%s1 + $0xaa4] sm:$0xf]
  %v828 = vld [vmem:[%s1 + $0xaa8] sm:$0xf]
  %v829 = vld [vmem:[%s1 + $0xaac] sm:$0xf]
  %v830 = vld [vmem:[%s1 + $0xab0] sm:$0xf]
  %v831 = vld [vmem:[%s1 + $0xab4] sm:$0xf]
  %v832 = vld [vmem:[%s1 + $0xab8] sm:$0xf]
  %v833 = vld [vmem:[%s1 + $0xabc] sm:$0xf]
  %v834 = vld [vmem:[%s1 + $0xac0] sm:$0xf]
  %v835 = vld [vmem:[%s1 + $0xac4] sm:$0xf]
  %v836 = vld [vmem:[%s1 + $0xac8] sm:$0xf]
  %v837 = vld [vmem:[%s1 + $0xacc] sm:$0xf]
  %v838 = vld [vmem:[%s1 + $0xad0] sm:$0xf]
  %v839 = vld [vmem:[%s1 + $0xad4] sm:$0xf]
  %v840 = vld [vmem:[%s1 + $0xad8] sm:$0xf]
  %v841 = vld [vmem:[%s1 + $0xadc] sm:$0xf]
  %v842 = vld [vmem:[%s1 + $0xae0] sm:$0xf]
  %v843 = vld [vmem:[%s1 + $0xae4] sm:$0xf]
  %v844 = vld [vmem:[%s1 + $0xae8] sm:$0xf]
  %v845 = vld [vmem:[%s1 + $0xaec] sm:$0xf]
  %v846 = vld [vmem:[%s1 + $0xaf0] sm:$0xf]
  %v847 = vld [vmem:[%s1 + $0xaf4] sm:$0xf]
  %v848 = vld [vmem:[%s1 + $0xaf8] sm:$0xf]
  %v849 = vld [vmem:[%s1 + $0xafc] sm:$0xf]
  %v850 = vld [vmem:[%s1 + $0xb00] sm:$0xf]
  %v851 = vld [vmem:[%s1 + $0xb04] sm:$0xf]
  %v852 = vld [vmem:[%s1 + $0xb08] sm:$0xf]
  %v853 = vld [vmem:[%s1 + $0xb0c] sm:$0xf]
  %v854 = vld [vmem:[%s1 + $0xb10] sm:$0xf]
  %v855 = vld [vmem:[%s1 + $0xb14] sm:$0xf]
  %v856 = vld [vmem:[%s1 + $0xb18] sm:$0xf]
  %v857 = vld [vmem:[%s1 + $0xb1c] sm:$0xf]
  %v858 = vld [vmem:[%s1 + $0xb20] sm:$0xf]
  %v859 = vld [vmem:[%s1 + $0xb24] sm:$0xf]
  %v860 = vld [vmem:[%s1 + $0xb28] sm:$0xf]
  %v861 = vld [vmem:[%s1 + $0xb2c] sm:$0xf]
  %v862 = vld [vmem:[%s1 + $0xb30] sm:$0xf]
  %v863 = vld [vmem:[%s1 + $0xb34] sm:$0xf]
  %v864 = vld [vmem:[%s1 + $0xb38] sm:$0xf]
  %v865 = vld [vmem:[%s1 + $0xb3c] sm:$0xf]
  %v866 = vld [vmem:[%s1 + $0xb40] sm:$0xf]
  %v867 = vld [vmem:[%s1 + $0xb44] sm:$0xf]
  %v868 = vld [vmem:[%s1 + $0xb48] sm:$0xf]
  %v869 = vld [vmem:[%s1 + $0xb4c] sm:$0xf]
  %v870 = vld [vmem:[%s1 + $0xb50] sm:$0xf]
  %v871 = vld [vmem:[%s1 + $0xb54] sm:$0xf]
  %v872 = vld [vmem:[%s1 + $0xb58] sm:$0xf]
  %v873 = vld [vmem:[%s1 + $0xb5c] sm:$0xf]
  %v874 = vld [vmem:[%s1 + $0xb60] sm:$0xf]
  %v875 = vld [vmem:[%s1 + $0xb64] sm:$0xf]
  %v876 = vld [vmem:[%s1 + $0xb68] sm:$0xf]
  %v877 = vld [vmem:[%s1 + $0xb6c] sm:$0xf]
  %v878 = vld [vmem:[%s1 + $0xb70] sm:$0xf]
  %v879 = vld [vmem:[%s1 + $0xb74] sm:$0xf]
  %v880 = vld [vmem:[%s1 + $0xb78] sm:$0xf]
  %v881 = vld [vmem:[%s1 + $0xb7c] sm:$0xf]
  %v882 = vld [vmem:[%s1 + $0xb80] sm:$0xf]
  %v883 = vld [vmem:[%s1 + $0xb84] sm:$0xf]
  %v884 = vld [vmem:[%s1 + $0xb88] sm:$0xf]
  %v885 = vld [vmem:[%s1 + $0xb8c] sm:$0xf]
  %v886 = vld [vmem:[%s1 + $0xb90] sm:$0xf]
  %v887 = vld [vmem:[%s1 + $0xb94] sm:$0xf]
  %v888 = vld [vmem:[%s1 + $0xb98] sm:$0xf]
  %v889 = vld [vmem:[%s1 + $0xb9c] sm:$0xf]
  %v890 = vld [vmem:[%s1 + $0xba0] sm:$0xf]
  %v891 = vld [vmem:[%s1 + $0xba4] sm:$0xf]
  %v892 = vld [vmem:[%s1 + $0xba8] sm:$0xf]
  %v893 = vld [vmem:[%s1 + $0xbac] sm:$0xf]
  %v894 = vld [vmem:[%s1 + $0xbb0] sm:$0xf]
  %v895 = vld [vmem:[%s1 + $0xbb4] sm:$0xf]
  %v896 = vld [vmem:[%s1 + $0xbb8] sm:$0xf]
  %v897 = vld [vmem:[%s1 + $0xbbc] sm:$0xf]
  %v898 = vld [vmem:[%s1 + $0xbc0] sm:$0xf]
  %v899 = vld [vmem:[%s1 + $0xbc4] sm:$0xf]
  %v900 = vld [vmem:[%s1 + $0xbc8] sm:$0xf]
  %v901 = vld [vmem:[%s1 + $0xbcc] sm:$0xf]
  %v902 = vld [vmem:[%s1 + $0xbd0] sm:$0xf]
  %v903 = vld [vmem:[%s1 + $0xbd4] sm:$0xf]
  %v904 = vld [vmem:[%s1 + $0xbd8] sm:$0xf]
  %v905 = vld [vmem:[%s1 + $0xbdc] sm:$0xf]
  %v906 = vld [vmem:[%s1 + $0xbe0] sm:$0xf]
  %v907 = vld [vmem:[%s1 + $0xbe4] sm:$0xf]
  %v908 = vld [vmem:[%s1 + $0xbe8] sm:$0xf]
  %v909 = vld [vmem:[%s1 + $0xbec] sm:$0xf]
  %v910 = vld [vmem:[%s1 + $0xbf0] sm:$0xf]
  %v911 = vld [vmem:[%s1 + $0xbf4] sm:$0xf]
  %v912 = vld [vmem:[%s1 + $0xbf8] sm:$0xf]
  %v913 = vld [vmem:[%s1 + $0xbfc] sm:$0xf]
  %v914 = vld [vmem:[%s1 + $0xc00] sm:$0xf]
  %v915 = vld [vmem:[%s1 + $0xc04] sm:$0xf]
  %v916 = vld [vmem:[%s1 + $0xc08] sm:$0xf]
  %v917 = vld [vmem:[%s1 + $0xc0c] sm:$0xf]
  %v918 = vld [vmem:[%s1 + $0xc10] sm:$0xf]
  %v919 = vld [vmem:[%s1 + $0xc14] sm:$0xf]
  %v920 = vld [vmem:[%s1 + $0xc18] sm:$0xf]
  %v921 = vld [vmem:[%s1 + $0xc1c] sm:$0xf]
  %v922 = vld [vmem:[%s1 + $0xc20] sm:$0xf]
  %v923 = vld [vmem:[%s1 + $0xc24] sm:$0xf]
  %v924 = vld [vmem:[%s1 + $0xc28] sm:$0xf]
  %v925 = vld [vmem:[%s1 + $0xc2c] sm:$0xf]
  %v926 = vld [vmem:[%s1 + $0xc30] sm:$0xf]
  %v927 = vld [vmem:[%s1 + $0xc34] sm:$0xf]
  %v928 = vld [vmem:[%s1 + $0xc38] sm:$0xf]
  %v929 = vld [vmem:[%s1 + $0xc3c] sm:$0xf]
  %v930 = vld [vmem:[%s1 + $0xc40] sm:$0xf]
  %v931 = vld [vmem:[%s1 + $0xc44] sm:$0xf]
  %v932 = vld [vmem:[%s1 + $0xc48] sm:$0xf]
  %v933 = vld [vmem:[%s1 + $0xc4c] sm:$0xf]
  %v934 = vld [vmem:[%s1 + $0xc50] sm:$0xf]
  %v935 = vld [vmem:[%s1 + $0xc54] sm:$0xf]
  %v936 = vld [vmem:[%s1 + $0xc58] sm:$0xf]
  %v937 = vld [vmem:[%s1 + $0xc5c] sm:$0xf]
  %v938 = vld [vmem:[%s1 + $0xc60] sm:$0xf]
  %v939 = vld [vmem:[%s1 + $0xc64] sm:$0xf]
  %v940 = vld [vmem:[%s1 + $0xc68] sm:$0xf]
  %v941 = vld [vmem:[%s1 + $0xc6c] sm:$0xf]
  %v942 = vld [vmem:[%s1 + $0xc70] sm:$0xf]
  %v943 = vld [vmem:[%s1 + $0xc74] sm:$0xf]
  %v944 = vld [vmem:[%s1 + $0xc78] sm:$0xf]
  %v945 = vld [vmem:[%s1 + $0xc7c] sm:$0xf]
  %v946 = vld [vmem:[%s1 + $0xc80] sm:$0xf]
  %v947 = vld [vmem:[%s1 + $0xc84] sm:$0xf]
  %v948 = vld [vmem:[%s1 + $0xc88] sm:$0xf]
  %v949 = vld [vmem:[%s1 + $0xc8c] sm:$0xf]
  %v950 = vld [vmem:[%s1 + $0xc90] sm:$0xf]
  %v951 = vld [vmem:[%s1 + $0xc94] sm:$0xf]
  %v952 = vld [vmem:[%s1 + $0xc98] sm:$0xf]
  %v953 = vld [vmem:[%s1 + $0xc9c] sm:$0xf]
  %v954 = vld [vmem:[%s1 + $0xca0] sm:$0xf]
  %v955 = vld [vmem:[%s1 + $0xca4] sm:$0xf]
  %v956 = vld [vmem:[%s1 + $0xca8] sm:$0xf]
  %v957 = vld [vmem:[%s1 + $0xcac] sm:$0xf]
  %v958 = vld [vmem:[%s1 + $0xcb0] sm:$0xf]
  %v959 = vld [vmem:[%s1 + $0xcb4] sm:$0xf]
  %v960 = vld [vmem:[%s1 + $0xcb8] sm:$0xf]
  %v961 = vld [vmem:[%s1 + $0xcbc] sm:$0xf]
  %v962 = vld [vmem:[%s1 + $0xcc0] sm:$0xf]
  %v963 = vld [vmem:[%s1 + $0xcc4] sm:$0xf]
  %v964 = vld [vmem:[%s1 + $0xcc8] sm:$0xf]
  %v965 = vld [vmem:[%s1 + $0xccc] sm:$0xf]
  %v966 = vld [vmem:[%s1 + $0xcd0] sm:$0xf]
  %v967 = vld [vmem:[%s1 + $0xcd4] sm:$0xf]
  %v968 = vld [vmem:[%s1 + $0xcd8] sm:$0xf]
  %v969 = vld [vmem:[%s1 + $0xcdc] sm:$0xf]
  %v970 = vld [vmem:[%s1 + $0xce0] sm:$0xf]
  %v971 = vld [vmem:[%s1 + $0xce4] sm:$0xf]
  %v972 = vld [vmem:[%s1 + $0xce8] sm:$0xf]
  %v973 = vld [vmem:[%s1 + $0xcec] sm:$0xf]
  %v974 = vld [vmem:[%s1 + $0xcf0] sm:$0xf]
  %v975 = vld [vmem:[%s1 + $0xcf4] sm:$0xf]
  %v976 = vld [vmem:[%s1 + $0xcf8] sm:$0xf]
  %v977 = vld [vmem:[%s1 + $0xcfc] sm:$0xf]
  %v978 = vld [vmem:[%s1 + $0xd00] sm:$0xf]
  %v979 = vld [vmem:[%s1 + $0xd04] sm:$0xf]
  %v980 = vld [vmem:[%s1 + $0xd08] sm:$0xf]
  %v981 = vld [vmem:[%s1 + $0xd0c] sm:$0xf]
  %v982 = vld [vmem:[%s1 + $0xd10] sm:$0xf]
  %v983 = vld [vmem:[%s1 + $0xd14] sm:$0xf]
  %v984 = vld [vmem:[%s1 + $0xd18] sm:$0xf]
  %v985 = vld [vmem:[%s1 + $0xd1c] sm:$0xf]
  %v986 = vld [vmem:[%s1 + $0xd20] sm:$0xf]
  %v987 = vld [vmem:[%s1 + $0xd24] sm:$0xf]
  %v988 = vld [vmem:[%s1 + $0xd28] sm:$0xf]
  %v989 = vld [vmem:[%s1 + $0xd2c] sm:$0xf]
  %v990 = vld [vmem:[%s1 + $0xd30] sm:$0xf]
  %v991 = vld [vmem:[%s1 + $0xd34] sm:$0xf]
  %v992 = vld [vmem:[%s1 + $0xd38] sm:$0xf]
  %v993 = vld [vmem:[%s1 + $0xd3c] sm:$0xf]
  %v994 = vld [vmem:[%s1 + $0xd40] sm:$0xf]
  %v995 = vld [vmem:[%s1 + $0xd44] sm:$0xf]
  %v996 = vld [vmem:[%s1 + $0xd48] sm:$0xf]
  %v997 = vld [vmem:[%s1 + $0xd4c] sm:$0xf]
  %v998 = vld [vmem:[%s1 + $0xd50] sm:$0xf]
  %v999 = vld [vmem:[%s1 + $0xd54] sm:$0xf]
  %v1000 = vld [vmem:[%s1 + $0xd58] sm:$0xf]
  %v1001 = vld [vmem:[%s1 + $0xd5c] sm:$0xf]
  %v1002 = vld [vmem:[%s1 + $0xd60] sm:$0xf]
  %v1003 = vld [vmem:[%s1 + $0xd64] sm:$0xf]
  %v1004 = vld [vmem:[%s1 + $0xd68] sm:$0xf]
  %v1005 = vld [vmem:[%s1 + $0xd6c] sm:$0xf]
  %v1006 = vld [vmem:[%s1 + $0xd70] sm:$0xf]
  %v1007 = vld [vmem:[%s1 + $0xd74] sm:$0xf]
  %v1008 = vld [vmem:[%s1 + $0xd78] sm:$0xf]
  %v1009 = vld [vmem:[%s1 + $0xd7c] sm:$0xf]
  %v1010 = vld [vmem:[%s2] sm:$0x1]
  %v1012 = vperm.slane %v1010, 0
  %v1878 = vunpack.c.l.b16 %v146
  %v1879 = vunpack.c.l.b16 %v147
  %v1880 = vunpack.c.l.b16 %v148
  %v1881 = vunpack.c.l.b16 %v149
  %v1882 = vunpack.c.l.b16 %v150
  %v1883 = vunpack.c.l.b16 %v151
  %v1884 = vunpack.c.l.b16 %v152
  %v1885 = vunpack.c.l.b16 %v153
  %v1886 = vunpack.c.l.b16 %v154
  %v1887 = vunpack.c.l.b16 %v155
  %v1888 = vunpack.c.l.b16 %v156
  %v1889 = vunpack.c.l.b16 %v157
  %v1890 = vunpack.c.l.b16 %v158
  %v1891 = vunpack.c.l.b16 %v159
  %v1892 = vunpack.c.l.b16 %v160
  %v1893 = vunpack.c.l.b16 %v161
  %v1894 = vunpack.c.l.b16 %v162
  %v1895 = vunpack.c.l.b16 %v163
  %v1896 = vunpack.c.l.b16 %v164
  %v1897 = vunpack.c.l.b16 %v165
  %v1898 = vunpack.c.l.b16 %v166
  %v1899 = vunpack.c.l.b16 %v167
  %v1900 = vunpack.c.l.b16 %v168
  %v1901 = vunpack.c.l.b16 %v169
  %v1902 = vunpack.c.l.b16 %v170
  %v1903 = vunpack.c.l.b16 %v171
  %v1904 = vunpack.c.l.b16 %v172
  %v1905 = vunpack.c.l.b16 %v173
  %v1906 = vunpack.c.l.b16 %v174
  %v1907 = vunpack.c.l.b16 %v175
  %v1908 = vunpack.c.l.b16 %v176
  %v1909 = vunpack.c.l.b16 %v177
  %v1910 = vunpack.c.l.b16 %v178
  %v1911 = vunpack.c.l.b16 %v179
  %v1912 = vunpack.c.l.b16 %v180
  %v1913 = vunpack.c.l.b16 %v181
  %v1914 = vunpack.c.l.b16 %v182
  %v1915 = vunpack.c.l.b16 %v183
  %v1916 = vunpack.c.l.b16 %v184
  %v1917 = vunpack.c.l.b16 %v185
  %v1918 = vunpack.c.l.b16 %v186
  %v1919 = vunpack.c.l.b16 %v187
  %v1920 = vunpack.c.l.b16 %v188
  %v1921 = vunpack.c.l.b16 %v189
  %v1922 = vunpack.c.l.b16 %v190
  %v1923 = vunpack.c.l.b16 %v191
  %v1924 = vunpack.c.l.b16 %v192
  %v1925 = vunpack.c.l.b16 %v193
  %v1926 = vunpack.c.l.b16 %v194
  %v1927 = vunpack.c.l.b16 %v195
  %v1928 = vunpack.c.l.b16 %v196
  %v1929 = vunpack.c.l.b16 %v197
  %v1930 = vunpack.c.l.b16 %v198
  %v1931 = vunpack.c.l.b16 %v199
  %v1932 = vunpack.c.l.b16 %v200
  %v1933 = vunpack.c.l.b16 %v201
  %v1934 = vunpack.c.l.b16 %v202
  %v1935 = vunpack.c.l.b16 %v203
  %v1936 = vunpack.c.l.b16 %v204
  %v1937 = vunpack.c.l.b16 %v205
  %v1938 = vunpack.c.l.b16 %v206
  %v1939 = vunpack.c.l.b16 %v207
  %v1940 = vunpack.c.l.b16 %v208
  %v1941 = vunpack.c.l.b16 %v209
  %v1942 = vunpack.c.l.b16 %v210
  %v1943 = vunpack.c.l.b16 %v211
  %v1944 = vunpack.c.l.b16 %v212
  %v1945 = vunpack.c.l.b16 %v213
  %v1946 = vunpack.c.l.b16 %v214
  %v1947 = vunpack.c.l.b16 %v215
  %v1948 = vunpack.c.l.b16 %v216
  %v1949 = vunpack.c.l.b16 %v217
  %v1950 = vunpack.c.l.b16 %v218
  %v1951 = vunpack.c.l.b16 %v219
  %v1952 = vunpack.c.l.b16 %v220
  %v1953 = vunpack.c.l.b16 %v221
  %v1954 = vunpack.c.l.b16 %v222
  %v1955 = vunpack.c.l.b16 %v223
  %v1956 = vunpack.c.l.b16 %v224
  %v1957 = vunpack.c.l.b16 %v225
  %v1958 = vunpack.c.l.b16 %v226
  %v1959 = vunpack.c.l.b16 %v227
  %v1960 = vunpack.c.l.b16 %v228
  %v1961 = vunpack.c.l.b16 %v229
  %v1962 = vunpack.c.l.b16 %v230
  %v1963 = vunpack.c.l.b16 %v231
  %v1964 = vunpack.c.l.b16 %v232
  %v1965 = vunpack.c.l.b16 %v233
  %v1966 = vunpack.c.l.b16 %v234
  %v1967 = vunpack.c.l.b16 %v235
  %v1968 = vunpack.c.l.b16 %v236
  %v1969 = vunpack.c.l.b16 %v237
  %v1970 = vunpack.c.l.b16 %v238
  %v1971 = vunpack.c.l.b16 %v239
  %v1972 = vunpack.c.l.b16 %v240
  %v1973 = vunpack.c.l.b16 %v241
  %v1974 = vunpack.c.l.b16 %v242
  %v1975 = vunpack.c.l.b16 %v243
  %v1976 = vunpack.c.l.b16 %v244
  %v1977 = vunpack.c.l.b16 %v245
  %v1978 = vunpack.c.l.b16 %v246
  %v1979 = vunpack.c.l.b16 %v247
  %v1980 = vunpack.c.l.b16 %v248
  %v1981 = vunpack.c.l.b16 %v249
  %v1982 = vunpack.c.l.b16 %v250
  %v1983 = vunpack.c.l.b16 %v251
  %v1984 = vunpack.c.l.b16 %v252
  %v1985 = vunpack.c.l.b16 %v253
  %v1986 = vunpack.c.l.b16 %v254
  %v1987 = vunpack.c.l.b16 %v255
  %v1988 = vunpack.c.l.b16 %v256
  %v1989 = vunpack.c.l.b16 %v257
  %v1990 = vunpack.c.l.b16 %v258
  %v1991 = vunpack.c.l.b16 %v259
  %v1992 = vunpack.c.l.b16 %v260
  %v1993 = vunpack.c.l.b16 %v261
  %v1994 = vunpack.c.l.b16 %v262
  %v1995 = vunpack.c.l.b16 %v263
  %v1996 = vunpack.c.l.b16 %v264
  %v1997 = vunpack.c.l.b16 %v265
  %v1998 = vunpack.c.l.b16 %v266
  %v1999 = vunpack.c.l.b16 %v267
  %v2000 = vunpack.c.l.b16 %v268
  %v2001 = vunpack.c.l.b16 %v269
  %v2002 = vunpack.c.l.b16 %v270
  %v2003 = vunpack.c.l.b16 %v271
  %v2004 = vunpack.c.l.b16 %v272
  %v2005 = vunpack.c.l.b16 %v273
  %v2006 = vunpack.c.l.b16 %v274
  %v2007 = vunpack.c.l.b16 %v275
  %v2008 = vunpack.c.l.b16 %v276
  %v2009 = vunpack.c.l.b16 %v277
  %v2010 = vunpack.c.l.b16 %v278
  %v2011 = vunpack.c.l.b16 %v279
  %v2012 = vunpack.c.l.b16 %v280
  %v2013 = vunpack.c.l.b16 %v281
  %v2014 = vunpack.c.l.b16 %v282
  %v2015 = vunpack.c.l.b16 %v283
  %v2016 = vunpack.c.l.b16 %v284
  %v2017 = vunpack.c.l.b16 %v285
  %v2018 = vunpack.c.l.b16 %v286
  %v2019 = vunpack.c.l.b16 %v287
  %v2020 = vunpack.c.l.b16 %v288
  %v2021 = vunpack.c.l.b16 %v289
  %v2022 = vunpack.c.l.b16 %v290
  %v2023 = vunpack.c.l.b16 %v291
  %v2024 = vunpack.c.l.b16 %v292
  %v2025 = vunpack.c.l.b16 %v293
  %v2026 = vunpack.c.l.b16 %v294
  %v2027 = vunpack.c.l.b16 %v295
  %v2028 = vunpack.c.l.b16 %v296
  %v2029 = vunpack.c.l.b16 %v297
  %v2030 = vunpack.c.l.b16 %v298
  %v2031 = vunpack.c.l.b16 %v299
  %v2032 = vunpack.c.l.b16 %v300
  %v2033 = vunpack.c.l.b16 %v301
  %v2034 = vunpack.c.l.b16 %v302
  %v2035 = vunpack.c.l.b16 %v303
  %v2036 = vunpack.c.l.b16 %v304
  %v2037 = vunpack.c.l.b16 %v305
  %v2038 = vunpack.c.l.b16 %v306
  %v2039 = vunpack.c.l.b16 %v307
  %v2040 = vunpack.c.l.b16 %v308
  %v2041 = vunpack.c.l.b16 %v309
  %v2042 = vunpack.c.l.b16 %v310
  %v2043 = vunpack.c.l.b16 %v311
  %v2044 = vunpack.c.l.b16 %v312
  %v2045 = vunpack.c.l.b16 %v313
  %v2046 = vunpack.c.l.b16 %v314
  %v2047 = vunpack.c.l.b16 %v315
  %v2048 = vunpack.c.l.b16 %v316
  %v2049 = vunpack.c.l.b16 %v317
  %v2050 = vunpack.c.l.b16 %v318
  %v2051 = vunpack.c.l.b16 %v319
  %v2052 = vunpack.c.l.b16 %v320
  %v2053 = vunpack.c.l.b16 %v321
  %v2054 = vunpack.c.l.b16 %v322
  %v2055 = vunpack.c.l.b16 %v323
  %v2056 = vunpack.c.l.b16 %v324
  %v2057 = vunpack.c.l.b16 %v325
  %v2058 = vunpack.c.l.b16 %v326
  %v2059 = vunpack.c.l.b16 %v327
  %v2060 = vunpack.c.l.b16 %v328
  %v2061 = vunpack.c.l.b16 %v329
  %v2062 = vunpack.c.l.b16 %v330
  %v2063 = vunpack.c.l.b16 %v331
  %v2064 = vunpack.c.l.b16 %v332
  %v2065 = vunpack.c.l.b16 %v333
  %v2066 = vunpack.c.l.b16 %v334
  %v2067 = vunpack.c.l.b16 %v335
  %v2068 = vunpack.c.l.b16 %v336
  %v2069 = vunpack.c.l.b16 %v337
  %v2070 = vunpack.c.l.b16 %v338
  %v2071 = vunpack.c.l.b16 %v339
  %v2072 = vunpack.c.l.b16 %v340
  %v2073 = vunpack.c.l.b16 %v341
  %v2074 = vunpack.c.l.b16 %v342
  %v2075 = vunpack.c.l.b16 %v343
  %v2076 = vunpack.c.l.b16 %v344
  %v2077 = vunpack.c.l.b16 %v345
  %v2078 = vunpack.c.l.b16 %v346
  %v2079 = vunpack.c.l.b16 %v347
  %v2080 = vunpack.c.l.b16 %v348
  %v2081 = vunpack.c.l.b16 %v349
  %v2082 = vunpack.c.l.b16 %v350
  %v2083 = vunpack.c.l.b16 %v351
  %v2084 = vunpack.c.l.b16 %v352
  %v2085 = vunpack.c.l.b16 %v353
  %v2086 = vunpack.c.l.b16 %v354
  %v2087 = vunpack.c.l.b16 %v355
  %v2088 = vunpack.c.l.b16 %v356
  %v2089 = vunpack.c.l.b16 %v357
  %v2090 = vunpack.c.l.b16 %v358
  %v2091 = vunpack.c.l.b16 %v359
  %v2092 = vunpack.c.l.b16 %v360
  %v2093 = vunpack.c.l.b16 %v361
  %v2094 = vunpack.c.l.b16 %v362
  %v2095 = vunpack.c.l.b16 %v363
  %v2096 = vunpack.c.l.b16 %v364
  %v2097 = vunpack.c.l.b16 %v365
  %v2098 = vunpack.c.l.b16 %v366
  %v2099 = vunpack.c.l.b16 %v367
  %v2100 = vunpack.c.l.b16 %v368
  %v2101 = vunpack.c.l.b16 %v369
  %v2102 = vunpack.c.l.b16 %v370
  %v2103 = vunpack.c.l.b16 %v371
  %v2104 = vunpack.c.l.b16 %v372
  %v2105 = vunpack.c.l.b16 %v373
  %v2106 = vunpack.c.l.b16 %v374
  %v2107 = vunpack.c.l.b16 %v375
  %v2108 = vunpack.c.l.b16 %v376
  %v2109 = vunpack.c.l.b16 %v377
  %v2110 = vunpack.c.l.b16 %v378
  %v2111 = vunpack.c.l.b16 %v379
  %v2112 = vunpack.c.l.b16 %v380
  %v2113 = vunpack.c.l.b16 %v381
  %v2114 = vunpack.c.l.b16 %v382
  %v2115 = vunpack.c.l.b16 %v383
  %v2116 = vunpack.c.l.b16 %v384
  %v2117 = vunpack.c.l.b16 %v385
  %v2118 = vunpack.c.l.b16 %v386
  %v2119 = vunpack.c.l.b16 %v387
  %v2120 = vunpack.c.l.b16 %v388
  %v2121 = vunpack.c.l.b16 %v389
  %v2122 = vunpack.c.l.b16 %v390
  %v2123 = vunpack.c.l.b16 %v391
  %v2124 = vunpack.c.l.b16 %v392
  %v2125 = vunpack.c.l.b16 %v393
  %v2126 = vunpack.c.l.b16 %v394
  %v2127 = vunpack.c.l.b16 %v395
  %v2128 = vunpack.c.l.b16 %v396
  %v2129 = vunpack.c.l.b16 %v397
  %v2130 = vunpack.c.l.b16 %v398
  %v2131 = vunpack.c.l.b16 %v399
  %v2132 = vunpack.c.l.b16 %v400
  %v2133 = vunpack.c.l.b16 %v401
  %v2134 = vunpack.c.l.b16 %v402
  %v2135 = vunpack.c.l.b16 %v403
  %v2136 = vunpack.c.l.b16 %v404
  %v2137 = vunpack.c.l.b16 %v405
  %v2138 = vunpack.c.l.b16 %v406
  %v2139 = vunpack.c.l.b16 %v407
  %v2140 = vunpack.c.l.b16 %v408
  %v2141 = vunpack.c.l.b16 %v409
  %v2142 = vunpack.c.l.b16 %v410
  %v2143 = vunpack.c.l.b16 %v411
  %v2144 = vunpack.c.l.b16 %v412
  %v2145 = vunpack.c.l.b16 %v413
  %v2146 = vunpack.c.l.b16 %v414
  %v2147 = vunpack.c.l.b16 %v415
  %v2148 = vunpack.c.l.b16 %v416
  %v2149 = vunpack.c.l.b16 %v417
  %v2150 = vunpack.c.l.b16 %v418
  %v2151 = vunpack.c.l.b16 %v419
  %v2152 = vunpack.c.l.b16 %v420
  %v2153 = vunpack.c.l.b16 %v421
  %v2154 = vunpack.c.l.b16 %v422
  %v2155 = vunpack.c.l.b16 %v423
  %v2156 = vunpack.c.l.b16 %v424
  %v2157 = vunpack.c.l.b16 %v425
  %v2158 = vunpack.c.l.b16 %v426
  %v2159 = vunpack.c.l.b16 %v427
  %v2160 = vunpack.c.l.b16 %v428
  %v2161 = vunpack.c.l.b16 %v429
  %v2162 = vunpack.c.l.b16 %v430
  %v2163 = vunpack.c.l.b16 %v431
  %v2164 = vunpack.c.l.b16 %v432
  %v2165 = vunpack.c.l.b16 %v433
  %v2166 = vunpack.c.l.b16 %v434
  %v2167 = vunpack.c.l.b16 %v435
  %v2168 = vunpack.c.l.b16 %v436
  %v2169 = vunpack.c.l.b16 %v437
  %v2170 = vunpack.c.l.b16 %v438
  %v2171 = vunpack.c.l.b16 %v439
  %v2172 = vunpack.c.l.b16 %v440
  %v2173 = vunpack.c.l.b16 %v441
  %v2174 = vunpack.c.l.b16 %v442
  %v2175 = vunpack.c.l.b16 %v443
  %v2176 = vunpack.c.l.b16 %v444
  %v2177 = vunpack.c.l.b16 %v445
  %v2178 = vunpack.c.l.b16 %v446
  %v2179 = vunpack.c.l.b16 %v447
  %v2180 = vunpack.c.l.b16 %v448
  %v2181 = vunpack.c.l.b16 %v449
  %v2182 = vunpack.c.l.b16 %v450
  %v2183 = vunpack.c.l.b16 %v451
  %v2184 = vunpack.c.l.b16 %v452
  %v2185 = vunpack.c.l.b16 %v453
  %v2186 = vunpack.c.l.b16 %v454
  %v2187 = vunpack.c.l.b16 %v455
  %v2188 = vunpack.c.l.b16 %v456
  %v2189 = vunpack.c.l.b16 %v457
  %v2190 = vunpack.c.l.b16 %v458
  %v2191 = vunpack.c.l.b16 %v459
  %v2192 = vunpack.c.l.b16 %v460
  %v2193 = vunpack.c.l.b16 %v461
  %v2194 = vunpack.c.l.b16 %v462
  %v2195 = vunpack.c.l.b16 %v463
  %v2196 = vunpack.c.l.b16 %v464
  %v2197 = vunpack.c.l.b16 %v465
  %v2198 = vunpack.c.l.b16 %v466
  %v2199 = vunpack.c.l.b16 %v467
  %v2200 = vunpack.c.l.b16 %v468
  %v2201 = vunpack.c.l.b16 %v469
  %v2202 = vunpack.c.l.b16 %v470
  %v2203 = vunpack.c.l.b16 %v471
  %v2204 = vunpack.c.l.b16 %v472
  %v2205 = vunpack.c.l.b16 %v473
  %v2206 = vunpack.c.l.b16 %v474
  %v2207 = vunpack.c.l.b16 %v475
  %v2208 = vunpack.c.l.b16 %v476
  %v2209 = vunpack.c.l.b16 %v477
  %v2210 = vunpack.c.l.b16 %v478
  %v2211 = vunpack.c.l.b16 %v479
  %v2212 = vunpack.c.l.b16 %v480
  %v2213 = vunpack.c.l.b16 %v481
  %v2214 = vunpack.c.l.b16 %v482
  %v2215 = vunpack.c.l.b16 %v483
  %v2216 = vunpack.c.l.b16 %v484
  %v2217 = vunpack.c.l.b16 %v485
  %v2218 = vunpack.c.l.b16 %v486
  %v2219 = vunpack.c.l.b16 %v487
  %v2220 = vunpack.c.l.b16 %v488
  %v2221 = vunpack.c.l.b16 %v489
  %v2222 = vunpack.c.l.b16 %v490
  %v2223 = vunpack.c.l.b16 %v491
  %v2224 = vunpack.c.l.b16 %v492
  %v2225 = vunpack.c.l.b16 %v493
  %v2226 = vunpack.c.l.b16 %v494
  %v2227 = vunpack.c.l.b16 %v495
  %v2228 = vunpack.c.l.b16 %v496
  %v2229 = vunpack.c.l.b16 %v497
  %v2230 = vunpack.c.l.b16 %v498
  %v2231 = vunpack.c.l.b16 %v499
  %v2232 = vunpack.c.l.b16 %v500
  %v2233 = vunpack.c.l.b16 %v501
  %v2234 = vunpack.c.l.b16 %v502
  %v2235 = vunpack.c.l.b16 %v503
  %v2236 = vunpack.c.l.b16 %v504
  %v2237 = vunpack.c.l.b16 %v505
  %v2238 = vunpack.c.l.b16 %v506
  %v2239 = vunpack.c.l.b16 %v507
  %v2240 = vunpack.c.l.b16 %v508
  %v2241 = vunpack.c.l.b16 %v509
  %v2242 = vunpack.c.l.b16 %v510
  %v2243 = vunpack.c.l.b16 %v511
  %v2244 = vunpack.c.l.b16 %v512
  %v2245 = vunpack.c.l.b16 %v513
  %v2246 = vunpack.c.l.b16 %v514
  %v2247 = vunpack.c.l.b16 %v515
  %v2248 = vunpack.c.l.b16 %v516
  %v2249 = vunpack.c.l.b16 %v517
  %v2250 = vunpack.c.l.b16 %v518
  %v2251 = vunpack.c.l.b16 %v519
  %v2252 = vunpack.c.l.b16 %v520
  %v2253 = vunpack.c.l.b16 %v521
  %v2254 = vunpack.c.l.b16 %v522
  %v2255 = vunpack.c.l.b16 %v523
  %v2256 = vunpack.c.l.b16 %v524
  %v2257 = vunpack.c.l.b16 %v525
  %v2258 = vunpack.c.l.b16 %v526
  %v2259 = vunpack.c.l.b16 %v527
  %v2260 = vunpack.c.l.b16 %v528
  %v2261 = vunpack.c.l.b16 %v529
  %v2262 = vunpack.c.l.b16 %v530
  %v2263 = vunpack.c.l.b16 %v531
  %v2264 = vunpack.c.l.b16 %v532
  %v2265 = vunpack.c.l.b16 %v533
  %v2266 = vunpack.c.l.b16 %v534
  %v2267 = vunpack.c.l.b16 %v535
  %v2268 = vunpack.c.l.b16 %v536
  %v2269 = vunpack.c.l.b16 %v537
  %v2270 = vunpack.c.l.b16 %v538
  %v2271 = vunpack.c.l.b16 %v539
  %v2272 = vunpack.c.l.b16 %v540
  %v2273 = vunpack.c.l.b16 %v541
  %v2274 = vunpack.c.l.b16 %v542
  %v2275 = vunpack.c.l.b16 %v543
  %v2276 = vunpack.c.l.b16 %v544
  %v2277 = vunpack.c.l.b16 %v545
  %v2278 = vunpack.c.l.b16 %v546
  %v2279 = vunpack.c.l.b16 %v547
  %v2280 = vunpack.c.l.b16 %v548
  %v2281 = vunpack.c.l.b16 %v549
  %v2282 = vunpack.c.l.b16 %v550
  %v2283 = vunpack.c.l.b16 %v551
  %v2284 = vunpack.c.l.b16 %v552
  %v2285 = vunpack.c.l.b16 %v553
  %v2286 = vunpack.c.l.b16 %v554
  %v2287 = vunpack.c.l.b16 %v555
  %v2288 = vunpack.c.l.b16 %v556
  %v2289 = vunpack.c.l.b16 %v557
  %v2290 = vunpack.c.l.b16 %v558
  %v2291 = vunpack.c.l.b16 %v559
  %v2292 = vunpack.c.l.b16 %v560
  %v2293 = vunpack.c.l.b16 %v561
  %v2294 = vunpack.c.l.b16 %v562
  %v2295 = vunpack.c.l.b16 %v563
  %v2296 = vunpack.c.l.b16 %v564
  %v2297 = vunpack.c.l.b16 %v565
  %v2298 = vunpack.c.l.b16 %v566
  %v2299 = vunpack.c.l.b16 %v567
  %v2300 = vunpack.c.l.b16 %v568
  %v2301 = vunpack.c.l.b16 %v569
  %v2302 = vunpack.c.l.b16 %v570
  %v2303 = vunpack.c.l.b16 %v571
  %v2304 = vunpack.c.l.b16 %v572
  %v2305 = vunpack.c.l.b16 %v573
  %v2306 = vunpack.c.l.b16 %v574
  %v2307 = vunpack.c.l.b16 %v575
  %v2308 = vunpack.c.l.b16 %v576
  %v2309 = vunpack.c.l.b16 %v577
  %v2310 = vunpack.c.l.b16 %v578
  %v2311 = vunpack.c.l.b16 %v579
  %v2312 = vunpack.c.l.b16 %v580
  %v2313 = vunpack.c.l.b16 %v581
  %v2314 = vunpack.c.l.b16 %v582
  %v2315 = vunpack.c.l.b16 %v583
  %v2316 = vunpack.c.l.b16 %v584
  %v2317 = vunpack.c.l.b16 %v585
  %v2318 = vunpack.c.l.b16 %v586
  %v2319 = vunpack.c.l.b16 %v587
  %v2320 = vunpack.c.l.b16 %v588
  %v2321 = vunpack.c.l.b16 %v589
  %v2322 = vunpack.c.l.b16 %v590
  %v2323 = vunpack.c.l.b16 %v591
  %v2324 = vunpack.c.l.b16 %v592
  %v2325 = vunpack.c.l.b16 %v593
  %v2326 = vunpack.c.l.b16 %v594
  %v2327 = vunpack.c.l.b16 %v595
  %v2328 = vunpack.c.l.b16 %v596
  %v2329 = vunpack.c.l.b16 %v597
  %v2330 = vunpack.c.l.b16 %v598
  %v2331 = vunpack.c.l.b16 %v599
  %v2332 = vunpack.c.l.b16 %v600
  %v2333 = vunpack.c.l.b16 %v601
  %v2334 = vunpack.c.l.b16 %v602
  %v2335 = vunpack.c.l.b16 %v603
  %v2336 = vunpack.c.l.b16 %v604
  %v2337 = vunpack.c.l.b16 %v605
  %v2338 = vunpack.c.l.b16 %v606
  %v2339 = vunpack.c.l.b16 %v607
  %v2340 = vunpack.c.l.b16 %v608
  %v2341 = vunpack.c.l.b16 %v609
  %v2342 = vunpack.c.l.b16 %v610
  %v2343 = vunpack.c.l.b16 %v611
  %v2344 = vunpack.c.l.b16 %v612
  %v2345 = vunpack.c.l.b16 %v613
  %v2346 = vunpack.c.l.b16 %v614
  %v2347 = vunpack.c.l.b16 %v615
  %v2348 = vunpack.c.l.b16 %v616
  %v2349 = vunpack.c.l.b16 %v617
  %v2350 = vunpack.c.l.b16 %v618
  %v2351 = vunpack.c.l.b16 %v619
  %v2352 = vunpack.c.l.b16 %v620
  %v2353 = vunpack.c.l.b16 %v621
  %v2354 = vunpack.c.l.b16 %v622
  %v2355 = vunpack.c.l.b16 %v623
  %v2356 = vunpack.c.l.b16 %v624
  %v2357 = vunpack.c.l.b16 %v625
  %v2358 = vunpack.c.l.b16 %v626
  %v2359 = vunpack.c.l.b16 %v627
  %v2360 = vunpack.c.l.b16 %v628
  %v2361 = vunpack.c.l.b16 %v629
  %v2362 = vunpack.c.l.b16 %v630
  %v2363 = vunpack.c.l.b16 %v631
  %v2364 = vunpack.c.l.b16 %v632
  %v2365 = vunpack.c.l.b16 %v633
  %v2366 = vunpack.c.l.b16 %v634
  %v2367 = vunpack.c.l.b16 %v635
  %v2368 = vunpack.c.l.b16 %v636
  %v2369 = vunpack.c.l.b16 %v637
  %v2370 = vunpack.c.l.b16 %v638
  %v2371 = vunpack.c.l.b16 %v639
  %v2372 = vunpack.c.l.b16 %v640
  %v2373 = vunpack.c.l.b16 %v641
  %v2374 = vunpack.c.l.b16 %v642
  %v2375 = vunpack.c.l.b16 %v643
  %v2376 = vunpack.c.l.b16 %v644
  %v2377 = vunpack.c.l.b16 %v645
  %v2378 = vunpack.c.l.b16 %v646
  %v2379 = vunpack.c.l.b16 %v647
  %v2380 = vunpack.c.l.b16 %v648
  %v2381 = vunpack.c.l.b16 %v649
  %v2382 = vunpack.c.l.b16 %v650
  %v2383 = vunpack.c.l.b16 %v651
  %v2384 = vunpack.c.l.b16 %v652
  %v2385 = vunpack.c.l.b16 %v653
  %v2386 = vunpack.c.l.b16 %v654
  %v2387 = vunpack.c.l.b16 %v655
  %v2388 = vunpack.c.l.b16 %v656
  %v2389 = vunpack.c.l.b16 %v657
  %v2390 = vunpack.c.l.b16 %v658
  %v2391 = vunpack.c.l.b16 %v659
  %v2392 = vunpack.c.l.b16 %v660
  %v2393 = vunpack.c.l.b16 %v661
  %v2394 = vunpack.c.l.b16 %v662
  %v2395 = vunpack.c.l.b16 %v663
  %v2396 = vunpack.c.l.b16 %v664
  %v2397 = vunpack.c.l.b16 %v665
  %v2398 = vunpack.c.l.b16 %v666
  %v2399 = vunpack.c.l.b16 %v667
  %v2400 = vunpack.c.l.b16 %v668
  %v2401 = vunpack.c.l.b16 %v669
  %v2402 = vunpack.c.l.b16 %v670
  %v2403 = vunpack.c.l.b16 %v671
  %v2404 = vunpack.c.l.b16 %v672
  %v2405 = vunpack.c.l.b16 %v673
  %v2406 = vunpack.c.l.b16 %v674
  %v2407 = vunpack.c.l.b16 %v675
  %v2408 = vunpack.c.l.b16 %v676
  %v2409 = vunpack.c.l.b16 %v677
  %v2410 = vunpack.c.l.b16 %v678
  %v2411 = vunpack.c.l.b16 %v679
  %v2412 = vunpack.c.l.b16 %v680
  %v2413 = vunpack.c.l.b16 %v681
  %v2414 = vunpack.c.l.b16 %v682
  %v2415 = vunpack.c.l.b16 %v683
  %v2416 = vunpack.c.l.b16 %v684
  %v2417 = vunpack.c.l.b16 %v685
  %v2418 = vunpack.c.l.b16 %v686
  %v2419 = vunpack.c.l.b16 %v687
  %v2420 = vunpack.c.l.b16 %v688
  %v2421 = vunpack.c.l.b16 %v689
  %v2422 = vunpack.c.l.b16 %v690
  %v2423 = vunpack.c.l.b16 %v691
  %v2424 = vunpack.c.l.b16 %v692
  %v2425 = vunpack.c.l.b16 %v693
  %v2426 = vunpack.c.l.b16 %v694
  %v2427 = vunpack.c.l.b16 %v695
  %v2428 = vunpack.c.l.b16 %v696
  %v2429 = vunpack.c.l.b16 %v697
  %v2430 = vunpack.c.l.b16 %v698
  %v2431 = vunpack.c.l.b16 %v699
  %v2432 = vunpack.c.l.b16 %v700
  %v2433 = vunpack.c.l.b16 %v701
  %v2434 = vunpack.c.l.b16 %v702
  %v2435 = vunpack.c.l.b16 %v703
  %v2436 = vunpack.c.l.b16 %v704
  %v2437 = vunpack.c.l.b16 %v705
  %v2438 = vunpack.c.l.b16 %v706
  %v2439 = vunpack.c.l.b16 %v707
  %v2440 = vunpack.c.l.b16 %v708
  %v2441 = vunpack.c.l.b16 %v709
  %v2442 = vunpack.c.l.b16 %v710
  %v2443 = vunpack.c.l.b16 %v711
  %v2444 = vunpack.c.l.b16 %v712
  %v2445 = vunpack.c.l.b16 %v713
  %v2446 = vunpack.c.l.b16 %v714
  %v2447 = vunpack.c.l.b16 %v715
  %v2448 = vunpack.c.l.b16 %v716
  %v2449 = vunpack.c.l.b16 %v717
  %v2450 = vunpack.c.l.b16 %v718
  %v2451 = vunpack.c.l.b16 %v719
  %v2452 = vunpack.c.l.b16 %v720
  %v2453 = vunpack.c.l.b16 %v721
  %v2454 = vunpack.c.l.b16 %v722
  %v2455 = vunpack.c.l.b16 %v723
  %v2456 = vunpack.c.l.b16 %v724
  %v2457 = vunpack.c.l.b16 %v725
  %v2458 = vunpack.c.l.b16 %v726
  %v2459 = vunpack.c.l.b16 %v727
  %v2460 = vunpack.c.l.b16 %v728
  %v2461 = vunpack.c.l.b16 %v729
  %v2462 = vunpack.c.l.b16 %v730
  %v2463 = vunpack.c.l.b16 %v731
  %v2464 = vunpack.c.l.b16 %v732
  %v2465 = vunpack.c.l.b16 %v733
  %v2466 = vunpack.c.l.b16 %v734
  %v2467 = vunpack.c.l.b16 %v735
  %v2468 = vunpack.c.l.b16 %v736
  %v2469 = vunpack.c.l.b16 %v737
  %v2470 = vunpack.c.l.b16 %v738
  %v2471 = vunpack.c.l.b16 %v739
  %v2472 = vunpack.c.l.b16 %v740
  %v2473 = vunpack.c.l.b16 %v741
  %v2474 = vunpack.c.l.b16 %v742
  %v2475 = vunpack.c.l.b16 %v743
  %v2476 = vunpack.c.l.b16 %v744
  %v2477 = vunpack.c.l.b16 %v745
  %v2478 = vunpack.c.l.b16 %v746
  %v2479 = vunpack.c.l.b16 %v747
  %v2480 = vunpack.c.l.b16 %v748
  %v2481 = vunpack.c.l.b16 %v749
  %v2482 = vunpack.c.l.b16 %v750
  %v2483 = vunpack.c.l.b16 %v751
  %v2484 = vunpack.c.l.b16 %v752
  %v2485 = vunpack.c.l.b16 %v753
  %v2486 = vunpack.c.l.b16 %v754
  %v2487 = vunpack.c.l.b16 %v755
  %v2488 = vunpack.c.l.b16 %v756
  %v2489 = vunpack.c.l.b16 %v757
  %v2490 = vunpack.c.l.b16 %v758
  %v2491 = vunpack.c.l.b16 %v759
  %v2492 = vunpack.c.l.b16 %v760
  %v2493 = vunpack.c.l.b16 %v761
  %v2494 = vunpack.c.l.b16 %v762
  %v2495 = vunpack.c.l.b16 %v763
  %v2496 = vunpack.c.l.b16 %v764
  %v2497 = vunpack.c.l.b16 %v765
  %v2498 = vunpack.c.l.b16 %v766
  %v2499 = vunpack.c.l.b16 %v767
  %v2500 = vunpack.c.l.b16 %v768
  %v2501 = vunpack.c.l.b16 %v769
  %v2502 = vunpack.c.l.b16 %v770
  %v2503 = vunpack.c.l.b16 %v771
  %v2504 = vunpack.c.l.b16 %v772
  %v2505 = vunpack.c.l.b16 %v773
  %v2506 = vunpack.c.l.b16 %v774
  %v2507 = vunpack.c.l.b16 %v775
  %v2508 = vunpack.c.l.b16 %v776
  %v2509 = vunpack.c.l.b16 %v777
  %v2510 = vunpack.c.l.b16 %v778
  %v2511 = vunpack.c.l.b16 %v779
  %v2512 = vunpack.c.l.b16 %v780
  %v2513 = vunpack.c.l.b16 %v781
  %v2514 = vunpack.c.l.b16 %v782
  %v2515 = vunpack.c.l.b16 %v783
  %v2516 = vunpack.c.l.b16 %v784
  %v2517 = vunpack.c.l.b16 %v785
  %v2518 = vunpack.c.l.b16 %v786
  %v2519 = vunpack.c.l.b16 %v787
  %v2520 = vunpack.c.l.b16 %v788
  %v2521 = vunpack.c.l.b16 %v789
  %v2522 = vunpack.c.l.b16 %v790
  %v2523 = vunpack.c.l.b16 %v791
  %v2524 = vunpack.c.l.b16 %v792
  %v2525 = vunpack.c.l.b16 %v793
  %v2526 = vunpack.c.l.b16 %v794
  %v2527 = vunpack.c.l.b16 %v795
  %v2528 = vunpack.c.l.b16 %v796
  %v2529 = vunpack.c.l.b16 %v797
  %v2530 = vunpack.c.l.b16 %v798
  %v2531 = vunpack.c.l.b16 %v799
  %v2532 = vunpack.c.l.b16 %v800
  %v2533 = vunpack.c.l.b16 %v801
  %v2534 = vunpack.c.l.b16 %v802
  %v2535 = vunpack.c.l.b16 %v803
  %v2536 = vunpack.c.l.b16 %v804
  %v2537 = vunpack.c.l.b16 %v805
  %v2538 = vunpack.c.l.b16 %v806
  %v2539 = vunpack.c.l.b16 %v807
  %v2540 = vunpack.c.l.b16 %v808
  %v2541 = vunpack.c.l.b16 %v809
  %v2542 = vunpack.c.l.b16 %v810
  %v2543 = vunpack.c.l.b16 %v811
  %v2544 = vunpack.c.l.b16 %v812
  %v2545 = vunpack.c.l.b16 %v813
  %v2546 = vunpack.c.l.b16 %v814
  %v2547 = vunpack.c.l.b16 %v815
  %v2548 = vunpack.c.l.b16 %v816
  %v2549 = vunpack.c.l.b16 %v817
  %v2550 = vunpack.c.l.b16 %v818
  %v2551 = vunpack.c.l.b16 %v819
  %v2552 = vunpack.c.l.b16 %v820
  %v2553 = vunpack.c.l.b16 %v821
  %v2554 = vunpack.c.l.b16 %v822
  %v2555 = vunpack.c.l.b16 %v823
  %v2556 = vunpack.c.l.b16 %v824
  %v2557 = vunpack.c.l.b16 %v825
  %v2558 = vunpack.c.l.b16 %v826
  %v2559 = vunpack.c.l.b16 %v827
  %v2560 = vunpack.c.l.b16 %v828
  %v2561 = vunpack.c.l.b16 %v829
  %v2562 = vunpack.c.l.b16 %v830
  %v2563 = vunpack.c.l.b16 %v831
  %v2564 = vunpack.c.l.b16 %v832
  %v2565 = vunpack.c.l.b16 %v833
  %v2566 = vunpack.c.l.b16 %v834
  %v2567 = vunpack.c.l.b16 %v835
  %v2568 = vunpack.c.l.b16 %v836
  %v2569 = vunpack.c.l.b16 %v837
  %v2570 = vunpack.c.l.b16 %v838
  %v2571 = vunpack.c.l.b16 %v839
  %v2572 = vunpack.c.l.b16 %v840
  %v2573 = vunpack.c.l.b16 %v841
  %v2574 = vunpack.c.l.b16 %v842
  %v2575 = vunpack.c.l.b16 %v843
  %v2576 = vunpack.c.l.b16 %v844
  %v2577 = vunpack.c.l.b16 %v845
  %v2578 = vunpack.c.l.b16 %v846
  %v2579 = vunpack.c.l.b16 %v847
  %v2580 = vunpack.c.l.b16 %v848
  %v2581 = vunpack.c.l.b16 %v849
  %v2582 = vunpack.c.l.b16 %v850
  %v2583 = vunpack.c.l.b16 %v851
  %v2584 = vunpack.c.l.b16 %v852
  %v2585 = vunpack.c.l.b16 %v853
  %v2586 = vunpack.c.l.b16 %v854
  %v2587 = vunpack.c.l.b16 %v855
  %v2588 = vunpack.c.l.b16 %v856
  %v2589 = vunpack.c.l.b16 %v857
  %v2590 = vunpack.c.l.b16 %v858
  %v2591 = vunpack.c.l.b16 %v859
  %v2592 = vunpack.c.l.b16 %v860
  %v2593 = vunpack.c.l.b16 %v861
  %v2594 = vunpack.c.l.b16 %v862
  %v2595 = vunpack.c.l.b16 %v863
  %v2596 = vunpack.c.l.b16 %v864
  %v2597 = vunpack.c.l.b16 %v865
  %v2598 = vunpack.c.l.b16 %v866
  %v2599 = vunpack.c.l.b16 %v867
  %v2600 = vunpack.c.l.b16 %v868
  %v2601 = vunpack.c.l.b16 %v869
  %v2602 = vunpack.c.l.b16 %v870
  %v2603 = vunpack.c.l.b16 %v871
  %v2604 = vunpack.c.l.b16 %v872
  %v2605 = vunpack.c.l.b16 %v873
  %v2606 = vunpack.c.l.b16 %v874
  %v2607 = vunpack.c.l.b16 %v875
  %v2608 = vunpack.c.l.b16 %v876
  %v2609 = vunpack.c.l.b16 %v877
  %v2610 = vunpack.c.l.b16 %v878
  %v2611 = vunpack.c.l.b16 %v879
  %v2612 = vunpack.c.l.b16 %v880
  %v2613 = vunpack.c.l.b16 %v881
  %v2614 = vunpack.c.l.b16 %v882
  %v2615 = vunpack.c.l.b16 %v883
  %v2616 = vunpack.c.l.b16 %v884
  %v2617 = vunpack.c.l.b16 %v885
  %v2618 = vunpack.c.l.b16 %v886
  %v2619 = vunpack.c.l.b16 %v887
  %v2620 = vunpack.c.l.b16 %v888
  %v2621 = vunpack.c.l.b16 %v889
  %v2622 = vunpack.c.l.b16 %v890
  %v2623 = vunpack.c.l.b16 %v891
  %v2624 = vunpack.c.l.b16 %v892
  %v2625 = vunpack.c.l.b16 %v893
  %v2626 = vunpack.c.l.b16 %v894
  %v2627 = vunpack.c.l.b16 %v895
  %v2628 = vunpack.c.l.b16 %v896
  %v2629 = vunpack.c.l.b16 %v897
  %v2630 = vunpack.c.l.b16 %v898
  %v2631 = vunpack.c.l.b16 %v899
  %v2632 = vunpack.c.l.b16 %v900
  %v2633 = vunpack.c.l.b16 %v901
  %v2634 = vunpack.c.l.b16 %v902
  %v2635 = vunpack.c.l.b16 %v903
  %v2636 = vunpack.c.l.b16 %v904
  %v2637 = vunpack.c.l.b16 %v905
  %v2638 = vunpack.c.l.b16 %v906
  %v2639 = vunpack.c.l.b16 %v907
  %v2640 = vunpack.c.l.b16 %v908
  %v2641 = vunpack.c.l.b16 %v909
  %v2642 = vunpack.c.l.b16 %v910
  %v2643 = vunpack.c.l.b16 %v911
  %v2644 = vunpack.c.l.b16 %v912
  %v2645 = vunpack.c.l.b16 %v913
  %v2646 = vunpack.c.l.b16 %v914
  %v2647 = vunpack.c.l.b16 %v915
  %v2648 = vunpack.c.l.b16 %v916
  %v2649 = vunpack.c.l.b16 %v917
  %v2650 = vunpack.c.l.b16 %v918
  %v2651 = vunpack.c.l.b16 %v919
  %v2652 = vunpack.c.l.b16 %v920
  %v2653 = vunpack.c.l.b16 %v921
  %v2654 = vunpack.c.l.b16 %v922
  %v2655 = vunpack.c.l.b16 %v923
  %v2656 = vunpack.c.l.b16 %v924
  %v2657 = vunpack.c.l.b16 %v925
  %v2658 = vunpack.c.l.b16 %v926
  %v2659 = vunpack.c.l.b16 %v927
  %v2660 = vunpack.c.l.b16 %v928
  %v2661 = vunpack.c.l.b16 %v929
  %v2662 = vunpack.c.l.b16 %v930
  %v2663 = vunpack.c.l.b16 %v931
  %v2664 = vunpack.c.l.b16 %v932
  %v2665 = vunpack.c.l.b16 %v933
  %v2666 = vunpack.c.l.b16 %v934
  %v2667 = vunpack.c.l.b16 %v935
  %v2668 = vunpack.c.l.b16 %v936
  %v2669 = vunpack.c.l.b16 %v937
  %v2670 = vunpack.c.l.b16 %v938
  %v2671 = vunpack.c.l.b16 %v939
  %v2672 = vunpack.c.l.b16 %v940
  %v2673 = vunpack.c.l.b16 %v941
  %v2674 = vunpack.c.l.b16 %v942
  %v2675 = vunpack.c.l.b16 %v943
  %v2676 = vunpack.c.l.b16 %v944
  %v2677 = vunpack.c.l.b16 %v945
  %v2678 = vunpack.c.l.b16 %v946
  %v2679 = vunpack.c.l.b16 %v947
  %v2680 = vunpack.c.l.b16 %v948
  %v2681 = vunpack.c.l.b16 %v949
  %v2682 = vunpack.c.l.b16 %v950
  %v2683 = vunpack.c.l.b16 %v951
  %v2684 = vunpack.c.l.b16 %v952
  %v2685 = vunpack.c.l.b16 %v953
  %v2686 = vunpack.c.l.b16 %v954
  %v2687 = vunpack.c.l.b16 %v955
  %v2688 = vunpack.c.l.b16 %v956
  %v2689 = vunpack.c.l.b16 %v957
  %v2690 = vunpack.c.l.b16 %v958
  %v2691 = vunpack.c.l.b16 %v959
  %v2692 = vunpack.c.l.b16 %v960
  %v2693 = vunpack.c.l.b16 %v961
  %v2694 = vunpack.c.l.b16 %v962
  %v2695 = vunpack.c.l.b16 %v963
  %v2696 = vunpack.c.l.b16 %v964
  %v2697 = vunpack.c.l.b16 %v965
  %v2698 = vunpack.c.l.b16 %v966
  %v2699 = vunpack.c.l.b16 %v967
  %v2700 = vunpack.c.l.b16 %v968
  %v2701 = vunpack.c.l.b16 %v969
  %v2702 = vunpack.c.l.b16 %v970
  %v2703 = vunpack.c.l.b16 %v971
  %v2704 = vunpack.c.l.b16 %v972
  %v2705 = vunpack.c.l.b16 %v973
  %v2706 = vunpack.c.l.b16 %v974
  %v2707 = vunpack.c.l.b16 %v975
  %v2708 = vunpack.c.l.b16 %v976
  %v2709 = vunpack.c.l.b16 %v977
  %v2710 = vunpack.c.l.b16 %v978
  %v2711 = vunpack.c.l.b16 %v979
  %v2712 = vunpack.c.l.b16 %v980
  %v2713 = vunpack.c.l.b16 %v981
  %v2714 = vunpack.c.l.b16 %v982
  %v2715 = vunpack.c.l.b16 %v983
  %v2716 = vunpack.c.l.b16 %v984
  %v2717 = vunpack.c.l.b16 %v985
  %v2718 = vunpack.c.l.b16 %v986
  %v2719 = vunpack.c.l.b16 %v987
  %v2720 = vunpack.c.l.b16 %v988
  %v2721 = vunpack.c.l.b16 %v989
  %v2722 = vunpack.c.l.b16 %v990
  %v2723 = vunpack.c.l.b16 %v991
  %v2724 = vunpack.c.l.b16 %v992
  %v2725 = vunpack.c.l.b16 %v993
  %v2726 = vunpack.c.l.b16 %v994
  %v2727 = vunpack.c.l.b16 %v995
  %v2728 = vunpack.c.l.b16 %v996
  %v2729 = vunpack.c.l.b16 %v997
  %v2730 = vunpack.c.l.b16 %v998
  %v2731 = vunpack.c.l.b16 %v999
  %v2732 = vunpack.c.l.b16 %v1000
  %v2733 = vunpack.c.l.b16 %v1001
  %v2734 = vunpack.c.l.b16 %v1002
  %v2735 = vunpack.c.l.b16 %v1003
  %v2736 = vunpack.c.l.b16 %v1004
  %v2737 = vunpack.c.l.b16 %v1005
  %v2738 = vunpack.c.l.b16 %v1006
  %v2739 = vunpack.c.l.b16 %v1007
  %v2740 = vunpack.c.l.b16 %v1008
  %v2741 = vunpack.c.l.b16 %v1009
  %v2742 = vpack.c.b16 %v1879, %v1878
  %v2743 = vpack.c.b16 %v1881, %v1880
  %v2744 = vpack.c.b16 %v1883, %v1882
  %v2745 = vpack.c.b16 %v1885, %v1884
  %v2746 = vpack.c.b16 %v1887, %v1886
  %v2747 = vpack.c.b16 %v1889, %v1888
  %v2748 = vpack.c.b16 %v1891, %v1890
  %v2749 = vpack.c.b16 %v1893, %v1892
  %v2750 = vpack.c.b16 %v1895, %v1894
  %v2751 = vpack.c.b16 %v1897, %v1896
  %v2752 = vpack.c.b16 %v1899, %v1898
  %v2753 = vpack.c.b16 %v1901, %v1900
  %v2754 = vpack.c.b16 %v1903, %v1902
  %v2755 = vpack.c.b16 %v1905, %v1904
  %v2756 = vpack.c.b16 %v1907, %v1906
  %v2757 = vpack.c.b16 %v1909, %v1908
  %v2758 = vpack.c.b16 %v1911, %v1910
  %v2759 = vpack.c.b16 %v1913, %v1912
  %v2760 = vpack.c.b16 %v1915, %v1914
  %v2761 = vpack.c.b16 %v1917, %v1916
  %v2762 = vpack.c.b16 %v1919, %v1918
  %v2763 = vpack.c.b16 %v1921, %v1920
  %v2764 = vpack.c.b16 %v1923, %v1922
  %v2765 = vpack.c.b16 %v1925, %v1924
  %v2766 = vpack.c.b16 %v1927, %v1926
  %v2767 = vpack.c.b16 %v1929, %v1928
  %v2768 = vpack.c.b16 %v1931, %v1930
  %v2769 = vpack.c.b16 %v1933, %v1932
  %v2770 = vpack.c.b16 %v1935, %v1934
  %v2771 = vpack.c.b16 %v1937, %v1936
  %v2772 = vpack.c.b16 %v1939, %v1938
  %v2773 = vpack.c.b16 %v1941, %v1940
  %v2774 = vpack.c.b16 %v1943, %v1942
  %v2775 = vpack.c.b16 %v1945, %v1944
  %v2776 = vpack.c.b16 %v1947, %v1946
  %v2777 = vpack.c.b16 %v1949, %v1948
  %v2778 = vpack.c.b16 %v1951, %v1950
  %v2779 = vpack.c.b16 %v1953, %v1952
  %v2780 = vpack.c.b16 %v1955, %v1954
  %v2781 = vpack.c.b16 %v1957, %v1956
  %v2782 = vpack.c.b16 %v1959, %v1958
  %v2783 = vpack.c.b16 %v1961, %v1960
  %v2784 = vpack.c.b16 %v1963, %v1962
  %v2785 = vpack.c.b16 %v1965, %v1964
  %v2786 = vpack.c.b16 %v1967, %v1966
  %v2787 = vpack.c.b16 %v1969, %v1968
  %v2788 = vpack.c.b16 %v1971, %v1970
  %v2789 = vpack.c.b16 %v1973, %v1972
  %v2790 = vpack.c.b16 %v1975, %v1974
  %v2791 = vpack.c.b16 %v1977, %v1976
  %v2792 = vpack.c.b16 %v1979, %v1978
  %v2793 = vpack.c.b16 %v1981, %v1980
  %v2794 = vpack.c.b16 %v1983, %v1982
  %v2795 = vpack.c.b16 %v1985, %v1984
  %v2796 = vpack.c.b16 %v1987, %v1986
  %v2797 = vpack.c.b16 %v1989, %v1988
  %v2798 = vpack.c.b16 %v1991, %v1990
  %v2799 = vpack.c.b16 %v1993, %v1992
  %v2800 = vpack.c.b16 %v1995, %v1994
  %v2801 = vpack.c.b16 %v1997, %v1996
  %v2802 = vpack.c.b16 %v1999, %v1998
  %v2803 = vpack.c.b16 %v2001, %v2000
  %v2804 = vpack.c.b16 %v2003, %v2002
  %v2805 = vpack.c.b16 %v2005, %v2004
  %v2806 = vpack.c.b16 %v2007, %v2006
  %v2807 = vpack.c.b16 %v2009, %v2008
  %v2808 = vpack.c.b16 %v2011, %v2010
  %v2809 = vpack.c.b16 %v2013, %v2012
  %v2810 = vpack.c.b16 %v2015, %v2014
  %v2811 = vpack.c.b16 %v2017, %v2016
  %v2812 = vpack.c.b16 %v2019, %v2018
  %v2813 = vpack.c.b16 %v2021, %v2020
  %v2814 = vpack.c.b16 %v2023, %v2022
  %v2815 = vpack.c.b16 %v2025, %v2024
  %v2816 = vpack.c.b16 %v2027, %v2026
  %v2817 = vpack.c.b16 %v2029, %v2028
  %v2818 = vpack.c.b16 %v2031, %v2030
  %v2819 = vpack.c.b16 %v2033, %v2032
  %v2820 = vpack.c.b16 %v2035, %v2034
  %v2821 = vpack.c.b16 %v2037, %v2036
  %v2822 = vpack.c.b16 %v2039, %v2038
  %v2823 = vpack.c.b16 %v2041, %v2040
  %v2824 = vpack.c.b16 %v2043, %v2042
  %v2825 = vpack.c.b16 %v2045, %v2044
  %v2826 = vpack.c.b16 %v2047, %v2046
  %v2827 = vpack.c.b16 %v2049, %v2048
  %v2828 = vpack.c.b16 %v2051, %v2050
  %v2829 = vpack.c.b16 %v2053, %v2052
  %v2830 = vpack.c.b16 %v2055, %v2054
  %v2831 = vpack.c.b16 %v2057, %v2056
  %v2832 = vpack.c.b16 %v2059, %v2058
  %v2833 = vpack.c.b16 %v2061, %v2060
  %v2834 = vpack.c.b16 %v2063, %v2062
  %v2835 = vpack.c.b16 %v2065, %v2064
  %v2836 = vpack.c.b16 %v2067, %v2066
  %v2837 = vpack.c.b16 %v2069, %v2068
  %v2838 = vpack.c.b16 %v2071, %v2070
  %v2839 = vpack.c.b16 %v2073, %v2072
  %v2840 = vpack.c.b16 %v2075, %v2074
  %v2841 = vpack.c.b16 %v2077, %v2076
  %v2842 = vpack.c.b16 %v2079, %v2078
  %v2843 = vpack.c.b16 %v2081, %v2080
  %v2844 = vpack.c.b16 %v2083, %v2082
  %v2845 = vpack.c.b16 %v2085, %v2084
  %v2846 = vpack.c.b16 %v2087, %v2086
  %v2847 = vpack.c.b16 %v2089, %v2088
  %v2848 = vpack.c.b16 %v2091, %v2090
  %v2849 = vpack.c.b16 %v2093, %v2092
  %v2850 = vpack.c.b16 %v2095, %v2094
  %v2851 = vpack.c.b16 %v2097, %v2096
  %v2852 = vpack.c.b16 %v2099, %v2098
  %v2853 = vpack.c.b16 %v2101, %v2100
  %v2854 = vpack.c.b16 %v2103, %v2102
  %v2855 = vpack.c.b16 %v2105, %v2104
  %v2856 = vpack.c.b16 %v2107, %v2106
  %v2857 = vpack.c.b16 %v2109, %v2108
  %v2858 = vpack.c.b16 %v2111, %v2110
  %v2859 = vpack.c.b16 %v2113, %v2112
  %v2860 = vpack.c.b16 %v2115, %v2114
  %v2861 = vpack.c.b16 %v2117, %v2116
  %v2862 = vpack.c.b16 %v2119, %v2118
  %v2863 = vpack.c.b16 %v2121, %v2120
  %v2864 = vpack.c.b16 %v2123, %v2122
  %v2865 = vpack.c.b16 %v2125, %v2124
  %v2866 = vpack.c.b16 %v2127, %v2126
  %v2867 = vpack.c.b16 %v2129, %v2128
  %v2868 = vpack.c.b16 %v2131, %v2130
  %v2869 = vpack.c.b16 %v2133, %v2132
  %v2870 = vpack.c.b16 %v2135, %v2134
  %v2871 = vpack.c.b16 %v2137, %v2136
  %v2872 = vpack.c.b16 %v2139, %v2138
  %v2873 = vpack.c.b16 %v2141, %v2140
  %v2874 = vpack.c.b16 %v2143, %v2142
  %v2875 = vpack.c.b16 %v2145, %v2144
  %v2876 = vpack.c.b16 %v2147, %v2146
  %v2877 = vpack.c.b16 %v2149, %v2148
  %v2878 = vpack.c.b16 %v2151, %v2150
  %v2879 = vpack.c.b16 %v2153, %v2152
  %v2880 = vpack.c.b16 %v2155, %v2154
  %v2881 = vpack.c.b16 %v2157, %v2156
  %v2882 = vpack.c.b16 %v2159, %v2158
  %v2883 = vpack.c.b16 %v2161, %v2160
  %v2884 = vpack.c.b16 %v2163, %v2162
  %v2885 = vpack.c.b16 %v2165, %v2164
  %v2886 = vpack.c.b16 %v2167, %v2166
  %v2887 = vpack.c.b16 %v2169, %v2168
  %v2888 = vpack.c.b16 %v2171, %v2170
  %v2889 = vpack.c.b16 %v2173, %v2172
  %v2890 = vpack.c.b16 %v2175, %v2174
  %v2891 = vpack.c.b16 %v2177, %v2176
  %v2892 = vpack.c.b16 %v2179, %v2178
  %v2893 = vpack.c.b16 %v2181, %v2180
  %v2894 = vpack.c.b16 %v2183, %v2182
  %v2895 = vpack.c.b16 %v2185, %v2184
  %v2896 = vpack.c.b16 %v2187, %v2186
  %v2897 = vpack.c.b16 %v2189, %v2188
  %v2898 = vpack.c.b16 %v2191, %v2190
  %v2899 = vpack.c.b16 %v2193, %v2192
  %v2900 = vpack.c.b16 %v2195, %v2194
  %v2901 = vpack.c.b16 %v2197, %v2196
  %v2902 = vpack.c.b16 %v2199, %v2198
  %v2903 = vpack.c.b16 %v2201, %v2200
  %v2904 = vpack.c.b16 %v2203, %v2202
  %v2905 = vpack.c.b16 %v2205, %v2204
  %v2906 = vpack.c.b16 %v2207, %v2206
  %v2907 = vpack.c.b16 %v2209, %v2208
  %v2908 = vpack.c.b16 %v2211, %v2210
  %v2909 = vpack.c.b16 %v2213, %v2212
  %v2910 = vpack.c.b16 %v2215, %v2214
  %v2911 = vpack.c.b16 %v2217, %v2216
  %v2912 = vpack.c.b16 %v2219, %v2218
  %v2913 = vpack.c.b16 %v2221, %v2220
  %v2914 = vpack.c.b16 %v2223, %v2222
  %v2915 = vpack.c.b16 %v2225, %v2224
  %v2916 = vpack.c.b16 %v2227, %v2226
  %v2917 = vpack.c.b16 %v2229, %v2228
  %v2918 = vpack.c.b16 %v2231, %v2230
  %v2919 = vpack.c.b16 %v2233, %v2232
  %v2920 = vpack.c.b16 %v2235, %v2234
  %v2921 = vpack.c.b16 %v2237, %v2236
  %v2922 = vpack.c.b16 %v2239, %v2238
  %v2923 = vpack.c.b16 %v2241, %v2240
  %v2924 = vpack.c.b16 %v2243, %v2242
  %v2925 = vpack.c.b16 %v2245, %v2244
  %v2926 = vpack.c.b16 %v2247, %v2246
  %v2927 = vpack.c.b16 %v2249, %v2248
  %v2928 = vpack.c.b16 %v2251, %v2250
  %v2929 = vpack.c.b16 %v2253, %v2252
  %v2930 = vpack.c.b16 %v2255, %v2254
  %v2931 = vpack.c.b16 %v2257, %v2256
  %v2932 = vpack.c.b16 %v2259, %v2258
  %v2933 = vpack.c.b16 %v2261, %v2260
  %v2934 = vpack.c.b16 %v2263, %v2262
  %v2935 = vpack.c.b16 %v2265, %v2264
  %v2936 = vpack.c.b16 %v2267, %v2266
  %v2937 = vpack.c.b16 %v2269, %v2268
  %v2938 = vpack.c.b16 %v2271, %v2270
  %v2939 = vpack.c.b16 %v2273, %v2272
  %v2940 = vpack.c.b16 %v2275, %v2274
  %v2941 = vpack.c.b16 %v2277, %v2276
  %v2942 = vpack.c.b16 %v2279, %v2278
  %v2943 = vpack.c.b16 %v2281, %v2280
  %v2944 = vpack.c.b16 %v2283, %v2282
  %v2945 = vpack.c.b16 %v2285, %v2284
  %v2946 = vpack.c.b16 %v2287, %v2286
  %v2947 = vpack.c.b16 %v2289, %v2288
  %v2948 = vpack.c.b16 %v2291, %v2290
  %v2949 = vpack.c.b16 %v2293, %v2292
  %v2950 = vpack.c.b16 %v2295, %v2294
  %v2951 = vpack.c.b16 %v2297, %v2296
  %v2952 = vpack.c.b16 %v2299, %v2298
  %v2953 = vpack.c.b16 %v2301, %v2300
  %v2954 = vpack.c.b16 %v2303, %v2302
  %v2955 = vpack.c.b16 %v2305, %v2304
  %v2956 = vpack.c.b16 %v2307, %v2306
  %v2957 = vpack.c.b16 %v2309, %v2308
  %v2958 = vpack.c.b16 %v2311, %v2310
  %v2959 = vpack.c.b16 %v2313, %v2312
  %v2960 = vpack.c.b16 %v2315, %v2314
  %v2961 = vpack.c.b16 %v2317, %v2316
  %v2962 = vpack.c.b16 %v2319, %v2318
  %v2963 = vpack.c.b16 %v2321, %v2320
  %v2964 = vpack.c.b16 %v2323, %v2322
  %v2965 = vpack.c.b16 %v2325, %v2324
  %v2966 = vpack.c.b16 %v2327, %v2326
  %v2967 = vpack.c.b16 %v2329, %v2328
  %v2968 = vpack.c.b16 %v2331, %v2330
  %v2969 = vpack.c.b16 %v2333, %v2332
  %v2970 = vpack.c.b16 %v2335, %v2334
  %v2971 = vpack.c.b16 %v2337, %v2336
  %v2972 = vpack.c.b16 %v2339, %v2338
  %v2973 = vpack.c.b16 %v2341, %v2340
  %v2974 = vpack.c.b16 %v2343, %v2342
  %v2975 = vpack.c.b16 %v2345, %v2344
  %v2976 = vpack.c.b16 %v2347, %v2346
  %v2977 = vpack.c.b16 %v2349, %v2348
  %v2978 = vpack.c.b16 %v2351, %v2350
  %v2979 = vpack.c.b16 %v2353, %v2352
  %v2980 = vpack.c.b16 %v2355, %v2354
  %v2981 = vpack.c.b16 %v2357, %v2356
  %v2982 = vpack.c.b16 %v2359, %v2358
  %v2983 = vpack.c.b16 %v2361, %v2360
  %v2984 = vpack.c.b16 %v2363, %v2362
  %v2985 = vpack.c.b16 %v2365, %v2364
  %v2986 = vpack.c.b16 %v2367, %v2366
  %v2987 = vpack.c.b16 %v2369, %v2368
  %v2988 = vpack.c.b16 %v2371, %v2370
  %v2989 = vpack.c.b16 %v2373, %v2372
  %v2990 = vpack.c.b16 %v2375, %v2374
  %v2991 = vpack.c.b16 %v2377, %v2376
  %v2992 = vpack.c.b16 %v2379, %v2378
  %v2993 = vpack.c.b16 %v2381, %v2380
  %v2994 = vpack.c.b16 %v2383, %v2382
  %v2995 = vpack.c.b16 %v2385, %v2384
  %v2996 = vpack.c.b16 %v2387, %v2386
  %v2997 = vpack.c.b16 %v2389, %v2388
  %v2998 = vpack.c.b16 %v2391, %v2390
  %v2999 = vpack.c.b16 %v2393, %v2392
  %v3000 = vpack.c.b16 %v2395, %v2394
  %v3001 = vpack.c.b16 %v2397, %v2396
  %v3002 = vpack.c.b16 %v2399, %v2398
  %v3003 = vpack.c.b16 %v2401, %v2400
  %v3004 = vpack.c.b16 %v2403, %v2402
  %v3005 = vpack.c.b16 %v2405, %v2404
  %v3006 = vpack.c.b16 %v2407, %v2406
  %v3007 = vpack.c.b16 %v2409, %v2408
  %v3008 = vpack.c.b16 %v2411, %v2410
  %v3009 = vpack.c.b16 %v2413, %v2412
  %v3010 = vpack.c.b16 %v2415, %v2414
  %v3011 = vpack.c.b16 %v2417, %v2416
  %v3012 = vpack.c.b16 %v2419, %v2418
  %v3013 = vpack.c.b16 %v2421, %v2420
  %v3014 = vpack.c.b16 %v2423, %v2422
  %v3015 = vpack.c.b16 %v2425, %v2424
  %v3016 = vpack.c.b16 %v2427, %v2426
  %v3017 = vpack.c.b16 %v2429, %v2428
  %v3018 = vpack.c.b16 %v2431, %v2430
  %v3019 = vpack.c.b16 %v2433, %v2432
  %v3020 = vpack.c.b16 %v2435, %v2434
  %v3021 = vpack.c.b16 %v2437, %v2436
  %v3022 = vpack.c.b16 %v2439, %v2438
  %v3023 = vpack.c.b16 %v2441, %v2440
  %v3024 = vpack.c.b16 %v2443, %v2442
  %v3025 = vpack.c.b16 %v2445, %v2444
  %v3026 = vpack.c.b16 %v2447, %v2446
  %v3027 = vpack.c.b16 %v2449, %v2448
  %v3028 = vpack.c.b16 %v2451, %v2450
  %v3029 = vpack.c.b16 %v2453, %v2452
  %v3030 = vpack.c.b16 %v2455, %v2454
  %v3031 = vpack.c.b16 %v2457, %v2456
  %v3032 = vpack.c.b16 %v2459, %v2458
  %v3033 = vpack.c.b16 %v2461, %v2460
  %v3034 = vpack.c.b16 %v2463, %v2462
  %v3035 = vpack.c.b16 %v2465, %v2464
  %v3036 = vpack.c.b16 %v2467, %v2466
  %v3037 = vpack.c.b16 %v2469, %v2468
  %v3038 = vpack.c.b16 %v2471, %v2470
  %v3039 = vpack.c.b16 %v2473, %v2472
  %v3040 = vpack.c.b16 %v2475, %v2474
  %v3041 = vpack.c.b16 %v2477, %v2476
  %v3042 = vpack.c.b16 %v2479, %v2478
  %v3043 = vpack.c.b16 %v2481, %v2480
  %v3044 = vpack.c.b16 %v2483, %v2482
  %v3045 = vpack.c.b16 %v2485, %v2484
  %v3046 = vpack.c.b16 %v2487, %v2486
  %v3047 = vpack.c.b16 %v2489, %v2488
  %v3048 = vpack.c.b16 %v2491, %v2490
  %v3049 = vpack.c.b16 %v2493, %v2492
  %v3050 = vpack.c.b16 %v2495, %v2494
  %v3051 = vpack.c.b16 %v2497, %v2496
  %v3052 = vpack.c.b16 %v2499, %v2498
  %v3053 = vpack.c.b16 %v2501, %v2500
  %v3054 = vpack.c.b16 %v2503, %v2502
  %v3055 = vpack.c.b16 %v2505, %v2504
  %v3056 = vpack.c.b16 %v2507, %v2506
  %v3057 = vpack.c.b16 %v2509, %v2508
  %v3058 = vpack.c.b16 %v2511, %v2510
  %v3059 = vpack.c.b16 %v2513, %v2512
  %v3060 = vpack.c.b16 %v2515, %v2514
  %v3061 = vpack.c.b16 %v2517, %v2516
  %v3062 = vpack.c.b16 %v2519, %v2518
  %v3063 = vpack.c.b16 %v2521, %v2520
  %v3064 = vpack.c.b16 %v2523, %v2522
  %v3065 = vpack.c.b16 %v2525, %v2524
  %v3066 = vpack.c.b16 %v2527, %v2526
  %v3067 = vpack.c.b16 %v2529, %v2528
  %v3068 = vpack.c.b16 %v2531, %v2530
  %v3069 = vpack.c.b16 %v2533, %v2532
  %v3070 = vpack.c.b16 %v2535, %v2534
  %v3071 = vpack.c.b16 %v2537, %v2536
  %v3072 = vpack.c.b16 %v2539, %v2538
  %v3073 = vpack.c.b16 %v2541, %v2540
  %v3074 = vpack.c.b16 %v2543, %v2542
  %v3075 = vpack.c.b16 %v2545, %v2544
  %v3076 = vpack.c.b16 %v2547, %v2546
  %v3077 = vpack.c.b16 %v2549, %v2548
  %v3078 = vpack.c.b16 %v2551, %v2550
  %v3079 = vpack.c.b16 %v2553, %v2552
  %v3080 = vpack.c.b16 %v2555, %v2554
  %v3081 = vpack.c.b16 %v2557, %v2556
  %v3082 = vpack.c.b16 %v2559, %v2558
  %v3083 = vpack.c.b16 %v2561, %v2560
  %v3084 = vpack.c.b16 %v2563, %v2562
  %v3085 = vpack.c.b16 %v2565, %v2564
  %v3086 = vpack.c.b16 %v2567, %v2566
  %v3087 = vpack.c.b16 %v2569, %v2568
  %v3088 = vpack.c.b16 %v2571, %v2570
  %v3089 = vpack.c.b16 %v2573, %v2572
  %v3090 = vpack.c.b16 %v2575, %v2574
  %v3091 = vpack.c.b16 %v2577, %v2576
  %v3092 = vpack.c.b16 %v2579, %v2578
  %v3093 = vpack.c.b16 %v2581, %v2580
  %v3094 = vpack.c.b16 %v2583, %v2582
  %v3095 = vpack.c.b16 %v2585, %v2584
  %v3096 = vpack.c.b16 %v2587, %v2586
  %v3097 = vpack.c.b16 %v2589, %v2588
  %v3098 = vpack.c.b16 %v2591, %v2590
  %v3099 = vpack.c.b16 %v2593, %v2592
  %v3100 = vpack.c.b16 %v2595, %v2594
  %v3101 = vpack.c.b16 %v2597, %v2596
  %v3102 = vpack.c.b16 %v2599, %v2598
  %v3103 = vpack.c.b16 %v2601, %v2600
  %v3104 = vpack.c.b16 %v2603, %v2602
  %v3105 = vpack.c.b16 %v2605, %v2604
  %v3106 = vpack.c.b16 %v2607, %v2606
  %v3107 = vpack.c.b16 %v2609, %v2608
  %v3108 = vpack.c.b16 %v2611, %v2610
  %v3109 = vpack.c.b16 %v2613, %v2612
  %v3110 = vpack.c.b16 %v2615, %v2614
  %v3111 = vpack.c.b16 %v2617, %v2616
  %v3112 = vpack.c.b16 %v2619, %v2618
  %v3113 = vpack.c.b16 %v2621, %v2620
  %v3114 = vpack.c.b16 %v2623, %v2622
  %v3115 = vpack.c.b16 %v2625, %v2624
  %v3116 = vpack.c.b16 %v2627, %v2626
  %v3117 = vpack.c.b16 %v2629, %v2628
  %v3118 = vpack.c.b16 %v2631, %v2630
  %v3119 = vpack.c.b16 %v2633, %v2632
  %v3120 = vpack.c.b16 %v2635, %v2634
  %v3121 = vpack.c.b16 %v2637, %v2636
  %v3122 = vpack.c.b16 %v2639, %v2638
  %v3123 = vpack.c.b16 %v2641, %v2640
  %v3124 = vpack.c.b16 %v2643, %v2642
  %v3125 = vpack.c.b16 %v2645, %v2644
  %v3126 = vpack.c.b16 %v2647, %v2646
  %v3127 = vpack.c.b16 %v2649, %v2648
  %v3128 = vpack.c.b16 %v2651, %v2650
  %v3129 = vpack.c.b16 %v2653, %v2652
  %v3130 = vpack.c.b16 %v2655, %v2654
  %v3131 = vpack.c.b16 %v2657, %v2656
  %v3132 = vpack.c.b16 %v2659, %v2658
  %v3133 = vpack.c.b16 %v2661, %v2660
  %v3134 = vpack.c.b16 %v2663, %v2662
  %v3135 = vpack.c.b16 %v2665, %v2664
  %v3136 = vpack.c.b16 %v2667, %v2666
  %v3137 = vpack.c.b16 %v2669, %v2668
  %v3138 = vpack.c.b16 %v2671, %v2670
  %v3139 = vpack.c.b16 %v2673, %v2672
  %v3140 = vpack.c.b16 %v2675, %v2674
  %v3141 = vpack.c.b16 %v2677, %v2676
  %v3142 = vpack.c.b16 %v2679, %v2678
  %v3143 = vpack.c.b16 %v2681, %v2680
  %v3144 = vpack.c.b16 %v2683, %v2682
  %v3145 = vpack.c.b16 %v2685, %v2684
  %v3146 = vpack.c.b16 %v2687, %v2686
  %v3147 = vpack.c.b16 %v2689, %v2688
  %v3148 = vpack.c.b16 %v2691, %v2690
  %v3149 = vpack.c.b16 %v2693, %v2692
  %v3150 = vpack.c.b16 %v2695, %v2694
  %v3151 = vpack.c.b16 %v2697, %v2696
  %v3152 = vpack.c.b16 %v2699, %v2698
  %v3153 = vpack.c.b16 %v2701, %v2700
  %v3154 = vpack.c.b16 %v2703, %v2702
  %v3155 = vpack.c.b16 %v2705, %v2704
  %v3156 = vpack.c.b16 %v2707, %v2706
  %v3157 = vpack.c.b16 %v2709, %v2708
  %v3158 = vpack.c.b16 %v2711, %v2710
  %v3159 = vpack.c.b16 %v2713, %v2712
  %v3160 = vpack.c.b16 %v2715, %v2714
  %v3161 = vpack.c.b16 %v2717, %v2716
  %v3162 = vpack.c.b16 %v2719, %v2718
  %v3163 = vpack.c.b16 %v2721, %v2720
  %v3164 = vpack.c.b16 %v2723, %v2722
  %v3165 = vpack.c.b16 %v2725, %v2724
  %v3166 = vpack.c.b16 %v2727, %v2726
  %v3167 = vpack.c.b16 %v2729, %v2728
  %v3168 = vpack.c.b16 %v2731, %v2730
  %v3169 = vpack.c.b16 %v2733, %v2732
  %v3170 = vpack.c.b16 %v2735, %v2734
  %v3171 = vpack.c.b16 %v2737, %v2736
  %v3172 = vpack.c.b16 %v2739, %v2738
  %v3173 = vpack.c.b16 %v2741, %v2740
  %3606 = vmatpush.bf16.msra.mxu0 %v2749
  %3607 = vmatpush.bf16.msra.mxu0 %v2748
  %3608 = vmatpush.bf16.msra.mxu0 %v2747
  %3609 = vmatpush.bf16.msra.mxu0 %v2746
  %3610 = vmatpush.bf16.msra.mxu0 %v2745
  %3611 = vmatpush.bf16.msra.mxu0 %v2744
  %3612 = vmatpush.bf16.msra.mxu0 %v2743
  %3613 = vmatpush.bf16.msra.mxu0 %v2742
  %3614 = vmatmul.bf16.gmra.mxu0 %v92
  %v3615 = vpop.f32.mrf.mxu0
  %v3616 = vadd.f32 %v1012, %v3615
  %v3617 = vpop.f32.mrf.mxu0
  %3618 = vdwg.mxu0
  %3619 = vmatpush.bf16.msra.mxu0 %v2757
  %3620 = vmatpush.bf16.msra.mxu0 %v2756
  %3621 = vmatpush.bf16.msra.mxu0 %v2755
  %3622 = vmatpush.bf16.msra.mxu0 %v2754
  %3623 = vmatpush.bf16.msra.mxu0 %v2753
  %3624 = vmatpush.bf16.msra.mxu0 %v2752
  %3625 = vmatpush.bf16.msra.mxu0 %v2751
  %3626 = vmatpush.bf16.msra.mxu0 %v2750
  %3627 = vmatmul.bf16.gmra.mxu0 %v93
  %v3628 = vpop.f32.mrf.mxu0
  %v3629 = vadd.f32 %v3616, %v3628
  %v3630 = vpop.f32.mrf.mxu0
  %3631 = vdwg.mxu0
  %3632 = vmatpush.bf16.msra.mxu0 %v2765
  %3633 = vmatpush.bf16.msra.mxu0 %v2764
  %3634 = vmatpush.bf16.msra.mxu0 %v2763
  %3635 = vmatpush.bf16.msra.mxu0 %v2762
  %3636 = vmatpush.bf16.msra.mxu0 %v2761
  %3637 = vmatpush.bf16.msra.mxu0 %v2760
  %3638 = vmatpush.bf16.msra.mxu0 %v2759
  %3639 = vmatpush.bf16.msra.mxu0 %v2758
  %3640 = vmatmul.bf16.gmra.mxu0 %v94
  %v3641 = vpop.f32.mrf.mxu0
  %v3642 = vadd.f32 %v3629, %v3641
  %v3643 = vpop.f32.mrf.mxu0
  %3644 = vdwg.mxu0
  %3645 = vmatpush.bf16.msra.mxu0 %v2773
  %3646 = vmatpush.bf16.msra.mxu0 %v2772
  %3647 = vmatpush.bf16.msra.mxu0 %v2771
  %3648 = vmatpush.bf16.msra.mxu0 %v2770
  %3649 = vmatpush.bf16.msra.mxu0 %v2769
  %3650 = vmatpush.bf16.msra.mxu0 %v2768
  %3651 = vmatpush.bf16.msra.mxu0 %v2767
  %3652 = vmatpush.bf16.msra.mxu0 %v2766
  %3653 = vmatmul.bf16.gmra.mxu0 %v95
  %v3654 = vpop.f32.mrf.mxu0
  %v3655 = vadd.f32 %v3642, %v3654
  %v3656 = vpop.f32.mrf.mxu0
  %3657 = vdwg.mxu0
  %3658 = vmatpush.bf16.msra.mxu0 %v2781
  %3659 = vmatpush.bf16.msra.mxu0 %v2780
  %3660 = vmatpush.bf16.msra.mxu0 %v2779
  %3661 = vmatpush.bf16.msra.mxu0 %v2778
  %3662 = vmatpush.bf16.msra.mxu0 %v2777
  %3663 = vmatpush.bf16.msra.mxu0 %v2776
  %3664 = vmatpush.bf16.msra.mxu0 %v2775
  %3665 = vmatpush.bf16.msra.mxu0 %v2774
  %3666 = vmatmul.bf16.gmra.mxu0 %v96
  %v3667 = vpop.f32.mrf.mxu0
  %v3668 = vadd.f32 %v3655, %v3667
  %v3669 = vpop.f32.mrf.mxu0
  %3670 = vdwg.mxu0
  %3671 = vmatpush.bf16.msra.mxu0 %v2789
  %3672 = vmatpush.bf16.msra.mxu0 %v2788
  %3673 = vmatpush.bf16.msra.mxu0 %v2787
  %3674 = vmatpush.bf16.msra.mxu0 %v2786
  %3675 = vmatpush.bf16.msra.mxu0 %v2785
  %3676 = vmatpush.bf16.msra.mxu0 %v2784
  %3677 = vmatpush.bf16.msra.mxu0 %v2783
  %3678 = vmatpush.bf16.msra.mxu0 %v2782
  %3679 = vmatmul.bf16.gmra.mxu0 %v97
  %v3680 = vpop.f32.mrf.mxu0
  %v3681 = vadd.f32 %v3668, %v3680
  %v3682 = vpop.f32.mrf.mxu0
  %3683 = vdwg.mxu0
  %3684 = vmatpush.bf16.msra.mxu0 %v2797
  %3685 = vmatpush.bf16.msra.mxu0 %v2796
  %3686 = vmatpush.bf16.msra.mxu0 %v2795
  %3687 = vmatpush.bf16.msra.mxu0 %v2794
  %3688 = vmatpush.bf16.msra.mxu0 %v2793
  %3689 = vmatpush.bf16.msra.mxu0 %v2792
  %3690 = vmatpush.bf16.msra.mxu0 %v2791
  %3691 = vmatpush.bf16.msra.mxu0 %v2790
  %3692 = vmatmul.bf16.gmra.mxu0 %v98
  %v3693 = vpop.f32.mrf.mxu0
  %v3694 = vadd.f32 %v3681, %v3693
  %v3695 = vpop.f32.mrf.mxu0
  %3696 = vdwg.mxu0
  %3697 = vmatpush.bf16.msra.mxu0 %v2805
  %3698 = vmatpush.bf16.msra.mxu0 %v2804
  %3699 = vmatpush.bf16.msra.mxu0 %v2803
  %3700 = vmatpush.bf16.msra.mxu0 %v2802
  %3701 = vmatpush.bf16.msra.mxu0 %v2801
  %3702 = vmatpush.bf16.msra.mxu0 %v2800
  %3703 = vmatpush.bf16.msra.mxu0 %v2799
  %3704 = vmatpush.bf16.msra.mxu0 %v2798
  %3705 = vmatmul.bf16.gmra.mxu0 %v99
  %v3706 = vpop.f32.mrf.mxu0
  %v3707 = vadd.f32 %v3694, %v3706
  %v3708 = vpop.f32.mrf.mxu0
  %3709 = vdwg.mxu0
  %3710 = vmatpush.bf16.msra.mxu0 %v2813
  %3711 = vmatpush.bf16.msra.mxu0 %v2812
  %3712 = vmatpush.bf16.msra.mxu0 %v2811
  %3713 = vmatpush.bf16.msra.mxu0 %v2810
  %3714 = vmatpush.bf16.msra.mxu0 %v2809
  %3715 = vmatpush.bf16.msra.mxu0 %v2808
  %3716 = vmatpush.bf16.msra.mxu0 %v2807
  %3717 = vmatpush.bf16.msra.mxu0 %v2806
  %3718 = vmatmul.bf16.gmra.mxu0 %v100
  %v3719 = vpop.f32.mrf.mxu0
  %v3720 = vadd.f32 %v3707, %v3719
  %v3721 = vpop.f32.mrf.mxu0
  %3722 = vdwg.mxu0
  %3723 = vmatpush.bf16.msra.mxu0 %v2821
  %3724 = vmatpush.bf16.msra.mxu0 %v2820
  %3725 = vmatpush.bf16.msra.mxu0 %v2819
  %3726 = vmatpush.bf16.msra.mxu0 %v2818
  %3727 = vmatpush.bf16.msra.mxu0 %v2817
  %3728 = vmatpush.bf16.msra.mxu0 %v2816
  %3729 = vmatpush.bf16.msra.mxu0 %v2815
  %3730 = vmatpush.bf16.msra.mxu0 %v2814
  %3731 = vmatmul.bf16.gmra.mxu0 %v101
  %v3732 = vpop.f32.mrf.mxu0
  %v3733 = vadd.f32 %v3720, %v3732
  %v3734 = vpop.f32.mrf.mxu0
  %3735 = vdwg.mxu0
  %3736 = vmatpush.bf16.msra.mxu0 %v2829
  %3737 = vmatpush.bf16.msra.mxu0 %v2828
  %3738 = vmatpush.bf16.msra.mxu0 %v2827
  %3739 = vmatpush.bf16.msra.mxu0 %v2826
  %3740 = vmatpush.bf16.msra.mxu0 %v2825
  %3741 = vmatpush.bf16.msra.mxu0 %v2824
  %3742 = vmatpush.bf16.msra.mxu0 %v2823
  %3743 = vmatpush.bf16.msra.mxu0 %v2822
  %3744 = vmatmul.bf16.gmra.mxu0 %v102
  %v3745 = vpop.f32.mrf.mxu0
  %v3746 = vadd.f32 %v3733, %v3745
  %v3747 = vpop.f32.mrf.mxu0
  %3748 = vdwg.mxu0
  %3749 = vmatpush.bf16.msra.mxu0 %v2837
  %3750 = vmatpush.bf16.msra.mxu0 %v2836
  %3751 = vmatpush.bf16.msra.mxu0 %v2835
  %3752 = vmatpush.bf16.msra.mxu0 %v2834
  %3753 = vmatpush.bf16.msra.mxu0 %v2833
  %3754 = vmatpush.bf16.msra.mxu0 %v2832
  %3755 = vmatpush.bf16.msra.mxu0 %v2831
  %3756 = vmatpush.bf16.msra.mxu0 %v2830
  %3757 = vmatmul.bf16.gmra.mxu0 %v103
  %v3758 = vpop.f32.mrf.mxu0
  %v3759 = vadd.f32 %v3746, %v3758
  %v3760 = vpop.f32.mrf.mxu0
  %3761 = vdwg.mxu0
  %3762 = vmatpush.bf16.msra.mxu0 %v2845
  %3763 = vmatpush.bf16.msra.mxu0 %v2844
  %3764 = vmatpush.bf16.msra.mxu0 %v2843
  %3765 = vmatpush.bf16.msra.mxu0 %v2842
  %3766 = vmatpush.bf16.msra.mxu0 %v2841
  %3767 = vmatpush.bf16.msra.mxu0 %v2840
  %3768 = vmatpush.bf16.msra.mxu0 %v2839
  %3769 = vmatpush.bf16.msra.mxu0 %v2838
  %3770 = vmatmul.bf16.gmra.mxu0 %v104
  %v3771 = vpop.f32.mrf.mxu0
  %v3772 = vadd.f32 %v3759, %v3771
  %v3773 = vpop.f32.mrf.mxu0
  %3774 = vdwg.mxu0
  %3775 = vmatpush.bf16.msra.mxu0 %v2853
  %3776 = vmatpush.bf16.msra.mxu0 %v2852
  %3777 = vmatpush.bf16.msra.mxu0 %v2851
  %3778 = vmatpush.bf16.msra.mxu0 %v2850
  %3779 = vmatpush.bf16.msra.mxu0 %v2849
  %3780 = vmatpush.bf16.msra.mxu0 %v2848
  %3781 = vmatpush.bf16.msra.mxu0 %v2847
  %3782 = vmatpush.bf16.msra.mxu0 %v2846
  %3783 = vmatmul.bf16.gmra.mxu0 %v105
  %v3784 = vpop.f32.mrf.mxu0
  %v3785 = vadd.f32 %v3772, %v3784
  %v3786 = vpop.f32.mrf.mxu0
  %3787 = vdwg.mxu0
  %3788 = vmatpush.bf16.msra.mxu0 %v2861
  %3789 = vmatpush.bf16.msra.mxu0 %v2860
  %3790 = vmatpush.bf16.msra.mxu0 %v2859
  %3791 = vmatpush.bf16.msra.mxu0 %v2858
  %3792 = vmatpush.bf16.msra.mxu0 %v2857
  %3793 = vmatpush.bf16.msra.mxu0 %v2856
  %3794 = vmatpush.bf16.msra.mxu0 %v2855
  %3795 = vmatpush.bf16.msra.mxu0 %v2854
  %3796 = vmatmul.bf16.gmra.mxu0 %v106
  %v3797 = vpop.f32.mrf.mxu0
  %v3798 = vadd.f32 %v3785, %v3797
  %v3799 = vpop.f32.mrf.mxu0
  %3800 = vdwg.mxu0
  %3801 = vmatpush.bf16.msra.mxu0 %v2869
  %3802 = vmatpush.bf16.msra.mxu0 %v2868
  %3803 = vmatpush.bf16.msra.mxu0 %v2867
  %3804 = vmatpush.bf16.msra.mxu0 %v2866
  %3805 = vmatpush.bf16.msra.mxu0 %v2865
  %3806 = vmatpush.bf16.msra.mxu0 %v2864
  %3807 = vmatpush.bf16.msra.mxu0 %v2863
  %3808 = vmatpush.bf16.msra.mxu0 %v2862
  %3809 = vmatmul.bf16.gmra.mxu0 %v107
  %v3810 = vpop.f32.mrf.mxu0
  %v3811 = vadd.f32 %v3798, %v3810
  %v3812 = vpop.f32.mrf.mxu0
  %3813 = vdwg.mxu0
  %3814 = vmatpush.bf16.msra.mxu0 %v2877
  %3815 = vmatpush.bf16.msra.mxu0 %v2876
  %3816 = vmatpush.bf16.msra.mxu0 %v2875
  %3817 = vmatpush.bf16.msra.mxu0 %v2874
  %3818 = vmatpush.bf16.msra.mxu0 %v2873
  %3819 = vmatpush.bf16.msra.mxu0 %v2872
  %3820 = vmatpush.bf16.msra.mxu0 %v2871
  %3821 = vmatpush.bf16.msra.mxu0 %v2870
  %3822 = vmatmul.bf16.gmra.mxu0 %v108
  %v3823 = vpop.f32.mrf.mxu0
  %v3824 = vadd.f32 %v3811, %v3823
  %v3825 = vpop.f32.mrf.mxu0
  %3826 = vdwg.mxu0
  %3827 = vmatpush.bf16.msra.mxu0 %v2885
  %3828 = vmatpush.bf16.msra.mxu0 %v2884
  %3829 = vmatpush.bf16.msra.mxu0 %v2883
  %3830 = vmatpush.bf16.msra.mxu0 %v2882
  %3831 = vmatpush.bf16.msra.mxu0 %v2881
  %3832 = vmatpush.bf16.msra.mxu0 %v2880
  %3833 = vmatpush.bf16.msra.mxu0 %v2879
  %3834 = vmatpush.bf16.msra.mxu0 %v2878
  %3835 = vmatmul.bf16.gmra.mxu0 %v109
  %v3836 = vpop.f32.mrf.mxu0
  %v3837 = vadd.f32 %v3824, %v3836
  %v3838 = vpop.f32.mrf.mxu0
  %3839 = vdwg.mxu0
  %3840 = vmatpush.bf16.msra.mxu0 %v2893
  %3841 = vmatpush.bf16.msra.mxu0 %v2892
  %3842 = vmatpush.bf16.msra.mxu0 %v2891
  %3843 = vmatpush.bf16.msra.mxu0 %v2890
  %3844 = vmatpush.bf16.msra.mxu0 %v2889
  %3845 = vmatpush.bf16.msra.mxu0 %v2888
  %3846 = vmatpush.bf16.msra.mxu0 %v2887
  %3847 = vmatpush.bf16.msra.mxu0 %v2886
  %3848 = vmatmul.bf16.gmra.mxu0 %v110
  %v3849 = vpop.f32.mrf.mxu0
  %v3850 = vadd.f32 %v3837, %v3849
  %v3851 = vpop.f32.mrf.mxu0
  %3852 = vdwg.mxu0
  %3853 = vmatpush.bf16.msra.mxu0 %v2901
  %3854 = vmatpush.bf16.msra.mxu0 %v2900
  %3855 = vmatpush.bf16.msra.mxu0 %v2899
  %3856 = vmatpush.bf16.msra.mxu0 %v2898
  %3857 = vmatpush.bf16.msra.mxu0 %v2897
  %3858 = vmatpush.bf16.msra.mxu0 %v2896
  %3859 = vmatpush.bf16.msra.mxu0 %v2895
  %3860 = vmatpush.bf16.msra.mxu0 %v2894
  %3861 = vmatmul.bf16.gmra.mxu0 %v111
  %v3862 = vpop.f32.mrf.mxu0
  %v3863 = vadd.f32 %v3850, %v3862
  %v3864 = vpop.f32.mrf.mxu0
  %3865 = vdwg.mxu0
  %3866 = vmatpush.bf16.msra.mxu0 %v2909
  %3867 = vmatpush.bf16.msra.mxu0 %v2908
  %3868 = vmatpush.bf16.msra.mxu0 %v2907
  %3869 = vmatpush.bf16.msra.mxu0 %v2906
  %3870 = vmatpush.bf16.msra.mxu0 %v2905
  %3871 = vmatpush.bf16.msra.mxu0 %v2904
  %3872 = vmatpush.bf16.msra.mxu0 %v2903
  %3873 = vmatpush.bf16.msra.mxu0 %v2902
  %3874 = vmatmul.bf16.gmra.mxu0 %v112
  %v3875 = vpop.f32.mrf.mxu0
  %v3876 = vadd.f32 %v3863, %v3875
  %v3877 = vpop.f32.mrf.mxu0
  %3878 = vdwg.mxu0
  %3879 = vmatpush.bf16.msra.mxu0 %v2917
  %3880 = vmatpush.bf16.msra.mxu0 %v2916
  %3881 = vmatpush.bf16.msra.mxu0 %v2915
  %3882 = vmatpush.bf16.msra.mxu0 %v2914
  %3883 = vmatpush.bf16.msra.mxu0 %v2913
  %3884 = vmatpush.bf16.msra.mxu0 %v2912
  %3885 = vmatpush.bf16.msra.mxu0 %v2911
  %3886 = vmatpush.bf16.msra.mxu0 %v2910
  %3887 = vmatmul.bf16.gmra.mxu0 %v113
  %v3888 = vpop.f32.mrf.mxu0
  %v3889 = vadd.f32 %v3876, %v3888
  %v3890 = vpop.f32.mrf.mxu0
  %3891 = vdwg.mxu0
  %3892 = vmatpush.bf16.msra.mxu0 %v2925
  %3893 = vmatpush.bf16.msra.mxu0 %v2924
  %3894 = vmatpush.bf16.msra.mxu0 %v2923
  %3895 = vmatpush.bf16.msra.mxu0 %v2922
  %3896 = vmatpush.bf16.msra.mxu0 %v2921
  %3897 = vmatpush.bf16.msra.mxu0 %v2920
  %3898 = vmatpush.bf16.msra.mxu0 %v2919
  %3899 = vmatpush.bf16.msra.mxu0 %v2918
  %3900 = vmatmul.bf16.gmra.mxu0 %v114
  %v3901 = vpop.f32.mrf.mxu0
  %v3902 = vadd.f32 %v3889, %v3901
  %v3903 = vpop.f32.mrf.mxu0
  %3904 = vdwg.mxu0
  %3905 = vmatpush.bf16.msra.mxu0 %v2933
  %3906 = vmatpush.bf16.msra.mxu0 %v2932
  %3907 = vmatpush.bf16.msra.mxu0 %v2931
  %3908 = vmatpush.bf16.msra.mxu0 %v2930
  %3909 = vmatpush.bf16.msra.mxu0 %v2929
  %3910 = vmatpush.bf16.msra.mxu0 %v2928
  %3911 = vmatpush.bf16.msra.mxu0 %v2927
  %3912 = vmatpush.bf16.msra.mxu0 %v2926
  %3913 = vmatmul.bf16.gmra.mxu0 %v115
  %v3914 = vpop.f32.mrf.mxu0
  %v3915 = vadd.f32 %v3902, %v3914
  %v3916 = vpop.f32.mrf.mxu0
  %3917 = vdwg.mxu0
  %3918 = vmatpush.bf16.msra.mxu0 %v2941
  %3919 = vmatpush.bf16.msra.mxu0 %v2940
  %3920 = vmatpush.bf16.msra.mxu0 %v2939
  %3921 = vmatpush.bf16.msra.mxu0 %v2938
  %3922 = vmatpush.bf16.msra.mxu0 %v2937
  %3923 = vmatpush.bf16.msra.mxu0 %v2936
  %3924 = vmatpush.bf16.msra.mxu0 %v2935
  %3925 = vmatpush.bf16.msra.mxu0 %v2934
  %3926 = vmatmul.bf16.gmra.mxu0 %v116
  %v3927 = vpop.f32.mrf.mxu0
  %v3928 = vadd.f32 %v3915, %v3927
  %v3929 = vpop.f32.mrf.mxu0
  %3930 = vdwg.mxu0
  %3931 = vmatpush.bf16.msra.mxu0 %v2949
  %3932 = vmatpush.bf16.msra.mxu0 %v2948
  %3933 = vmatpush.bf16.msra.mxu0 %v2947
  %3934 = vmatpush.bf16.msra.mxu0 %v2946
  %3935 = vmatpush.bf16.msra.mxu0 %v2945
  %3936 = vmatpush.bf16.msra.mxu0 %v2944
  %3937 = vmatpush.bf16.msra.mxu0 %v2943
  %3938 = vmatpush.bf16.msra.mxu0 %v2942
  %3939 = vmatmul.bf16.gmra.mxu0 %v117
  %v3940 = vpop.f32.mrf.mxu0
  %v3941 = vadd.f32 %v3928, %v3940
  %v3942 = vpop.f32.mrf.mxu0
  %3943 = vdwg.mxu0
  %3944 = vmatpush.bf16.msra.mxu0 %v2957
  %3945 = vmatpush.bf16.msra.mxu0 %v2956
  %3946 = vmatpush.bf16.msra.mxu0 %v2955
  %3947 = vmatpush.bf16.msra.mxu0 %v2954
  %3948 = vmatpush.bf16.msra.mxu0 %v2953
  %3949 = vmatpush.bf16.msra.mxu0 %v2952
  %3950 = vmatpush.bf16.msra.mxu0 %v2951
  %3951 = vmatpush.bf16.msra.mxu0 %v2950
  %3952 = vmatmul.bf16.gmra.mxu0 %v118
  %v3953 = vpop.f32.mrf.mxu0
  %v3954 = vadd.f32 %v3941, %v3953
  %v3955 = vpop.f32.mrf.mxu0
  %3956 = vdwg.mxu0
  %3957 = vmatpush.bf16.msra.mxu0 %v2965
  %3958 = vmatpush.bf16.msra.mxu0 %v2964
  %3959 = vmatpush.bf16.msra.mxu0 %v2963
  %3960 = vmatpush.bf16.msra.mxu0 %v2962
  %3961 = vmatpush.bf16.msra.mxu0 %v2961
  %3962 = vmatpush.bf16.msra.mxu0 %v2960
  %3963 = vmatpush.bf16.msra.mxu0 %v2959
  %3964 = vmatpush.bf16.msra.mxu0 %v2958
  %3965 = vmatmul.bf16.gmra.mxu0 %v119
  %v3966 = vpop.f32.mrf.mxu0
  %v3967 = vadd.f32 %v3954, %v3966
  %v3968 = vpop.f32.mrf.mxu0
  %3969 = vdwg.mxu0
  %3970 = vmatpush.bf16.msra.mxu0 %v2973
  %3971 = vmatpush.bf16.msra.mxu0 %v2972
  %3972 = vmatpush.bf16.msra.mxu0 %v2971
  %3973 = vmatpush.bf16.msra.mxu0 %v2970
  %3974 = vmatpush.bf16.msra.mxu0 %v2969
  %3975 = vmatpush.bf16.msra.mxu0 %v2968
  %3976 = vmatpush.bf16.msra.mxu0 %v2967
  %3977 = vmatpush.bf16.msra.mxu0 %v2966
  %3978 = vmatmul.bf16.gmra.mxu0 %v120
  %v3979 = vpop.f32.mrf.mxu0
  %v3980 = vadd.f32 %v3967, %v3979
  %v3981 = vpop.f32.mrf.mxu0
  %3982 = vdwg.mxu0
  %3983 = vmatpush.bf16.msra.mxu0 %v2981
  %3984 = vmatpush.bf16.msra.mxu0 %v2980
  %3985 = vmatpush.bf16.msra.mxu0 %v2979
  %3986 = vmatpush.bf16.msra.mxu0 %v2978
  %3987 = vmatpush.bf16.msra.mxu0 %v2977
  %3988 = vmatpush.bf16.msra.mxu0 %v2976
  %3989 = vmatpush.bf16.msra.mxu0 %v2975
  %3990 = vmatpush.bf16.msra.mxu0 %v2974
  %3991 = vmatmul.bf16.gmra.mxu0 %v121
  %v3992 = vpop.f32.mrf.mxu0
  %v3993 = vadd.f32 %v3980, %v3992
  %v3994 = vpop.f32.mrf.mxu0
  %3995 = vdwg.mxu0
  %3996 = vmatpush.bf16.msra.mxu0 %v2989
  %3997 = vmatpush.bf16.msra.mxu0 %v2988
  %3998 = vmatpush.bf16.msra.mxu0 %v2987
  %3999 = vmatpush.bf16.msra.mxu0 %v2986
  %4000 = vmatpush.bf16.msra.mxu0 %v2985
  %4001 = vmatpush.bf16.msra.mxu0 %v2984
  %4002 = vmatpush.bf16.msra.mxu0 %v2983
  %4003 = vmatpush.bf16.msra.mxu0 %v2982
  %4004 = vmatmul.bf16.gmra.mxu0 %v122
  %v4005 = vpop.f32.mrf.mxu0
  %v4006 = vadd.f32 %v3993, %v4005
  %v4007 = vpop.f32.mrf.mxu0
  %4008 = vdwg.mxu0
  %4009 = vmatpush.bf16.msra.mxu0 %v2997
  %4010 = vmatpush.bf16.msra.mxu0 %v2996
  %4011 = vmatpush.bf16.msra.mxu0 %v2995
  %4012 = vmatpush.bf16.msra.mxu0 %v2994
  %4013 = vmatpush.bf16.msra.mxu0 %v2993
  %4014 = vmatpush.bf16.msra.mxu0 %v2992
  %4015 = vmatpush.bf16.msra.mxu0 %v2991
  %4016 = vmatpush.bf16.msra.mxu0 %v2990
  %4017 = vmatmul.bf16.gmra.mxu0 %v123
  %v4018 = vpop.f32.mrf.mxu0
  %v4019 = vadd.f32 %v4006, %v4018
  %v4020 = vpop.f32.mrf.mxu0
  %4021 = vdwg.mxu0
  %4022 = vmatpush.bf16.msra.mxu0 %v3005
  %4023 = vmatpush.bf16.msra.mxu0 %v3004
  %4024 = vmatpush.bf16.msra.mxu0 %v3003
  %4025 = vmatpush.bf16.msra.mxu0 %v3002
  %4026 = vmatpush.bf16.msra.mxu0 %v3001
  %4027 = vmatpush.bf16.msra.mxu0 %v3000
  %4028 = vmatpush.bf16.msra.mxu0 %v2999
  %4029 = vmatpush.bf16.msra.mxu0 %v2998
  %4030 = vmatmul.bf16.gmra.mxu0 %v124
  %v4031 = vpop.f32.mrf.mxu0
  %v4032 = vadd.f32 %v4019, %v4031
  %v4033 = vpop.f32.mrf.mxu0
  %4034 = vdwg.mxu0
  %4035 = vmatpush.bf16.msra.mxu0 %v3013
  %4036 = vmatpush.bf16.msra.mxu0 %v3012
  %4037 = vmatpush.bf16.msra.mxu0 %v3011
  %4038 = vmatpush.bf16.msra.mxu0 %v3010
  %4039 = vmatpush.bf16.msra.mxu0 %v3009
  %4040 = vmatpush.bf16.msra.mxu0 %v3008
  %4041 = vmatpush.bf16.msra.mxu0 %v3007
  %4042 = vmatpush.bf16.msra.mxu0 %v3006
  %4043 = vmatmul.bf16.gmra.mxu0 %v125
  %v4044 = vpop.f32.mrf.mxu0
  %v4045 = vadd.f32 %v4032, %v4044
  %v4046 = vpop.f32.mrf.mxu0
  %4047 = vdwg.mxu0
  %4048 = vmatpush.bf16.msra.mxu0 %v3021
  %4049 = vmatpush.bf16.msra.mxu0 %v3020
  %4050 = vmatpush.bf16.msra.mxu0 %v3019
  %4051 = vmatpush.bf16.msra.mxu0 %v3018
  %4052 = vmatpush.bf16.msra.mxu0 %v3017
  %4053 = vmatpush.bf16.msra.mxu0 %v3016
  %4054 = vmatpush.bf16.msra.mxu0 %v3015
  %4055 = vmatpush.bf16.msra.mxu0 %v3014
  %4056 = vmatmul.bf16.gmra.mxu0 %v126
  %v4057 = vpop.f32.mrf.mxu0
  %v4058 = vadd.f32 %v4045, %v4057
  %v4059 = vpop.f32.mrf.mxu0
  %4060 = vdwg.mxu0
  %4061 = vmatpush.bf16.msra.mxu0 %v3029
  %4062 = vmatpush.bf16.msra.mxu0 %v3028
  %4063 = vmatpush.bf16.msra.mxu0 %v3027
  %4064 = vmatpush.bf16.msra.mxu0 %v3026
  %4065 = vmatpush.bf16.msra.mxu0 %v3025
  %4066 = vmatpush.bf16.msra.mxu0 %v3024
  %4067 = vmatpush.bf16.msra.mxu0 %v3023
  %4068 = vmatpush.bf16.msra.mxu0 %v3022
  %4069 = vmatmul.bf16.gmra.mxu0 %v127
  %v4070 = vpop.f32.mrf.mxu0
  %v4071 = vadd.f32 %v4058, %v4070
  %v4072 = vpop.f32.mrf.mxu0
  %4073 = vdwg.mxu0
  %4074 = vmatpush.bf16.msra.mxu0 %v3037
  %4075 = vmatpush.bf16.msra.mxu0 %v3036
  %4076 = vmatpush.bf16.msra.mxu0 %v3035
  %4077 = vmatpush.bf16.msra.mxu0 %v3034
  %4078 = vmatpush.bf16.msra.mxu0 %v3033
  %4079 = vmatpush.bf16.msra.mxu0 %v3032
  %4080 = vmatpush.bf16.msra.mxu0 %v3031
  %4081 = vmatpush.bf16.msra.mxu0 %v3030
  %4082 = vmatmul.bf16.gmra.mxu0 %v128
  %v4083 = vpop.f32.mrf.mxu0
  %v4084 = vadd.f32 %v4071, %v4083
  %v4085 = vpop.f32.mrf.mxu0
  %4086 = vdwg.mxu0
  %4087 = vmatpush.bf16.msra.mxu0 %v3045
  %4088 = vmatpush.bf16.msra.mxu0 %v3044
  %4089 = vmatpush.bf16.msra.mxu0 %v3043
  %4090 = vmatpush.bf16.msra.mxu0 %v3042
  %4091 = vmatpush.bf16.msra.mxu0 %v3041
  %4092 = vmatpush.bf16.msra.mxu0 %v3040
  %4093 = vmatpush.bf16.msra.mxu0 %v3039
  %4094 = vmatpush.bf16.msra.mxu0 %v3038
  %4095 = vmatmul.bf16.gmra.mxu0 %v129
  %v4096 = vpop.f32.mrf.mxu0
  %v4097 = vadd.f32 %v4084, %v4096
  %v4098 = vpop.f32.mrf.mxu0
  %4099 = vdwg.mxu0
  %4100 = vmatpush.bf16.msra.mxu0 %v3053
  %4101 = vmatpush.bf16.msra.mxu0 %v3052
  %4102 = vmatpush.bf16.msra.mxu0 %v3051
  %4103 = vmatpush.bf16.msra.mxu0 %v3050
  %4104 = vmatpush.bf16.msra.mxu0 %v3049
  %4105 = vmatpush.bf16.msra.mxu0 %v3048
  %4106 = vmatpush.bf16.msra.mxu0 %v3047
  %4107 = vmatpush.bf16.msra.mxu0 %v3046
  %4108 = vmatmul.bf16.gmra.mxu0 %v130
  %v4109 = vpop.f32.mrf.mxu0
  %v4110 = vadd.f32 %v4097, %v4109
  %v4111 = vpop.f32.mrf.mxu0
  %4112 = vdwg.mxu0
  %4113 = vmatpush.bf16.msra.mxu0 %v3061
  %4114 = vmatpush.bf16.msra.mxu0 %v3060
  %4115 = vmatpush.bf16.msra.mxu0 %v3059
  %4116 = vmatpush.bf16.msra.mxu0 %v3058
  %4117 = vmatpush.bf16.msra.mxu0 %v3057
  %4118 = vmatpush.bf16.msra.mxu0 %v3056
  %4119 = vmatpush.bf16.msra.mxu0 %v3055
  %4120 = vmatpush.bf16.msra.mxu0 %v3054
  %4121 = vmatmul.bf16.gmra.mxu0 %v131
  %v4122 = vpop.f32.mrf.mxu0
  %v4123 = vadd.f32 %v4110, %v4122
  %v4124 = vpop.f32.mrf.mxu0
  %4125 = vdwg.mxu0
  %4126 = vmatpush.bf16.msra.mxu0 %v3069
  %4127 = vmatpush.bf16.msra.mxu0 %v3068
  %4128 = vmatpush.bf16.msra.mxu0 %v3067
  %4129 = vmatpush.bf16.msra.mxu0 %v3066
  %4130 = vmatpush.bf16.msra.mxu0 %v3065
  %4131 = vmatpush.bf16.msra.mxu0 %v3064
  %4132 = vmatpush.bf16.msra.mxu0 %v3063
  %4133 = vmatpush.bf16.msra.mxu0 %v3062
  %4134 = vmatmul.bf16.gmra.mxu0 %v132
  %v4135 = vpop.f32.mrf.mxu0
  %v4136 = vadd.f32 %v4123, %v4135
  %v4137 = vpop.f32.mrf.mxu0
  %4138 = vdwg.mxu0
  %4139 = vmatpush.bf16.msra.mxu0 %v3077
  %4140 = vmatpush.bf16.msra.mxu0 %v3076
  %4141 = vmatpush.bf16.msra.mxu0 %v3075
  %4142 = vmatpush.bf16.msra.mxu0 %v3074
  %4143 = vmatpush.bf16.msra.mxu0 %v3073
  %4144 = vmatpush.bf16.msra.mxu0 %v3072
  %4145 = vmatpush.bf16.msra.mxu0 %v3071
  %4146 = vmatpush.bf16.msra.mxu0 %v3070
  %4147 = vmatmul.bf16.gmra.mxu0 %v133
  %v4148 = vpop.f32.mrf.mxu0
  %v4149 = vadd.f32 %v4136, %v4148
  %v4150 = vpop.f32.mrf.mxu0
  %4151 = vdwg.mxu0
  %4152 = vmatpush.bf16.msra.mxu0 %v3085
  %4153 = vmatpush.bf16.msra.mxu0 %v3084
  %4154 = vmatpush.bf16.msra.mxu0 %v3083
  %4155 = vmatpush.bf16.msra.mxu0 %v3082
  %4156 = vmatpush.bf16.msra.mxu0 %v3081
  %4157 = vmatpush.bf16.msra.mxu0 %v3080
  %4158 = vmatpush.bf16.msra.mxu0 %v3079
  %4159 = vmatpush.bf16.msra.mxu0 %v3078
  %4160 = vmatmul.bf16.gmra.mxu0 %v134
  %v4161 = vpop.f32.mrf.mxu0
  %v4162 = vadd.f32 %v4149, %v4161
  %v4163 = vpop.f32.mrf.mxu0
  %4164 = vdwg.mxu0
  %4165 = vmatpush.bf16.msra.mxu0 %v3093
  %4166 = vmatpush.bf16.msra.mxu0 %v3092
  %4167 = vmatpush.bf16.msra.mxu0 %v3091
  %4168 = vmatpush.bf16.msra.mxu0 %v3090
  %4169 = vmatpush.bf16.msra.mxu0 %v3089
  %4170 = vmatpush.bf16.msra.mxu0 %v3088
  %4171 = vmatpush.bf16.msra.mxu0 %v3087
  %4172 = vmatpush.bf16.msra.mxu0 %v3086
  %4173 = vmatmul.bf16.gmra.mxu0 %v135
  %v4174 = vpop.f32.mrf.mxu0
  %v4175 = vadd.f32 %v4162, %v4174
  %v4176 = vpop.f32.mrf.mxu0
  %4177 = vdwg.mxu0
  %4178 = vmatpush.bf16.msra.mxu0 %v3101
  %4179 = vmatpush.bf16.msra.mxu0 %v3100
  %4180 = vmatpush.bf16.msra.mxu0 %v3099
  %4181 = vmatpush.bf16.msra.mxu0 %v3098
  %4182 = vmatpush.bf16.msra.mxu0 %v3097
  %4183 = vmatpush.bf16.msra.mxu0 %v3096
  %4184 = vmatpush.bf16.msra.mxu0 %v3095
  %4185 = vmatpush.bf16.msra.mxu0 %v3094
  %4186 = vmatmul.bf16.gmra.mxu0 %v136
  %v4187 = vpop.f32.mrf.mxu0
  %v4188 = vadd.f32 %v4175, %v4187
  %v4189 = vpop.f32.mrf.mxu0
  %4190 = vdwg.mxu0
  %4191 = vmatpush.bf16.msra.mxu0 %v3109
  %4192 = vmatpush.bf16.msra.mxu0 %v3108
  %4193 = vmatpush.bf16.msra.mxu0 %v3107
  %4194 = vmatpush.bf16.msra.mxu0 %v3106
  %4195 = vmatpush.bf16.msra.mxu0 %v3105
  %4196 = vmatpush.bf16.msra.mxu0 %v3104
  %4197 = vmatpush.bf16.msra.mxu0 %v3103
  %4198 = vmatpush.bf16.msra.mxu0 %v3102
  %4199 = vmatmul.bf16.gmra.mxu0 %v137
  %v4200 = vpop.f32.mrf.mxu0
  %v4201 = vadd.f32 %v4188, %v4200
  %v4202 = vpop.f32.mrf.mxu0
  %4203 = vdwg.mxu0
  %4204 = vmatpush.bf16.msra.mxu0 %v3117
  %4205 = vmatpush.bf16.msra.mxu0 %v3116
  %4206 = vmatpush.bf16.msra.mxu0 %v3115
  %4207 = vmatpush.bf16.msra.mxu0 %v3114
  %4208 = vmatpush.bf16.msra.mxu0 %v3113
  %4209 = vmatpush.bf16.msra.mxu0 %v3112
  %4210 = vmatpush.bf16.msra.mxu0 %v3111
  %4211 = vmatpush.bf16.msra.mxu0 %v3110
  %4212 = vmatmul.bf16.gmra.mxu0 %v138
  %v4213 = vpop.f32.mrf.mxu0
  %v4214 = vadd.f32 %v4201, %v4213
  %v4215 = vpop.f32.mrf.mxu0
  %4216 = vdwg.mxu0
  %4217 = vmatpush.bf16.msra.mxu0 %v3125
  %4218 = vmatpush.bf16.msra.mxu0 %v3124
  %4219 = vmatpush.bf16.msra.mxu0 %v3123
  %4220 = vmatpush.bf16.msra.mxu0 %v3122
  %4221 = vmatpush.bf16.msra.mxu0 %v3121
  %4222 = vmatpush.bf16.msra.mxu0 %v3120
  %4223 = vmatpush.bf16.msra.mxu0 %v3119
  %4224 = vmatpush.bf16.msra.mxu0 %v3118
  %4225 = vmatmul.bf16.gmra.mxu0 %v139
  %v4226 = vpop.f32.mrf.mxu0
  %v4227 = vadd.f32 %v4214, %v4226
  %v4228 = vpop.f32.mrf.mxu0
  %4229 = vdwg.mxu0
  %4230 = vmatpush.bf16.msra.mxu0 %v3133
  %4231 = vmatpush.bf16.msra.mxu0 %v3132
  %4232 = vmatpush.bf16.msra.mxu0 %v3131
  %4233 = vmatpush.bf16.msra.mxu0 %v3130
  %4234 = vmatpush.bf16.msra.mxu0 %v3129
  %4235 = vmatpush.bf16.msra.mxu0 %v3128
  %4236 = vmatpush.bf16.msra.mxu0 %v3127
  %4237 = vmatpush.bf16.msra.mxu0 %v3126
  %4238 = vmatmul.bf16.gmra.mxu0 %v140
  %v4239 = vpop.f32.mrf.mxu0
  %v4240 = vadd.f32 %v4227, %v4239
  %v4241 = vpop.f32.mrf.mxu0
  %4242 = vdwg.mxu0
  %4243 = vmatpush.bf16.msra.mxu0 %v3141
  %4244 = vmatpush.bf16.msra.mxu0 %v3140
  %4245 = vmatpush.bf16.msra.mxu0 %v3139
  %4246 = vmatpush.bf16.msra.mxu0 %v3138
  %4247 = vmatpush.bf16.msra.mxu0 %v3137
  %4248 = vmatpush.bf16.msra.mxu0 %v3136
  %4249 = vmatpush.bf16.msra.mxu0 %v3135
  %4250 = vmatpush.bf16.msra.mxu0 %v3134
  %4251 = vmatmul.bf16.gmra.mxu0 %v141
  %v4252 = vpop.f32.mrf.mxu0
  %v4253 = vadd.f32 %v4240, %v4252
  %v4254 = vpop.f32.mrf.mxu0
  %4255 = vdwg.mxu0
  %4256 = vmatpush.bf16.msra.mxu0 %v3149
  %4257 = vmatpush.bf16.msra.mxu0 %v3148
  %4258 = vmatpush.bf16.msra.mxu0 %v3147
  %4259 = vmatpush.bf16.msra.mxu0 %v3146
  %4260 = vmatpush.bf16.msra.mxu0 %v3145
  %4261 = vmatpush.bf16.msra.mxu0 %v3144
  %4262 = vmatpush.bf16.msra.mxu0 %v3143
  %4263 = vmatpush.bf16.msra.mxu0 %v3142
  %4264 = vmatmul.bf16.gmra.mxu0 %v142
  %v4265 = vpop.f32.mrf.mxu0
  %v4266 = vadd.f32 %v4253, %v4265
  %v4267 = vpop.f32.mrf.mxu0
  %4268 = vdwg.mxu0
  %4269 = vmatpush.bf16.msra.mxu0 %v3157
  %4270 = vmatpush.bf16.msra.mxu0 %v3156
  %4271 = vmatpush.bf16.msra.mxu0 %v3155
  %4272 = vmatpush.bf16.msra.mxu0 %v3154
  %4273 = vmatpush.bf16.msra.mxu0 %v3153
  %4274 = vmatpush.bf16.msra.mxu0 %v3152
  %4275 = vmatpush.bf16.msra.mxu0 %v3151
  %4276 = vmatpush.bf16.msra.mxu0 %v3150
  %4277 = vmatmul.bf16.gmra.mxu0 %v143
  %v4278 = vpop.f32.mrf.mxu0
  %v4279 = vadd.f32 %v4266, %v4278
  %v4280 = vpop.f32.mrf.mxu0
  %4281 = vdwg.mxu0
  %4282 = vmatpush.bf16.msra.mxu0 %v3165
  %4283 = vmatpush.bf16.msra.mxu0 %v3164
  %4284 = vmatpush.bf16.msra.mxu0 %v3163
  %4285 = vmatpush.bf16.msra.mxu0 %v3162
  %4286 = vmatpush.bf16.msra.mxu0 %v3161
  %4287 = vmatpush.bf16.msra.mxu0 %v3160
  %4288 = vmatpush.bf16.msra.mxu0 %v3159
  %4289 = vmatpush.bf16.msra.mxu0 %v3158
  %4290 = vmatmul.bf16.gmra.mxu0 %v144
  %v4291 = vpop.f32.mrf.mxu0
  %v4292 = vadd.f32 %v4279, %v4291
  %v4293 = vpop.f32.mrf.mxu0
  %4294 = vdwg.mxu0
  %4295 = vmatpush.bf16.msra.mxu0 %v3173
  %4296 = vmatpush.bf16.msra.mxu0 %v3172
  %4297 = vmatpush.bf16.msra.mxu0 %v3171
  %4298 = vmatpush.bf16.msra.mxu0 %v3170
  %4299 = vmatpush.bf16.msra.mxu0 %v3169
  %4300 = vmatpush.bf16.msra.mxu0 %v3168
  %4301 = vmatpush.bf16.msra.mxu0 %v3167
  %4302 = vmatpush.bf16.msra.mxu0 %v3166
  %4303 = vmatmul.bf16.gmra.mxu0 %v145
  %v4304 = vpop.f32.mrf.mxu0
  %v4305 = vadd.f32 %v4292, %v4304
  %v4306 = vpop.f32.mrf.mxu0
  %4307 = vdwg.mxu0
  %v4308 = vmax.f32 %v4305, 0.0
  %v4309 = vld [vmem:[%s3] sm:$0xff]
  %v4310 = vld [vmem:[%s3 + $0x8] sm:$0xff]
  %v4311 = vld [vmem:[%s3 + $0x10] sm:$0xff]
  %v4312 = vld [vmem:[%s3 + $0x18] sm:$0xff]
  %v4313 = vld [vmem:[%s3 + $0x20] sm:$0xff]
  %v4314 = vld [vmem:[%s3 + $0x28] sm:$0xff]
  %v4315 = vld [vmem:[%s4] sm:$0x1]
  %v4317 = vperm.slane %v4315, 0
  %vm4319 = vcmask 392192
  %v4321 = vsel %vm4319, %v4308, 0
  %4323 = vmatpush.msra.mxu0 0.0
  %4324 = vmatpush.msra.mxu0 0.0
  %4325 = vmatpush.msra.mxu0 0.0
  %4326 = vmatpush.msra.mxu0 0.0
  %4327 = vmatpush.msra.mxu0 0.0
  %4328 = vmatpush.msra.mxu0 0.0
  %4329 = vmatpush.msra.mxu0 0.0
  %4330 = vmatpush.msra.mxu0 0.0
  %4331 = vmatpush.msra.mxu0 0.0
  %4332 = vmatpush.msra.mxu0 0.0
  %4333 = vmatpush.msra.mxu0 %v4314
  %4334 = vmatpush.msra.mxu0 %v4313
  %4335 = vmatpush.msra.mxu0 %v4312
  %4336 = vmatpush.msra.mxu0 %v4311
  %4337 = vmatpush.msra.mxu0 %v4310
  %4338 = vmatpush.msra.mxu0 %v4309
  %4339 = vmatmul.f32.gmra.mxu0 %v4321
  %v4340 = vpop.f32.mrf.mxu0
  %v4341 = vadd.f32 %v4317, %v4340
  %4342 = vdwg.mxu0
  %v4343 = vmax.f32 %v4341, 0.0
  %v4344 = vld [vmem:[%s5] sm:$0xff]
  %v4345 = vld [vmem:[%s5 + $0x8] sm:$0xff]
  %v4346 = vld [vmem:[%s6] sm:$0x1]
  %v4348 = vperm.slane %v4346, 0
  %vm4350 = vcmask 130048
  %v4352 = vsel %vm4350, %v4343, 0
  %4354 = vmatpush.msra.mxu0 0.0
  %4355 = vmatpush.msra.mxu0 0.0
  %4356 = vmatpush.msra.mxu0 0.0
  %4357 = vmatpush.msra.mxu0 0.0
  %4358 = vmatpush.msra.mxu0 0.0
  %4359 = vmatpush.msra.mxu0 0.0
  %4360 = vmatpush.msra.mxu0 0.0
  %4361 = vmatpush.msra.mxu0 0.0
  %4362 = vmatpush.msra.mxu0 0.0
  %4363 = vmatpush.msra.mxu0 0.0
  %4364 = vmatpush.msra.mxu0 0.0
  %4365 = vmatpush.msra.mxu0 0.0
  %4366 = vmatpush.msra.mxu0 0.0
  %4367 = vmatpush.msra.mxu0 0.0
  %4368 = vmatpush.msra.mxu0 %v4345
  %4369 = vmatpush.msra.mxu0 %v4344
  %4370 = vmatmul.f32.gmra.mxu0 %v4352
  %v4371 = vpop.f32.mrf.mxu0
  %v4372 = vadd.f32 %v4348, %v4371
  %4373 = vdwg.mxu0
  %v4374 = vmax.f32 %v4372, 0.0
  %v4375 = vld [vmem:[%s7] sm:$0xff]
  %v4376 = vld [vmem:[%s7 + $0x8] sm:$0xff]
  %v4377 = vld [vmem:[%s7 + $0x10] sm:$0xff]
  %v4378 = vld [vmem:[%s7 + $0x18] sm:$0xff]
  %v4379 = vld [vmem:[%s7 + $0x20] sm:$0xff]
  %v4380 = vld [vmem:[%s7 + $0x28] sm:$0xff]
  %v4381 = vld [vmem:[%s7 + $0x30] sm:$0xff]
  %v4382 = vld [vmem:[%s7 + $0x38] sm:$0xff]
  %v4383 = vld [vmem:[%s7 + $0x40] sm:$0xff]
  %v4384 = vld [vmem:[%s7 + $0x48] sm:$0xff]
  %v4385 = vld [vmem:[%s7 + $0x50] sm:$0xff]
  %v4386 = vld [vmem:[%s7 + $0x58] sm:$0xff]
  %v4387 = vld [vmem:[%s7 + $0x60] sm:$0xff]
  %v4388 = vld [vmem:[%s7 + $0x68] sm:$0xff]
  %v4389 = vld [vmem:[%s7 + $0x70] sm:$0xff]
  %v4390 = vld [vmem:[%s8] sm:$0x1]
  %v4392 = vperm.slane %v4390, 0
  %vm4394 = vcmask 982016
  %v4396 = vsel %vm4394, %v4374, 0
  %4398 = vmatpush.msra.mxu0 0.0
  %4399 = vmatpush.msra.mxu0 %v4389
  %4400 = vmatpush.msra.mxu0 %v4388
  %4401 = vmatpush.msra.mxu0 %v4387
  %4402 = vmatpush.msra.mxu0 %v4386
  %4403 = vmatpush.msra.mxu0 %v4385
  %4404 = vmatpush.msra.mxu0 %v4384
  %4405 = vmatpush.msra.mxu0 %v4383
  %4406 = vmatpush.msra.mxu0 %v4382
  %4407 = vmatpush.msra.mxu0 %v4381
  %4408 = vmatpush.msra.mxu0 %v4380
  %4409 = vmatpush.msra.mxu0 %v4379
  %4410 = vmatpush.msra.mxu0 %v4378
  %4411 = vmatpush.msra.mxu0 %v4377
  %4412 = vmatpush.msra.mxu0 %v4376
  %4413 = vmatpush.msra.mxu0 %v4375
  %4414 = vmatmul.f32.gmra.mxu0 %v4396
  %v4415 = vpop.f32.mrf.mxu0
  %v4416 = vadd.f32 %v4392, %v4415
  %4417 = vdwg.mxu0
  %v4418 = vmax.f32 %v4416, 0.0
  %v4419 = vld [vmem:[%s9] sm:$0xff]
  %v4420 = vld [vmem:[%s9 + $0x8] sm:$0xff]
  %v4421 = vld [vmem:[%s9 + $0x10] sm:$0xff]
  %v4422 = vld [vmem:[%s9 + $0x18] sm:$0xff]
  %v4423 = vld [vmem:[%s9 + $0x20] sm:$0xff]
  %v4424 = vld [vmem:[%s9 + $0x28] sm:$0xff]
  %v4425 = vld [vmem:[%s9 + $0x30] sm:$0xff]
  %v4426 = vld [vmem:[%s9 + $0x38] sm:$0xff]
  %v4427 = vld [vmem:[%s9 + $0x40] sm:$0xff]
  %v4428 = vld [vmem:[%s9 + $0x48] sm:$0xff]
  %v4429 = vld [vmem:[%s9 + $0x50] sm:$0xf]
  %v4430 = vld [vmem:[%s10] sm:$0x1]
  %v4432 = vperm.slane %v4430, 0
  %vm4434 = vcmask 687104
  %v4436 = vsel %vm4434, %v4418, 0
  %vm4438 = vcmask 1043456
  %v4440 = vsel %vm4438, %v4429, 0
  %4442 = vmatpush.msra.mxu0 0.0
  %4443 = vmatpush.msra.mxu0 0.0
  %4444 = vmatpush.msra.mxu0 0.0
  %4445 = vmatpush.msra.mxu0 0.0
  %4446 = vmatpush.msra.mxu0 0.0
  %4447 = vmatpush.msra.mxu0 %v4440
  %4448 = vmatpush.msra.mxu0 %v4428
  %4449 = vmatpush.msra.mxu0 %v4427
  %4450 = vmatpush.msra.mxu0 %v4426
  %4451 = vmatpush.msra.mxu0 %v4425
  %4452 = vmatpush.msra.mxu0 %v4424
  %4453 = vmatpush.msra.mxu0 %v4423
  %4454 = vmatpush.msra.mxu0 %v4422
  %4455 = vmatpush.msra.mxu0 %v4421
  %4456 = vmatpush.msra.mxu0 %v4420
  %4457 = vmatpush.msra.mxu0 %v4419
  %4458 = vmatmul.f32.gmra.mxu0 %v4436
  %v4459 = vpop.f32.mrf.mxu0
  %v4460 = vadd.f32 %v4432, %v4459
  %4461 = vdwg.mxu0
  %4462 = vst [vmem:[%s11] sm:$0xff] %v4460
  // Predicated region
  $region46: #{eyenet_forward.1} parent=0 // pred_check
    _
  $region47: #{eyenet_forward.1} parent=0 // pred_check_branch
    %4464 = sbr.rel (0) target = $region49
  $region48: #{eyenet_forward.1} parent=0 // pred_region
    _
  $region49: #{eyenet_forward.1} parent=0 // pred_fallthru
    _
  // Predicated region
  $region50: #{eyenet_forward.1} parent=0 // pred_check
    _
  $region51: #{eyenet_forward.1} parent=0 // pred_check_branch
    %4466 = sbr.rel (0) target = $region53
  $region52: #{eyenet_forward.1} parent=0 // pred_region
    _
  $region53: #{eyenet_forward.1} parent=0 // pred_fallthru
    _

</llo_original>
